<compile_context>
chip_gen: v7x
topology: tpu7x:2x2x1
jax: 0.10.0
libtpu: 0.0.40
codegen_flags: <defaults>
</compile_context>

<pallas_src>
import functools

import jax
import jax.numpy as jnp
from jax.experimental import pallas as pl
from jax.experimental.pallas import tpu as pltpu

LN_EPS = 1e-5          # torch nn.LayerNorm default
NEG_INF = -1e30        # additive mask for padded key tokens


def _layernorm(x, w, b):
    # x: (M, D) f32, w/b broadcastable (1, D). Always f32 (matches LayerNorm.forward).
    mu = jnp.mean(x, axis=-1, keepdims=True)
    var = jnp.mean((x - mu) ** 2, axis=-1, keepdims=True)
    return (x - mu) * jax.lax.rsqrt(var + LN_EPS) * w + b


def _stack_vmem_limit():
    # Raise the scoped-VMEM limit on 128 MiB parts (v5e/v6e); stay well under the
    # 64 MiB physical budget on v7x.  Fall back conservatively if the query fails.
    try:
        cap = int(pltpu.get_tpu_info().vmem_capacity_bytes)
        return min(100 * 1024 * 1024, int(cap * 3 // 4))
    except Exception:  # pragma: no cover - off-TPU tracing / older jax
        return 48 * 1024 * 1024


# --------------------------------------------------------------------------
# Kernel 1: patch embedding (conv1 as matmul) + CLS/pos add + ln_pre
# --------------------------------------------------------------------------
def embed_kernel(patch_ref, wpe_ref, clspos_ref, lnw_ref, lnb_ref, o_ref):
    # patch_ref[0]: (S_pad, 3*P*P) bf16 (row 0 and pad rows are zero)
    emb = jnp.dot(patch_ref[0], wpe_ref[...],
                  preferred_element_type=jnp.float32)            # (S_pad, D) f32
    tok = emb + clspos_ref[...]                                  # cls@row0 + pos
    o_ref[0] = _layernorm(tok, lnw_ref[...], lnb_ref[...])


def embed_tokens(patches_p, w_pe, clspos, ln_w, ln_b):
    B, S_pad, F = patches_p.shape
    D = w_pe.shape[1]
    fixed = lambda shp: pl.BlockSpec(shp, lambda b: (0, 0))
    return pl.pallas_call(
        embed_kernel,
        out_shape=jax.ShapeDtypeStruct((B, S_pad, D), jnp.float32),
        grid=(B,),
        in_specs=[
            pl.BlockSpec((1, S_pad, F), lambda b: (b, 0, 0)),
            fixed((F, D)),
            fixed((S_pad, D)),
            fixed((1, D)),
            fixed((1, D)),
        ],
        out_specs=pl.BlockSpec((1, S_pad, D), lambda b: (b, 0, 0)),
        compiler_params=pltpu.CompilerParams(
            dimension_semantics=("parallel",),
            vmem_limit_bytes=32 * 1024 * 1024),
    )(patches_p, w_pe, clspos, ln_w, ln_b)


# --------------------------------------------------------------------------
# Kernel 2: the full ResidualAttentionBlock stack, grid = (batch_tile, layer).
#   The (B_tile, S_pad, D) activation block lives flattened as (M, D) in a VMEM
#   scratch across the layer axis; per-layer weights are streamed (and auto
#   double-buffered) via the layer grid index so layer l+1 weights prefetch
#   while layer l computes.
# --------------------------------------------------------------------------
def stack_kernel(n_heads, head_dim, seq_len, b_tile,
                 x_ref, ln1w, ln1b, wqkv, bqkv, wo, bo,
                 ln2w, ln2b, wfc, bfc, wpr, bpr, o_ref, x_acc, attn_buf):
    D = n_heads * head_dim
    S_pad = x_ref.shape[1]
    M = b_tile * S_pad
    l = pl.program_id(1)

    @pl.when(l == 0)
    def _():
        x_acc[...] = x_ref[...].reshape(M, D)

    x = x_acc[...]                                               # (M, D) f32

    # ---- multi-head self-attention ('vanilla' custom_attn) ----
    # head_dim**-0.5 is pre-folded into the Q columns of w_qkv / b_qkv.
    xh = _layernorm(x, ln1w[0], ln1b[0]).astype(jnp.bfloat16)
    qkv = jnp.dot(xh, wqkv[0], preferred_element_type=jnp.float32) + bqkv[0]  # (M, 3D)

    key_idx = jax.lax.broadcasted_iota(jnp.int32, (1, S_pad), 1)
    mask = jnp.where(key_idx < seq_len, 0.0, NEG_INF).astype(jnp.float32)     # pad keys -> -inf

    # Per-batch-element, per-head attention; pv tiles are written into a (M, D)
    # bf16 scratch at static column offsets so out_proj is a single K=D matmul.
    # TODO(synk): for 12-16 heads use lax.fori_loop(unroll=2)/head pairing here.
    for bt in range(b_tile):                                     # static, small
        r0, r1 = bt * S_pad, (bt + 1) * S_pad
        for h in range(n_heads):                                 # static, unrolled
            c0, c1 = h * head_dim, (h + 1) * head_dim
            q_h = qkv[r0:r1, c0:c1].astype(jnp.bfloat16)
            k_h = qkv[r0:r1, D + c0:D + c1].astype(jnp.bfloat16)
            v_h = qkv[r0:r1, 2 * D + c0:2 * D + c1].astype(jnp.bfloat16)
            s = jax.lax.dot_general(q_h, k_h, (((1,), (1,)), ((), ())),
                                    preferred_element_type=jnp.float32)       # (S_pad, S_pad)
            s = s + mask
            s = s - jnp.max(s, axis=-1, keepdims=True)
            e = jnp.exp(s)
            p = e * pl.reciprocal(jnp.sum(e, axis=-1, keepdims=True), approx=True)
            pv = jnp.dot(p.astype(jnp.bfloat16), v_h,
                         preferred_element_type=jnp.float32)                  # (S_pad, hd)
            attn_buf[r0:r1, c0:c1] = pv.astype(jnp.bfloat16)

    attn = jnp.dot(attn_buf[...], wo[0], preferred_element_type=jnp.float32) + bo[0]
    x = x + attn

    # ---- MLP with QuickGELU (kept f32 on the VPU/EUP path; safe on v5e) ----
    xh2 = _layernorm(x, ln2w[0], ln2b[0]).astype(jnp.bfloat16)
    hcc = jnp.dot(xh2, wfc[0], preferred_element_type=jnp.float32) + bfc[0]   # (M, 4D)
    g = hcc * jax.nn.sigmoid(1.702 * hcc)
    m = jnp.dot(g.astype(jnp.bfloat16), wpr[0], preferred_element_type=jnp.float32) + bpr[0]
    x_acc[...] = x + m

    @pl.when(l == pl.num_programs(1) - 1)
    def _():
        o_ref[...] = x_acc[...].reshape(b_tile, S_pad, D)


def _pick_b_tile(B):
    for t in (4, 2, 1):
        if B % t == 0:
            return t
    return 1


def run_stack(x, p, *, n_heads, seq_len):
    B, S_pad, D = x.shape
    L = p["w_qkv"].shape[0]
    head_dim = D // n_heads
    b_tile = _pick_b_tile(B)
    M = b_tile * S_pad

    def wspec(shape):
        nd = len(shape)
        return pl.BlockSpec((1,) + tuple(shape[1:]),
                            lambda b, l, nd=nd: (l,) + (0,) * (nd - 1))

    kernel = functools.partial(stack_kernel, n_heads, head_dim, seq_len, b_tile)
    return pl.pallas_call(
        kernel,
        out_shape=jax.ShapeDtypeStruct((B, S_pad, D), jnp.float32),
        grid=(B // b_tile, L),
        in_specs=[
            pl.BlockSpec((b_tile, S_pad, D), lambda b, l: (b, 0, 0)),
            wspec(p["ln1_w"].shape), wspec(p["ln1_b"].shape),
            wspec(p["w_qkv"].shape), wspec(p["b_qkv"].shape),
            wspec(p["w_out"].shape), wspec(p["b_out"].shape),
            wspec(p["ln2_w"].shape), wspec(p["ln2_b"].shape),
            wspec(p["w_fc"].shape), wspec(p["b_fc"].shape),
            wspec(p["w_proj"].shape), wspec(p["b_proj"].shape),
        ],
        out_specs=pl.BlockSpec((b_tile, S_pad, D), lambda b, l: (b, 0, 0)),
        scratch_shapes=[pltpu.VMEM((M, D), jnp.float32),     # residual stream
                        pltpu.VMEM((M, D), jnp.bfloat16)],   # per-head pv slab
        input_output_aliases={0: 0},
        compiler_params=pltpu.CompilerParams(
            dimension_semantics=("parallel", "arbitrary"),
            vmem_limit_bytes=_stack_vmem_limit()),
    )(x, p["ln1_w"], p["ln1_b"], p["w_qkv"], p["b_qkv"], p["w_out"], p["b_out"],
      p["ln2_w"], p["ln2_b"], p["w_fc"], p["b_fc"], p["w_proj"], p["b_proj"])


# --------------------------------------------------------------------------
# Kernel 3: ln_post + @ proj (per-token projection; out_type='mean' with a
#   single output layer is layer-identity, no token pooling in the reference)
# --------------------------------------------------------------------------
def head_kernel(x_ref, lnw_ref, lnb_ref, proj_ref, o_ref):
    xh = _layernorm(x_ref[0], lnw_ref[...], lnb_ref[...]).astype(jnp.bfloat16)
    o_ref[0] = jnp.dot(xh, proj_ref[...], preferred_element_type=jnp.float32)


def run_head(x, ln_w, ln_b, proj):
    B, S_pad, D = x.shape
    O = proj.shape[1]
    fixed = lambda shp: pl.BlockSpec(shp, lambda b: (0, 0))
    return pl.pallas_call(
        head_kernel,
        out_shape=jax.ShapeDtypeStruct((B, S_pad, O), jnp.float32),
        grid=(B,),
        in_specs=[
            pl.BlockSpec((1, S_pad, D), lambda b: (b, 0, 0)),
            fixed((1, D)), fixed((1, D)), fixed((D, O)),
        ],
        out_specs=pl.BlockSpec((1, S_pad, O), lambda b: (b, 0, 0)),
        compiler_params=pltpu.CompilerParams(
            dimension_semantics=("parallel",),
            vmem_limit_bytes=32 * 1024 * 1024),
    )(x, ln_w, ln_b, proj)


# --------------------------------------------------------------------------
# Full forward (patch extraction / padding / CLS+pos prep in plain JAX)
# --------------------------------------------------------------------------
def vision_transformer_forward(x_nchw, params, *, patch_size, n_heads):
    B, C, H, W = x_nchw.shape
    P = patch_size
    gh, gw = H // P, W // P
    N = gh * gw
    S = N + 1
    S_pad = ((S + 15) // 16) * 16                  # bf16-friendly token count (mult of 16)
    D = params["pos"].shape[1]
    F = C * P * P

    # conv2d(kernel=P, stride=P, no bias)  ==  patch extraction + matmul.
    patches = x_nchw.reshape(B, C, gh, P, gw, P)
    patches = patches.transpose(0, 2, 4, 1, 3, 5).reshape(B, N, F)
    # Staged in bf16 (the embed matmul runs in bf16 anyway); row 0 (CLS slot) and
    # pad rows are zero -> they contribute nothing to the matmul.
    patches_p = jnp.zeros((B, S_pad, F), jnp.bfloat16).at[:, 1:S, :].set(
        patches.astype(jnp.bfloat16))

    # CLS embedding folded into the (padded) positional embedding slab (f32 add).
    clspos = jnp.zeros((S_pad, D), jnp.float32)
    clspos = clspos.at[0, :].set(params["cls"][0] + params["pos"][0])
    clspos = clspos.at[1:S, :].set(params["pos"][1:])

    x = embed_tokens(patches_p, params["w_pe"], clspos,
                     params["ln_pre_w"], params["ln_pre_b"])
    x = run_stack(x, params["blocks"], n_heads=n_heads, seq_len=S)
    y = run_head(x, params["ln_post_w"], params["ln_post_b"], params["proj"])
    return y[:, :S, :]


# --------------------------------------------------------------------------
# Deterministic parameter construction (stacked per-layer weights, bf16 MXU
# weights, attention scale pre-folded into the Q columns of w_qkv / b_qkv)
# --------------------------------------------------------------------------
def init_params(key, input_resolution, patch_size, width, layers, heads, output_dim):
    D = width
    hd = D // heads
    N = (input_resolution // patch_size) ** 2
    scale = D ** (-0.5)
    attn_scale = hd ** (-0.5)
    F = 3 * patch_size * patch_size
    keys = iter(jax.random.split(key, 16))
    nrm = lambda shp, s: s * jax.random.normal(next(keys), shp, jnp.float32)

    # conv1 weight (width, 3, P, P) -> matmul form (3*P*P, width)
    w_pe = nrm((width, 3, patch_size, patch_size), 0.02).reshape(width, F).T

    # fold head_dim**-0.5 into the Q block (first D output columns) of qkv
    qkv_scale = jnp.concatenate([jnp.full((D,), attn_scale, jnp.float32),
                                 jnp.ones((2 * D,), jnp.float32)])
    # torch in_proj_weight is (3D, D); F.linear uses x @ W.T -> store (L, D, 3D)
    w_qkv = jnp.swapaxes(nrm((layers, 3 * D, D), 0.02), 1, 2) * qkv_scale
    b_qkv = nrm((layers, 1, 3 * D), 0.02) * qkv_scale

    blocks = {
        "ln1_w": jnp.ones((layers, 1, D), jnp.float32),
        "ln1_b": jnp.zeros((layers, 1, D), jnp.float32),
        "w_qkv": w_qkv.astype(jnp.bfloat16),
        "b_qkv": b_qkv,
        # out_proj.weight (D, D); store W.T unsplit -> (L, D, D)
        "w_out": jnp.swapaxes(nrm((layers, D, D), 0.02), 1, 2).astype(jnp.bfloat16),
        "b_out": nrm((layers, 1, D), 0.02),
        "ln2_w": jnp.ones((layers, 1, D), jnp.float32),
        "ln2_b": jnp.zeros((layers, 1, D), jnp.float32),
        "w_fc": jnp.swapaxes(nrm((layers, 4 * D, D), 0.02), 1, 2).astype(jnp.bfloat16),
        "b_fc": nrm((layers, 1, 4 * D), 0.02),
        "w_proj": jnp.swapaxes(nrm((layers, D, 4 * D), 0.02), 1, 2).astype(jnp.bfloat16),
        "b_proj": nrm((layers, 1, D), 0.02),
    }
    return {
        "w_pe": w_pe.astype(jnp.bfloat16),
        "cls": nrm((1, D), scale),
        "pos": nrm((N + 1, D), scale),
        "ln_pre_w": jnp.ones((1, D), jnp.float32),
        "ln_pre_b": jnp.zeros((1, D), jnp.float32),
        "ln_post_w": jnp.ones((1, D), jnp.float32),
        "ln_post_b": jnp.zeros((1, D), jnp.float32),
        "proj": nrm((D, output_dim), scale).astype(jnp.bfloat16),
        "blocks": blocks,
    }


if __name__ == "__main__":
    # small but consistent config: 16x16 image, 4x4 patches -> 16 patches + CLS = 17 tokens (padded to 32)
    B = 2
    INPUT_RES = 16
    PATCH = 4
    WIDTH = 32
    LAYERS = 2
    HEADS = 2
    OUTPUT_DIM = 16

    key = jax.random.PRNGKey(0)
    kp, kx = jax.random.split(key)
    params = init_params(kp, INPUT_RES, PATCH, WIDTH, LAYERS, HEADS, OUTPUT_DIM)
    x = jax.random.normal(kx, (B, 3, INPUT_RES, INPUT_RES), jnp.float32)  # NCHW

    fwd = jax.jit(functools.partial(vision_transformer_forward,
                                    patch_size=PATCH, n_heads=HEADS))
    out = jax.block_until_ready(fwd(x, params))
    assert out.shape == (B, (INPUT_RES // PATCH) ** 2 + 1, OUTPUT_DIM)
    assert bool(jnp.all(jnp.isfinite(out)))
    print("KERNEL_OK")
</pallas_src>

<mosaic_0001>
module attributes {stable_mosaic.version = 11 : i64} {
  func.func @embed_kernel(%arg0: i32, %arg1: memref<1x32x48xbf16, #tpu.memory_space<vmem>>, %arg2: memref<48x32xbf16, #tpu.memory_space<vmem>>, %arg3: memref<32x32xf32, #tpu.memory_space<vmem>>, %arg4: memref<1x32xf32, #tpu.memory_space<vmem>>, %arg5: memref<1x32xf32, #tpu.memory_space<vmem>>, %arg6: memref<1x32x32xf32, #tpu.memory_space<vmem>>) attributes {dimension_semantics = [#tpu.dimension_semantics<parallel>], iteration_bounds = array<i64: 2>, scalar_prefetch = 0 : i64, scratch_operands = 0 : i64, tpu.core_type = #tpu.core_type<tc>, window_params = [{transform_indices = @transform_0, window_bounds = array<i64: 1, 32, 48>}, {pipeline_mode = #tpu.pipeline_mode<synchronous>, transform_indices = @transform_1, window_bounds = array<i64: 48, 32>}, {pipeline_mode = #tpu.pipeline_mode<synchronous>, transform_indices = @transform_2, window_bounds = array<i64: 32, 32>}, {pipeline_mode = #tpu.pipeline_mode<synchronous>, transform_indices = @transform_3, window_bounds = array<i64: 1, 32>}, {pipeline_mode = #tpu.pipeline_mode<synchronous>, transform_indices = @transform_4, window_bounds = array<i64: 1, 32>}, {transform_indices = @transform_5, window_bounds = array<i64: 1, 32, 32>}]} {
    %c0 = arith.constant 0 : index
    %c0_0 = arith.constant 0 : index
    %c0_1 = arith.constant 0 : index
    %0 = vector.load %arg1[%c0, %c0_0, %c0_1] : memref<1x32x48xbf16, #tpu.memory_space<vmem>>, vector<1x32x48xbf16>
    %1 = vector.shape_cast %0 : vector<1x32x48xbf16> to vector<32x48xbf16>
    %c0_2 = arith.constant 0 : index
    %c0_3 = arith.constant 0 : index
    %2 = vector.load %arg2[%c0_2, %c0_3] : memref<48x32xbf16, #tpu.memory_space<vmem>>, vector<48x32xbf16>
    %cst = arith.constant dense<0.000000e+00> : vector<32x32xf32>
    %3 = tpu.matmul %1, %2, %cst {dimension_numbers = #tpu.dot_dimension_numbers<[1], [0], [0], [1], [0, 0, 1, 1], [], []>} : vector<32x48xbf16>, vector<48x32xbf16>, vector<32x32xf32> -> vector<32x32xf32>
    %c0_4 = arith.constant 0 : index
    %c0_5 = arith.constant 0 : index
    %4 = vector.load %arg3[%c0_4, %c0_5] : memref<32x32xf32, #tpu.memory_space<vmem>>, vector<32x32xf32>
    %5 = arith.addf %3, %4 : vector<32x32xf32>
    %c0_6 = arith.constant 0 : index
    %c0_7 = arith.constant 0 : index
    %6 = vector.load %arg4[%c0_6, %c0_7] : memref<1x32xf32, #tpu.memory_space<vmem>>, vector<1x32xf32>
    %c0_8 = arith.constant 0 : index
    %c0_9 = arith.constant 0 : index
    %7 = vector.load %arg5[%c0_8, %c0_9] : memref<1x32xf32, #tpu.memory_space<vmem>>, vector<1x32xf32>
    %cst_10 = arith.constant dense<0.000000e+00> : vector<32xf32>
    %8 = vector.multi_reduction <add>, %5, %cst_10 [1] : vector<32x32xf32> to vector<32xf32>
    %9 = vector.shape_cast %8 : vector<32xf32> to vector<32x1xf32>
    %cst_11 = arith.constant 3.200000e+01 : f32
    %10 = vector.broadcast %cst_11 : f32 to vector<32x1xf32>
    %11 = arith.divf %9, %10 : vector<32x1xf32>
    %12 = vector.broadcast %11 : vector<32x1xf32> to vector<32x32xf32>
    %13 = arith.subf %5, %12 : vector<32x32xf32>
    %14 = arith.mulf %13, %13 : vector<32x32xf32>
    %cst_12 = arith.constant dense<0.000000e+00> : vector<32xf32>
    %15 = vector.multi_reduction <add>, %14, %cst_12 [1] : vector<32x32xf32> to vector<32xf32>
    %16 = vector.shape_cast %15 : vector<32xf32> to vector<32x1xf32>
    %cst_13 = arith.constant 3.200000e+01 : f32
    %17 = vector.broadcast %cst_13 : f32 to vector<32x1xf32>
    %18 = arith.divf %16, %17 : vector<32x1xf32>
    %19 = vector.broadcast %11 : vector<32x1xf32> to vector<32x32xf32>
    %20 = arith.subf %5, %19 : vector<32x32xf32>
    %cst_14 = arith.constant 9.99999974E-6 : f32
    %21 = vector.broadcast %cst_14 : f32 to vector<32x1xf32>
    %22 = arith.addf %18, %21 : vector<32x1xf32>
    %23 = math.rsqrt %22 : vector<32x1xf32>
    %24 = vector.broadcast %23 : vector<32x1xf32> to vector<32x32xf32>
    %25 = arith.mulf %20, %24 : vector<32x32xf32>
    %26 = vector.broadcast %6 : vector<1x32xf32> to vector<32x32xf32>
    %27 = arith.mulf %25, %26 : vector<32x32xf32>
    %28 = vector.broadcast %7 : vector<1x32xf32> to vector<32x32xf32>
    %29 = arith.addf %27, %28 : vector<32x32xf32>
    %c0_15 = arith.constant 0 : index
    %c0_16 = arith.constant 0 : index
    %c0_17 = arith.constant 0 : index
    %30 = vector.load %arg6[%c0_15, %c0_16, %c0_17] : memref<1x32x32xf32, #tpu.memory_space<vmem>>, vector<1x32x32xf32>
    %31 = vector.shape_cast %30 : vector<1x32x32xf32> to vector<32x32xf32>
    %32 = vector.shape_cast %29 : vector<32x32xf32> to vector<1x32x32xf32>
    tpu.vector_store %arg6[%c0_15, %c0_16, %c0_17], %32 {strides = array<i32>} : memref<1x32x32xf32, #tpu.memory_space<vmem>>, vector<1x32x32xf32>,
    return
  }
  func.func @transform_0(%arg0: i32) -> (i32, i32, i32) {
    %c0_i32 = arith.constant 0 : i32
    %c0_i32_0 = arith.constant 0 : i32
    %c0_i32_1 = arith.constant 0 : i32
    return %arg0, %c0_i32, %c0_i32_0 : i32, i32, i32
  }
  func.func @transform_1(%arg0: i32) -> (i32, i32) {
    %c0_i32 = arith.constant 0 : i32
    %c0_i32_0 = arith.constant 0 : i32
    %c0_i32_1 = arith.constant 0 : i32
    return %c0_i32, %c0_i32_0 : i32, i32
  }
  func.func @transform_2(%arg0: i32) -> (i32, i32) {
    %c0_i32 = arith.constant 0 : i32
    %c0_i32_0 = arith.constant 0 : i32
    %c0_i32_1 = arith.constant 0 : i32
    return %c0_i32, %c0_i32_0 : i32, i32
  }
  func.func @transform_3(%arg0: i32) -> (i32, i32) {
    %c0_i32 = arith.constant 0 : i32
    %c0_i32_0 = arith.constant 0 : i32
    %c0_i32_1 = arith.constant 0 : i32
    return %c0_i32, %c0_i32_0 : i32, i32
  }
  func.func @transform_4(%arg0: i32) -> (i32, i32) {
    %c0_i32 = arith.constant 0 : i32
    %c0_i32_0 = arith.constant 0 : i32
    %c0_i32_1 = arith.constant 0 : i32
    return %c0_i32, %c0_i32_0 : i32, i32
  }
  func.func @transform_5(%arg0: i32) -> (i32, i32, i32) {
    %c0_i32 = arith.constant 0 : i32
    %c0_i32_0 = arith.constant 0 : i32
    %c0_i32_1 = arith.constant 0 : i32
    return %arg0, %c0_i32, %c0_i32_0 : i32, i32, i32
  }
}

module attributes {stable_mosaic.version = 11 : i64} {
  func.func @stack_kernel(%arg0: i32, %arg1: i32, %arg2: memref<2x32x32xf32, #tpu.memory_space<vmem>>, %arg3: memref<1x1x32xf32, #tpu.memory_space<vmem>>, %arg4: memref<1x1x32xf32, #tpu.memory_space<vmem>>, %arg5: memref<1x32x96xbf16, #tpu.memory_space<vmem>>, %arg6: memref<1x1x96xf32, #tpu.memory_space<vmem>>, %arg7: memref<1x32x32xbf16, #tpu.memory_space<vmem>>, %arg8: memref<1x1x32xf32, #tpu.memory_space<vmem>>, %arg9: memref<1x1x32xf32, #tpu.memory_space<vmem>>, %arg10: memref<1x1x32xf32, #tpu.memory_space<vmem>>, %arg11: memref<1x32x128xbf16, #tpu.memory_space<vmem>>, %arg12: memref<1x1x128xf32, #tpu.memory_space<vmem>>, %arg13: memref<1x128x32xbf16, #tpu.memory_space<vmem>>, %arg14: memref<1x1x32xf32, #tpu.memory_space<vmem>>, %arg15: memref<2x32x32xf32, #tpu.memory_space<vmem>>, %arg16: memref<64x32xf32, #tpu.memory_space<vmem>>, %arg17: memref<64x32xbf16, #tpu.memory_space<vmem>>) attributes {dimension_semantics = [#tpu.dimension_semantics<parallel>, #tpu.dimension_semantics<arbitrary>], iteration_bounds = array<i64: 1, 2>, scalar_prefetch = 0 : i64, scratch_operands = 2 : i64, tpu.core_type = #tpu.core_type<tc>, window_params = [{transform_indices = @transform_0, window_bounds = array<i64: 2, 32, 32>}, {transform_indices = @transform_1, window_bounds = array<i64: 1, 1, 32>}, {transform_indices = @transform_2, window_bounds = array<i64: 1, 1, 32>}, {transform_indices = @transform_3, window_bounds = array<i64: 1, 32, 96>}, {transform_indices = @transform_4, window_bounds = array<i64: 1, 1, 96>}, {transform_indices = @transform_5, window_bounds = array<i64: 1, 32, 32>}, {transform_indices = @transform_6, window_bounds = array<i64: 1, 1, 32>}, {transform_indices = @transform_7, window_bounds = array<i64: 1, 1, 32>}, {transform_indices = @transform_8, window_bounds = array<i64: 1, 1, 32>}, {transform_indices = @transform_9, window_bounds = array<i64: 1, 32, 128>}, {transform_indices = @transform_10, window_bounds = array<i64: 1, 1, 128>}, {transform_indices = @transform_11, window_bounds = array<i64: 1, 128, 32>}, {transform_indices = @transform_12, window_bounds = array<i64: 1, 1, 32>}, {transform_indices = @transform_13, window_bounds = array<i64: 2, 32, 32>}]} {
    %c0_i32 = arith.constant 0 : i32
    %0 = arith.cmpi eq, %arg1, %c0_i32 : i32
    %1 = arith.extui %0 : i1 to i32
    %c0_i32_0 = arith.constant 0 : i32
    %2 = arith.cmpi ne, %1, %c0_i32_0 : i32
    scf.if %2 {
      %c0_82 = arith.constant 0 : index
      %c0_83 = arith.constant 0 : index
      %c0_84 = arith.constant 0 : index
      %200 = vector.load %arg2[%c0_82, %c0_83, %c0_84] : memref<2x32x32xf32, #tpu.memory_space<vmem>>, vector<2x32x32xf32>
      %201 = vector.shape_cast %200 : vector<2x32x32xf32> to vector<64x32xf32>
      %c0_85 = arith.constant 0 : index
      %c0_86 = arith.constant 0 : index
      %202 = vector.load %arg16[%c0_85, %c0_86] : memref<64x32xf32, #tpu.memory_space<vmem>>, vector<64x32xf32>
      tpu.vector_store %arg16[%c0_85, %c0_86], %201 {strides = array<i32>} : memref<64x32xf32, #tpu.memory_space<vmem>>, vector<64x32xf32>,
    } else {
    }
    %c0 = arith.constant 0 : index
    %c0_1 = arith.constant 0 : index
    %3 = vector.load %arg16[%c0, %c0_1] : memref<64x32xf32, #tpu.memory_space<vmem>>, vector<64x32xf32>
    %c0_2 = arith.constant 0 : index
    %c0_3 = arith.constant 0 : index
    %c0_4 = arith.constant 0 : index
    %4 = vector.load %arg3[%c0_2, %c0_3, %c0_4] : memref<1x1x32xf32, #tpu.memory_space<vmem>>, vector<1x1x32xf32>
    %5 = vector.shape_cast %4 : vector<1x1x32xf32> to vector<1x32xf32>
    %c0_5 = arith.constant 0 : index
    %c0_6 = arith.constant 0 : index
    %c0_7 = arith.constant 0 : index
    %6 = vector.load %arg4[%c0_5, %c0_6, %c0_7] : memref<1x1x32xf32, #tpu.memory_space<vmem>>, vector<1x1x32xf32>
    %7 = vector.shape_cast %6 : vector<1x1x32xf32> to vector<1x32xf32>
    %cst = arith.constant dense<0.000000e+00> : vector<64xf32>
    %8 = vector.multi_reduction <add>, %3, %cst [1] : vector<64x32xf32> to vector<64xf32>
    %9 = vector.shape_cast %8 : vector<64xf32> to vector<64x1xf32>
    %cst_8 = arith.constant 3.200000e+01 : f32
    %10 = vector.broadcast %cst_8 : f32 to vector<64x1xf32>
    %11 = arith.divf %9, %10 : vector<64x1xf32>
    %12 = vector.broadcast %11 : vector<64x1xf32> to vector<64x32xf32>
    %13 = arith.subf %3, %12 : vector<64x32xf32>
    %14 = arith.mulf %13, %13 : vector<64x32xf32>
    %cst_9 = arith.constant dense<0.000000e+00> : vector<64xf32>
    %15 = vector.multi_reduction <add>, %14, %cst_9 [1] : vector<64x32xf32> to vector<64xf32>
    %16 = vector.shape_cast %15 : vector<64xf32> to vector<64x1xf32>
    %cst_10 = arith.constant 3.200000e+01 : f32
    %17 = vector.broadcast %cst_10 : f32 to vector<64x1xf32>
    %18 = arith.divf %16, %17 : vector<64x1xf32>
    %19 = vector.broadcast %11 : vector<64x1xf32> to vector<64x32xf32>
    %20 = arith.subf %3, %19 : vector<64x32xf32>
    %cst_11 = arith.constant 9.99999974E-6 : f32
    %21 = vector.broadcast %cst_11 : f32 to vector<64x1xf32>
    %22 = arith.addf %18, %21 : vector<64x1xf32>
    %23 = math.rsqrt %22 : vector<64x1xf32>
    %24 = vector.broadcast %23 : vector<64x1xf32> to vector<64x32xf32>
    %25 = arith.mulf %20, %24 : vector<64x32xf32>
    %26 = vector.broadcast %5 : vector<1x32xf32> to vector<64x32xf32>
    %27 = arith.mulf %25, %26 : vector<64x32xf32>
    %28 = vector.broadcast %7 : vector<1x32xf32> to vector<64x32xf32>
    %29 = arith.addf %27, %28 : vector<64x32xf32>
    %30 = arith.truncf %29 : vector<64x32xf32> to vector<64x32xbf16>
    %c0_12 = arith.constant 0 : index
    %c0_13 = arith.constant 0 : index
    %c0_14 = arith.constant 0 : index
    %31 = vector.load %arg5[%c0_12, %c0_13, %c0_14] : memref<1x32x96xbf16, #tpu.memory_space<vmem>>, vector<1x32x96xbf16>
    %32 = vector.shape_cast %31 : vector<1x32x96xbf16> to vector<32x96xbf16>
    %cst_15 = arith.constant dense<0.000000e+00> : vector<64x96xf32>
    %33 = tpu.matmul %30, %32, %cst_15 {dimension_numbers = #tpu.dot_dimension_numbers<[1], [0], [0], [1], [0, 0, 1, 1], [], []>} : vector<64x32xbf16>, vector<32x96xbf16>, vector<64x96xf32> -> vector<64x96xf32>
    %c0_16 = arith.constant 0 : index
    %c0_17 = arith.constant 0 : index
    %c0_18 = arith.constant 0 : index
    %34 = vector.load %arg6[%c0_16, %c0_17, %c0_18] : memref<1x1x96xf32, #tpu.memory_space<vmem>>, vector<1x1x96xf32>
    %35 = vector.shape_cast %34 : vector<1x1x96xf32> to vector<1x96xf32>
    %36 = vector.broadcast %35 : vector<1x96xf32> to vector<64x96xf32>
    %37 = arith.addf %33, %36 : vector<64x96xf32>
    %38 = tpu.iota {dimensions = array<i32: 1>} : vector<1x32xi32>
    %c17_i32 = arith.constant 17 : i32
    %39 = vector.broadcast %c17_i32 : i32 to vector<1x32xi32>
    %40 = arith.cmpi slt, %38, %39 : vector<1x32xi32>
    %cst_19 = arith.constant 0.000000e+00 : f32
    %cst_20 = arith.constant -1.000000e+30 : f32
    %41 = vector.broadcast %cst_19 : f32 to vector<1x32xf32>
    %42 = vector.broadcast %cst_20 : f32 to vector<1x32xf32>
    %43 = arith.select %40, %41, %42 : vector<1x32xi1>, vector<1x32xf32>
    %44 = vector.extract_strided_slice %37 {offsets = [0, 0], sizes = [32, 16], strides = [1, 1]} : vector<64x96xf32> to vector<32x16xf32>
    %45 = arith.truncf %44 : vector<32x16xf32> to vector<32x16xbf16>
    %46 = vector.extract_strided_slice %37 {offsets = [0, 32], sizes = [32, 16], strides = [1, 1]} : vector<64x96xf32> to vector<32x16xf32>
    %47 = arith.truncf %46 : vector<32x16xf32> to vector<32x16xbf16>
    %48 = vector.extract_strided_slice %37 {offsets = [0, 64], sizes = [32, 16], strides = [1, 1]} : vector<64x96xf32> to vector<32x16xf32>
    %49 = arith.truncf %48 : vector<32x16xf32> to vector<32x16xbf16>
    %cst_21 = arith.constant dense<0.000000e+00> : vector<32x32xf32>
    %50 = tpu.matmul %45, %47, %cst_21 {dimension_numbers = #tpu.dot_dimension_numbers<[1], [1], [0], [0], [0, 0, 1, 0], [], []>} : vector<32x16xbf16>, vector<32x16xbf16>, vector<32x32xf32> -> vector<32x32xf32>
    %51 = vector.broadcast %43 : vector<1x32xf32> to vector<32x32xf32>
    %52 = arith.addf %50, %51 : vector<32x32xf32>
    %cst_22 = arith.constant dense<0xFF800000> : vector<32xf32>
    %53 = vector.multi_reduction <maximumf>, %52, %cst_22 [1] : vector<32x32xf32> to vector<32xf32>
    %54 = vector.shape_cast %53 : vector<32xf32> to vector<32x1xf32>
    %55 = vector.broadcast %54 : vector<32x1xf32> to vector<32x32xf32>
    %56 = arith.subf %52, %55 : vector<32x32xf32>
    %57 = math.exp %56 : vector<32x32xf32>
    %cst_23 = arith.constant dense<0.000000e+00> : vector<32xf32>
    %58 = vector.multi_reduction <add>, %57, %cst_23 [1] : vector<32x32xf32> to vector<32xf32>
    %59 = vector.shape_cast %58 : vector<32xf32> to vector<32x1xf32>
    %60 = tpu.reciprocal %59 {approx = true} : vector<32x1xf32> -> vector<32x1xf32>
    %61 = vector.broadcast %60 : vector<32x1xf32> to vector<32x32xf32>
    %62 = arith.mulf %57, %61 : vector<32x32xf32>
    %63 = arith.truncf %62 : vector<32x32xf32> to vector<32x32xbf16>
    %cst_24 = arith.constant dense<0.000000e+00> : vector<32x16xf32>
    %64 = tpu.matmul %63, %49, %cst_24 {dimension_numbers = #tpu.dot_dimension_numbers<[1], [0], [0], [1], [0, 0, 1, 1], [], []>} : vector<32x32xbf16>, vector<32x16xbf16>, vector<32x16xf32> -> vector<32x16xf32>
    %65 = arith.truncf %64 : vector<32x16xf32> to vector<32x16xbf16>
    %c0_25 = arith.constant 0 : index
    %c0_26 = arith.constant 0 : index
    %66 = vector.load %arg17[%c0_25, %c0_26] : memref<64x32xbf16, #tpu.memory_space<vmem>>, vector<32x16xbf16>
    tpu.vector_store %arg17[%c0_25, %c0_26], %65 {strides = array<i32>} : memref<64x32xbf16, #tpu.memory_space<vmem>>, vector<32x16xbf16>,
    %67 = vector.extract_strided_slice %37 {offsets = [0, 16], sizes = [32, 16], strides = [1, 1]} : vector<64x96xf32> to vector<32x16xf32>
    %68 = arith.truncf %67 : vector<32x16xf32> to vector<32x16xbf16>
    %69 = vector.extract_strided_slice %37 {offsets = [0, 48], sizes = [32, 16], strides = [1, 1]} : vector<64x96xf32> to vector<32x16xf32>
    %70 = arith.truncf %69 : vector<32x16xf32> to vector<32x16xbf16>
    %71 = vector.extract_strided_slice %37 {offsets = [0, 80], sizes = [32, 16], strides = [1, 1]} : vector<64x96xf32> to vector<32x16xf32>
    %72 = arith.truncf %71 : vector<32x16xf32> to vector<32x16xbf16>
    %cst_27 = arith.constant dense<0.000000e+00> : vector<32x32xf32>
    %73 = tpu.matmul %68, %70, %cst_27 {dimension_numbers = #tpu.dot_dimension_numbers<[1], [1], [0], [0], [0, 0, 1, 0], [], []>} : vector<32x16xbf16>, vector<32x16xbf16>, vector<32x32xf32> -> vector<32x32xf32>
    %74 = vector.broadcast %43 : vector<1x32xf32> to vector<32x32xf32>
    %75 = arith.addf %73, %74 : vector<32x32xf32>
    %cst_28 = arith.constant dense<0xFF800000> : vector<32xf32>
    %76 = vector.multi_reduction <maximumf>, %75, %cst_28 [1] : vector<32x32xf32> to vector<32xf32>
    %77 = vector.shape_cast %76 : vector<32xf32> to vector<32x1xf32>
    %78 = vector.broadcast %77 : vector<32x1xf32> to vector<32x32xf32>
    %79 = arith.subf %75, %78 : vector<32x32xf32>
    %80 = math.exp %79 : vector<32x32xf32>
    %cst_29 = arith.constant dense<0.000000e+00> : vector<32xf32>
    %81 = vector.multi_reduction <add>, %80, %cst_29 [1] : vector<32x32xf32> to vector<32xf32>
    %82 = vector.shape_cast %81 : vector<32xf32> to vector<32x1xf32>
    %83 = tpu.reciprocal %82 {approx = true} : vector<32x1xf32> -> vector<32x1xf32>
    %84 = vector.broadcast %83 : vector<32x1xf32> to vector<32x32xf32>
    %85 = arith.mulf %80, %84 : vector<32x32xf32>
    %86 = arith.truncf %85 : vector<32x32xf32> to vector<32x32xbf16>
    %cst_30 = arith.constant dense<0.000000e+00> : vector<32x16xf32>
    %87 = tpu.matmul %86, %72, %cst_30 {dimension_numbers = #tpu.dot_dimension_numbers<[1], [0], [0], [1], [0, 0, 1, 1], [], []>} : vector<32x32xbf16>, vector<32x16xbf16>, vector<32x16xf32> -> vector<32x16xf32>
    %88 = arith.truncf %87 : vector<32x16xf32> to vector<32x16xbf16>
    %c0_31 = arith.constant 0 : index
    %c16 = arith.constant 16 : index
    %89 = vector.load %arg17[%c0_31, %c16] : memref<64x32xbf16, #tpu.memory_space<vmem>>, vector<32x16xbf16>
    tpu.vector_store %arg17[%c0_31, %c16], %88 {strides = array<i32>} : memref<64x32xbf16, #tpu.memory_space<vmem>>, vector<32x16xbf16>,
    %90 = vector.extract_strided_slice %37 {offsets = [32, 0], sizes = [32, 16], strides = [1, 1]} : vector<64x96xf32> to vector<32x16xf32>
    %91 = arith.truncf %90 : vector<32x16xf32> to vector<32x16xbf16>
    %92 = vector.extract_strided_slice %37 {offsets = [32, 32], sizes = [32, 16], strides = [1, 1]} : vector<64x96xf32> to vector<32x16xf32>
    %93 = arith.truncf %92 : vector<32x16xf32> to vector<32x16xbf16>
    %94 = vector.extract_strided_slice %37 {offsets = [32, 64], sizes = [32, 16], strides = [1, 1]} : vector<64x96xf32> to vector<32x16xf32>
    %95 = arith.truncf %94 : vector<32x16xf32> to vector<32x16xbf16>
    %cst_32 = arith.constant dense<0.000000e+00> : vector<32x32xf32>
    %96 = tpu.matmul %91, %93, %cst_32 {dimension_numbers = #tpu.dot_dimension_numbers<[1], [1], [0], [0], [0, 0, 1, 0], [], []>} : vector<32x16xbf16>, vector<32x16xbf16>, vector<32x32xf32> -> vector<32x32xf32>
    %97 = vector.broadcast %43 : vector<1x32xf32> to vector<32x32xf32>
    %98 = arith.addf %96, %97 : vector<32x32xf32>
    %cst_33 = arith.constant dense<0xFF800000> : vector<32xf32>
    %99 = vector.multi_reduction <maximumf>, %98, %cst_33 [1] : vector<32x32xf32> to vector<32xf32>
    %100 = vector.shape_cast %99 : vector<32xf32> to vector<32x1xf32>
    %101 = vector.broadcast %100 : vector<32x1xf32> to vector<32x32xf32>
    %102 = arith.subf %98, %101 : vector<32x32xf32>
    %103 = math.exp %102 : vector<32x32xf32>
    %cst_34 = arith.constant dense<0.000000e+00> : vector<32xf32>
    %104 = vector.multi_reduction <add>, %103, %cst_34 [1] : vector<32x32xf32> to vector<32xf32>
    %105 = vector.shape_cast %104 : vector<32xf32> to vector<32x1xf32>
    %106 = tpu.reciprocal %105 {approx = true} : vector<32x1xf32> -> vector<32x1xf32>
    %107 = vector.broadcast %106 : vector<32x1xf32> to vector<32x32xf32>
    %108 = arith.mulf %103, %107 : vector<32x32xf32>
    %109 = arith.truncf %108 : vector<32x32xf32> to vector<32x32xbf16>
    %cst_35 = arith.constant dense<0.000000e+00> : vector<32x16xf32>
    %110 = tpu.matmul %109, %95, %cst_35 {dimension_numbers = #tpu.dot_dimension_numbers<[1], [0], [0], [1], [0, 0, 1, 1], [], []>} : vector<32x32xbf16>, vector<32x16xbf16>, vector<32x16xf32> -> vector<32x16xf32>
    %111 = arith.truncf %110 : vector<32x16xf32> to vector<32x16xbf16>
    %c32 = arith.constant 32 : index
    %c0_36 = arith.constant 0 : index
    %112 = vector.load %arg17[%c32, %c0_36] : memref<64x32xbf16, #tpu.memory_space<vmem>>, vector<32x16xbf16>
    tpu.vector_store %arg17[%c32, %c0_36], %111 {strides = array<i32>} : memref<64x32xbf16, #tpu.memory_space<vmem>>, vector<32x16xbf16>,
    %113 = vector.extract_strided_slice %37 {offsets = [32, 16], sizes = [32, 16], strides = [1, 1]} : vector<64x96xf32> to vector<32x16xf32>
    %114 = arith.truncf %113 : vector<32x16xf32> to vector<32x16xbf16>
    %115 = vector.extract_strided_slice %37 {offsets = [32, 48], sizes = [32, 16], strides = [1, 1]} : vector<64x96xf32> to vector<32x16xf32>
    %116 = arith.truncf %115 : vector<32x16xf32> to vector<32x16xbf16>
    %117 = vector.extract_strided_slice %37 {offsets = [32, 80], sizes = [32, 16], strides = [1, 1]} : vector<64x96xf32> to vector<32x16xf32>
    %118 = arith.truncf %117 : vector<32x16xf32> to vector<32x16xbf16>
    %cst_37 = arith.constant dense<0.000000e+00> : vector<32x32xf32>
    %119 = tpu.matmul %114, %116, %cst_37 {dimension_numbers = #tpu.dot_dimension_numbers<[1], [1], [0], [0], [0, 0, 1, 0], [], []>} : vector<32x16xbf16>, vector<32x16xbf16>, vector<32x32xf32> -> vector<32x32xf32>
    %120 = vector.broadcast %43 : vector<1x32xf32> to vector<32x32xf32>
    %121 = arith.addf %119, %120 : vector<32x32xf32>
    %cst_38 = arith.constant dense<0xFF800000> : vector<32xf32>
    %122 = vector.multi_reduction <maximumf>, %121, %cst_38 [1] : vector<32x32xf32> to vector<32xf32>
    %123 = vector.shape_cast %122 : vector<32xf32> to vector<32x1xf32>
    %124 = vector.broadcast %123 : vector<32x1xf32> to vector<32x32xf32>
    %125 = arith.subf %121, %124 : vector<32x32xf32>
    %126 = math.exp %125 : vector<32x32xf32>
    %cst_39 = arith.constant dense<0.000000e+00> : vector<32xf32>
    %127 = vector.multi_reduction <add>, %126, %cst_39 [1] : vector<32x32xf32> to vector<32xf32>
    %128 = vector.shape_cast %127 : vector<32xf32> to vector<32x1xf32>
    %129 = tpu.reciprocal %128 {approx = true} : vector<32x1xf32> -> vector<32x1xf32>
    %130 = vector.broadcast %129 : vector<32x1xf32> to vector<32x32xf32>
    %131 = arith.mulf %126, %130 : vector<32x32xf32>
    %132 = arith.truncf %131 : vector<32x32xf32> to vector<32x32xbf16>
    %cst_40 = arith.constant dense<0.000000e+00> : vector<32x16xf32>
    %133 = tpu.matmul %132, %118, %cst_40 {dimension_numbers = #tpu.dot_dimension_numbers<[1], [0], [0], [1], [0, 0, 1, 1], [], []>} : vector<32x32xbf16>, vector<32x16xbf16>, vector<32x16xf32> -> vector<32x16xf32>
    %134 = arith.truncf %133 : vector<32x16xf32> to vector<32x16xbf16>
    %c32_41 = arith.constant 32 : index
    %c16_42 = arith.constant 16 : index
    %135 = vector.load %arg17[%c32_41, %c16_42] : memref<64x32xbf16, #tpu.memory_space<vmem>>, vector<32x16xbf16>
    tpu.vector_store %arg17[%c32_41, %c16_42], %134 {strides = array<i32>} : memref<64x32xbf16, #tpu.memory_space<vmem>>, vector<32x16xbf16>,
    %c0_43 = arith.constant 0 : index
    %c0_44 = arith.constant 0 : index
    %136 = vector.load %arg17[%c0_43, %c0_44] : memref<64x32xbf16, #tpu.memory_space<vmem>>, vector<64x32xbf16>
    %c0_45 = arith.constant 0 : index
    %c0_46 = arith.constant 0 : index
    %c0_47 = arith.constant 0 : index
    %137 = vector.load %arg7[%c0_45, %c0_46, %c0_47] : memref<1x32x32xbf16, #tpu.memory_space<vmem>>, vector<1x32x32xbf16>
    %138 = vector.shape_cast %137 : vector<1x32x32xbf16> to vector<32x32xbf16>
    %cst_48 = arith.constant dense<0.000000e+00> : vector<64x32xf32>
    %139 = tpu.matmul %136, %138, %cst_48 {dimension_numbers = #tpu.dot_dimension_numbers<[1], [0], [0], [1], [0, 0, 1, 1], [], []>} : vector<64x32xbf16>, vector<32x32xbf16>, vector<64x32xf32> -> vector<64x32xf32>
    %c0_49 = arith.constant 0 : index
    %c0_50 = arith.constant 0 : index
    %c0_51 = arith.constant 0 : index
    %140 = vector.load %arg8[%c0_49, %c0_50, %c0_51] : memref<1x1x32xf32, #tpu.memory_space<vmem>>, vector<1x1x32xf32>
    %141 = vector.shape_cast %140 : vector<1x1x32xf32> to vector<1x32xf32>
    %142 = vector.broadcast %141 : vector<1x32xf32> to vector<64x32xf32>
    %143 = arith.addf %139, %142 : vector<64x32xf32>
    %144 = arith.addf %3, %143 : vector<64x32xf32>
    %c0_52 = arith.constant 0 : index
    %c0_53 = arith.constant 0 : index
    %c0_54 = arith.constant 0 : index
    %145 = vector.load %arg9[%c0_52, %c0_53, %c0_54] : memref<1x1x32xf32, #tpu.memory_space<vmem>>, vector<1x1x32xf32>
    %146 = vector.shape_cast %145 : vector<1x1x32xf32> to vector<1x32xf32>
    %c0_55 = arith.constant 0 : index
    %c0_56 = arith.constant 0 : index
    %c0_57 = arith.constant 0 : index
    %147 = vector.load %arg10[%c0_55, %c0_56, %c0_57] : memref<1x1x32xf32, #tpu.memory_space<vmem>>, vector<1x1x32xf32>
    %148 = vector.shape_cast %147 : vector<1x1x32xf32> to vector<1x32xf32>
    %cst_58 = arith.constant dense<0.000000e+00> : vector<64xf32>
    %149 = vector.multi_reduction <add>, %144, %cst_58 [1] : vector<64x32xf32> to vector<64xf32>
    %150 = vector.shape_cast %149 : vector<64xf32> to vector<64x1xf32>
    %cst_59 = arith.constant 3.200000e+01 : f32
    %151 = vector.broadcast %cst_59 : f32 to vector<64x1xf32>
    %152 = arith.divf %150, %151 : vector<64x1xf32>
    %153 = vector.broadcast %152 : vector<64x1xf32> to vector<64x32xf32>
    %154 = arith.subf %144, %153 : vector<64x32xf32>
    %155 = arith.mulf %154, %154 : vector<64x32xf32>
    %cst_60 = arith.constant dense<0.000000e+00> : vector<64xf32>
    %156 = vector.multi_reduction <add>, %155, %cst_60 [1] : vector<64x32xf32> to vector<64xf32>
    %157 = vector.shape_cast %156 : vector<64xf32> to vector<64x1xf32>
    %cst_61 = arith.constant 3.200000e+01 : f32
    %158 = vector.broadcast %cst_61 : f32 to vector<64x1xf32>
    %159 = arith.divf %157, %158 : vector<64x1xf32>
    %160 = vector.broadcast %152 : vector<64x1xf32> to vector<64x32xf32>
    %161 = arith.subf %144, %160 : vector<64x32xf32>
    %cst_62 = arith.constant 9.99999974E-6 : f32
    %162 = vector.broadcast %cst_62 : f32 to vector<64x1xf32>
    %163 = arith.addf %159, %162 : vector<64x1xf32>
    %164 = math.rsqrt %163 : vector<64x1xf32>
    %165 = vector.broadcast %164 : vector<64x1xf32> to vector<64x32xf32>
    %166 = arith.mulf %161, %165 : vector<64x32xf32>
    %167 = vector.broadcast %146 : vector<1x32xf32> to vector<64x32xf32>
    %168 = arith.mulf %166, %167 : vector<64x32xf32>
    %169 = vector.broadcast %148 : vector<1x32xf32> to vector<64x32xf32>
    %170 = arith.addf %168, %169 : vector<64x32xf32>
    %171 = arith.truncf %170 : vector<64x32xf32> to vector<64x32xbf16>
    %c0_63 = arith.constant 0 : index
    %c0_64 = arith.constant 0 : index
    %c0_65 = arith.constant 0 : index
    %172 = vector.load %arg11[%c0_63, %c0_64, %c0_65] : memref<1x32x128xbf16, #tpu.memory_space<vmem>>, vector<1x32x128xbf16>
    %173 = vector.shape_cast %172 : vector<1x32x128xbf16> to vector<32x128xbf16>
    %cst_66 = arith.constant dense<0.000000e+00> : vector<64x128xf32>
    %174 = tpu.matmul %171, %173, %cst_66 {dimension_numbers = #tpu.dot_dimension_numbers<[1], [0], [0], [1], [0, 0, 1, 1], [], []>} : vector<64x32xbf16>, vector<32x128xbf16>, vector<64x128xf32> -> vector<64x128xf32>
    %c0_67 = arith.constant 0 : index
    %c0_68 = arith.constant 0 : index
    %c0_69 = arith.constant 0 : index
    %175 = vector.load %arg12[%c0_67, %c0_68, %c0_69] : memref<1x1x128xf32, #tpu.memory_space<vmem>>, vector<1x1x128xf32>
    %176 = vector.shape_cast %175 : vector<1x1x128xf32> to vector<1x128xf32>
    %177 = vector.broadcast %176 : vector<1x128xf32> to vector<64x128xf32>
    %178 = arith.addf %174, %177 : vector<64x128xf32>
    %cst_70 = arith.constant 1.702000e+00 : f32
    %179 = vector.broadcast %cst_70 : f32 to vector<64x128xf32>
    %180 = arith.mulf %179, %178 : vector<64x128xf32>
    %181 = arith.negf %180 : vector<64x128xf32>
    %182 = math.exp %181 : vector<64x128xf32>
    %cst_71 = arith.constant 1.000000e+00 : f32
    %183 = vector.broadcast %cst_71 : f32 to vector<64x128xf32>
    %184 = arith.addf %183, %182 : vector<64x128xf32>
    %185 = arith.divf %183, %184 : vector<64x128xf32>
    %186 = arith.mulf %178, %185 : vector<64x128xf32>
    %187 = arith.truncf %186 : vector<64x128xf32> to vector<64x128xbf16>
    %c0_72 = arith.constant 0 : index
    %c0_73 = arith.constant 0 : index
    %c0_74 = arith.constant 0 : index
    %188 = vector.load %arg13[%c0_72, %c0_73, %c0_74] : memref<1x128x32xbf16, #tpu.memory_space<vmem>>, vector<1x128x32xbf16>
    %189 = vector.shape_cast %188 : vector<1x128x32xbf16> to vector<128x32xbf16>
    %cst_75 = arith.constant dense<0.000000e+00> : vector<64x32xf32>
    %190 = tpu.matmul %187, %189, %cst_75 {dimension_numbers = #tpu.dot_dimension_numbers<[1], [0], [0], [1], [0, 0, 1, 1], [], []>} : vector<64x128xbf16>, vector<128x32xbf16>, vector<64x32xf32> -> vector<64x32xf32>
    %c0_76 = arith.constant 0 : index
    %c0_77 = arith.constant 0 : index
    %c0_78 = arith.constant 0 : index
    %191 = vector.load %arg14[%c0_76, %c0_77, %c0_78] : memref<1x1x32xf32, #tpu.memory_space<vmem>>, vector<1x1x32xf32>
    %192 = vector.shape_cast %191 : vector<1x1x32xf32> to vector<1x32xf32>
    %193 = vector.broadcast %192 : vector<1x32xf32> to vector<64x32xf32>
    %194 = arith.addf %190, %193 : vector<64x32xf32>
    %195 = arith.addf %144, %194 : vector<64x32xf32>
    %c0_79 = arith.constant 0 : index
    %c0_80 = arith.constant 0 : index
    %196 = vector.load %arg16[%c0_79, %c0_80] : memref<64x32xf32, #tpu.memory_space<vmem>>, vector<64x32xf32>
    tpu.vector_store %arg16[%c0_79, %c0_80], %195 {strides = array<i32>} : memref<64x32xf32, #tpu.memory_space<vmem>>, vector<64x32xf32>,
    %c1_i32 = arith.constant 1 : i32
    %197 = arith.cmpi eq, %arg1, %c1_i32 : i32
    %198 = arith.extui %197 : i1 to i32
    %c0_i32_81 = arith.constant 0 : i32
    %199 = arith.cmpi ne, %198, %c0_i32_81 : i32
    scf.if %199 {
      %c0_82 = arith.constant 0 : index
      %c0_83 = arith.constant 0 : index
      %200 = vector.load %arg16[%c0_82, %c0_83] : memref<64x32xf32, #tpu.memory_space<vmem>>, vector<64x32xf32>
      %201 = vector.shape_cast %200 : vector<64x32xf32> to vector<2x32x32xf32>
      %c0_84 = arith.constant 0 : index
      %c0_85 = arith.constant 0 : index
      %c0_86 = arith.constant 0 : index
      %202 = vector.load %arg15[%c0_84, %c0_85, %c0_86] : memref<2x32x32xf32, #tpu.memory_space<vmem>>, vector<2x32x32xf32>
      tpu.vector_store %arg15[%c0_84, %c0_85, %c0_86], %201 {strides = array<i32>} : memref<2x32x32xf32, #tpu.memory_space<vmem>>, vector<2x32x32xf32>,
    } else {
    }
    return
  }
  func.func @transform_0(%arg0: i32, %arg1: i32) -> (i32, i32, i32) {
    %c0_i32 = arith.constant 0 : i32
    %c0_i32_0 = arith.constant 0 : i32
    %c0_i32_1 = arith.constant 0 : i32
    return %arg0, %c0_i32, %c0_i32_0 : i32, i32, i32
  }
  func.func @transform_1(%arg0: i32, %arg1: i32) -> (i32, i32, i32) {
    %c0_i32 = arith.constant 0 : i32
    %c0_i32_0 = arith.constant 0 : i32
    %c0_i32_1 = arith.constant 0 : i32
    return %arg1, %c0_i32, %c0_i32_0 : i32, i32, i32
  }
  func.func @transform_2(%arg0: i32, %arg1: i32) -> (i32, i32, i32) {
    %c0_i32 = arith.constant 0 : i32
    %c0_i32_0 = arith.constant 0 : i32
    %c0_i32_1 = arith.constant 0 : i32
    return %arg1, %c0_i32, %c0_i32_0 : i32, i32, i32
  }
  func.func @transform_3(%arg0: i32, %arg1: i32) -> (i32, i32, i32) {
    %c0_i32 = arith.constant 0 : i32
    %c0_i32_0 = arith.constant 0 : i32
    %c0_i32_1 = arith.constant 0 : i32
    return %arg1, %c0_i32, %c0_i32_0 : i32, i32, i32
  }
  func.func @transform_4(%arg0: i32, %arg1: i32) -> (i32, i32, i32) {
    %c0_i32 = arith.constant 0 : i32
    %c0_i32_0 = arith.constant 0 : i32
    %c0_i32_1 = arith.constant 0 : i32
    return %arg1, %c0_i32, %c0_i32_0 : i32, i32, i32
  }
  func.func @transform_5(%arg0: i32, %arg1: i32) -> (i32, i32, i32) {
    %c0_i32 = arith.constant 0 : i32
    %c0_i32_0 = arith.constant 0 : i32
    %c0_i32_1 = arith.constant 0 : i32
    return %arg1, %c0_i32, %c0_i32_0 : i32, i32, i32
  }
  func.func @transform_6(%arg0: i32, %arg1: i32) -> (i32, i32, i32) {
    %c0_i32 = arith.constant 0 : i32
    %c0_i32_0 = arith.constant 0 : i32
    %c0_i32_1 = arith.constant 0 : i32
    return %arg1, %c0_i32, %c0_i32_0 : i32, i32, i32
  }
  func.func @transform_7(%arg0: i32, %arg1: i32) -> (i32, i32, i32) {
    %c0_i32 = arith.constant 0 : i32
    %c0_i32_0 = arith.constant 0 : i32
    %c0_i32_1 = arith.constant 0 : i32
    return %arg1, %c0_i32, %c0_i32_0 : i32, i32, i32
  }
  func.func @transform_8(%arg0: i32, %arg1: i32) -> (i32, i32, i32) {
    %c0_i32 = arith.constant 0 : i32
    %c0_i32_0 = arith.constant 0 : i32
    %c0_i32_1 = arith.constant 0 : i32
    return %arg1, %c0_i32, %c0_i32_0 : i32, i32, i32
  }
  func.func @transform_9(%arg0: i32, %arg1: i32) -> (i32, i32, i32) {
    %c0_i32 = arith.constant 0 : i32
    %c0_i32_0 = arith.constant 0 : i32
    %c0_i32_1 = arith.constant 0 : i32
    return %arg1, %c0_i32, %c0_i32_0 : i32, i32, i32
  }
  func.func @transform_10(%arg0: i32, %arg1: i32) -> (i32, i32, i32) {
    %c0_i32 = arith.constant 0 : i32
    %c0_i32_0 = arith.constant 0 : i32
    %c0_i32_1 = arith.constant 0 : i32
    return %arg1, %c0_i32, %c0_i32_0 : i32, i32, i32
  }
  func.func @transform_11(%arg0: i32, %arg1: i32) -> (i32, i32, i32) {
    %c0_i32 = arith.constant 0 : i32
    %c0_i32_0 = arith.constant 0 : i32
    %c0_i32_1 = arith.constant 0 : i32
    return %arg1, %c0_i32, %c0_i32_0 : i32, i32, i32
  }
  func.func @transform_12(%arg0: i32, %arg1: i32) -> (i32, i32, i32) {
    %c0_i32 = arith.constant 0 : i32
    %c0_i32_0 = arith.constant 0 : i32
    %c0_i32_1 = arith.constant 0 : i32
    return %arg1, %c0_i32, %c0_i32_0 : i32, i32, i32
  }
  func.func @transform_13(%arg0: i32, %arg1: i32) -> (i32, i32, i32) {
    %c0_i32 = arith.constant 0 : i32
    %c0_i32_0 = arith.constant 0 : i32
    %c0_i32_1 = arith.constant 0 : i32
    return %arg0, %c0_i32, %c0_i32_0 : i32, i32, i32
  }
}

module attributes {stable_mosaic.version = 11 : i64} {
  func.func @head_kernel(%arg0: i32, %arg1: memref<1x32x32xf32, #tpu.memory_space<vmem>>, %arg2: memref<1x32xf32, #tpu.memory_space<vmem>>, %arg3: memref<1x32xf32, #tpu.memory_space<vmem>>, %arg4: memref<32x16xbf16, #tpu.memory_space<vmem>>, %arg5: memref<1x32x16xf32, #tpu.memory_space<vmem>>) attributes {dimension_semantics = [#tpu.dimension_semantics<parallel>], iteration_bounds = array<i64: 2>, scalar_prefetch = 0 : i64, scratch_operands = 0 : i64, tpu.core_type = #tpu.core_type<tc>, window_params = [{transform_indices = @transform_0, window_bounds = array<i64: 1, 32, 32>}, {pipeline_mode = #tpu.pipeline_mode<synchronous>, transform_indices = @transform_1, window_bounds = array<i64: 1, 32>}, {pipeline_mode = #tpu.pipeline_mode<synchronous>, transform_indices = @transform_2, window_bounds = array<i64: 1, 32>}, {pipeline_mode = #tpu.pipeline_mode<synchronous>, transform_indices = @transform_3, window_bounds = array<i64: 32, 16>}, {transform_indices = @transform_4, window_bounds = array<i64: 1, 32, 16>}]} {
    %c0 = arith.constant 0 : index
    %c0_0 = arith.constant 0 : index
    %c0_1 = arith.constant 0 : index
    %0 = vector.load %arg1[%c0, %c0_0, %c0_1] : memref<1x32x32xf32, #tpu.memory_space<vmem>>, vector<1x32x32xf32>
    %1 = vector.shape_cast %0 : vector<1x32x32xf32> to vector<32x32xf32>
    %c0_2 = arith.constant 0 : index
    %c0_3 = arith.constant 0 : index
    %2 = vector.load %arg2[%c0_2, %c0_3] : memref<1x32xf32, #tpu.memory_space<vmem>>, vector<1x32xf32>
    %c0_4 = arith.constant 0 : index
    %c0_5 = arith.constant 0 : index
    %3 = vector.load %arg3[%c0_4, %c0_5] : memref<1x32xf32, #tpu.memory_space<vmem>>, vector<1x32xf32>
    %cst = arith.constant dense<0.000000e+00> : vector<32xf32>
    %4 = vector.multi_reduction <add>, %1, %cst [1] : vector<32x32xf32> to vector<32xf32>
    %5 = vector.shape_cast %4 : vector<32xf32> to vector<32x1xf32>
    %cst_6 = arith.constant 3.200000e+01 : f32
    %6 = vector.broadcast %cst_6 : f32 to vector<32x1xf32>
    %7 = arith.divf %5, %6 : vector<32x1xf32>
    %8 = vector.broadcast %7 : vector<32x1xf32> to vector<32x32xf32>
    %9 = arith.subf %1, %8 : vector<32x32xf32>
    %10 = arith.mulf %9, %9 : vector<32x32xf32>
    %cst_7 = arith.constant dense<0.000000e+00> : vector<32xf32>
    %11 = vector.multi_reduction <add>, %10, %cst_7 [1] : vector<32x32xf32> to vector<32xf32>
    %12 = vector.shape_cast %11 : vector<32xf32> to vector<32x1xf32>
    %cst_8 = arith.constant 3.200000e+01 : f32
    %13 = vector.broadcast %cst_8 : f32 to vector<32x1xf32>
    %14 = arith.divf %12, %13 : vector<32x1xf32>
    %15 = vector.broadcast %7 : vector<32x1xf32> to vector<32x32xf32>
    %16 = arith.subf %1, %15 : vector<32x32xf32>
    %cst_9 = arith.constant 9.99999974E-6 : f32
    %17 = vector.broadcast %cst_9 : f32 to vector<32x1xf32>
    %18 = arith.addf %14, %17 : vector<32x1xf32>
    %19 = math.rsqrt %18 : vector<32x1xf32>
    %20 = vector.broadcast %19 : vector<32x1xf32> to vector<32x32xf32>
    %21 = arith.mulf %16, %20 : vector<32x32xf32>
    %22 = vector.broadcast %2 : vector<1x32xf32> to vector<32x32xf32>
    %23 = arith.mulf %21, %22 : vector<32x32xf32>
    %24 = vector.broadcast %3 : vector<1x32xf32> to vector<32x32xf32>
    %25 = arith.addf %23, %24 : vector<32x32xf32>
    %26 = arith.truncf %25 : vector<32x32xf32> to vector<32x32xbf16>
    %c0_10 = arith.constant 0 : index
    %c0_11 = arith.constant 0 : index
    %27 = vector.load %arg4[%c0_10, %c0_11] : memref<32x16xbf16, #tpu.memory_space<vmem>>, vector<32x16xbf16>
    %cst_12 = arith.constant dense<0.000000e+00> : vector<32x16xf32>
    %28 = tpu.matmul %26, %27, %cst_12 {dimension_numbers = #tpu.dot_dimension_numbers<[1], [0], [0], [1], [0, 0, 1, 1], [], []>} : vector<32x32xbf16>, vector<32x16xbf16>, vector<32x16xf32> -> vector<32x16xf32>
    %c0_13 = arith.constant 0 : index
    %c0_14 = arith.constant 0 : index
    %c0_15 = arith.constant 0 : index
    %29 = vector.load %arg5[%c0_13, %c0_14, %c0_15] : memref<1x32x16xf32, #tpu.memory_space<vmem>>, vector<1x32x16xf32>
    %30 = vector.shape_cast %29 : vector<1x32x16xf32> to vector<32x16xf32>
    %31 = vector.shape_cast %28 : vector<32x16xf32> to vector<1x32x16xf32>
    tpu.vector_store %arg5[%c0_13, %c0_14, %c0_15], %31 {strides = array<i32>} : memref<1x32x16xf32, #tpu.memory_space<vmem>>, vector<1x32x16xf32>,
    return
  }
  func.func @transform_0(%arg0: i32) -> (i32, i32, i32) {
    %c0_i32 = arith.constant 0 : i32
    %c0_i32_0 = arith.constant 0 : i32
    %c0_i32_1 = arith.constant 0 : i32
    return %arg0, %c0_i32, %c0_i32_0 : i32, i32, i32
  }
  func.func @transform_1(%arg0: i32) -> (i32, i32) {
    %c0_i32 = arith.constant 0 : i32
    %c0_i32_0 = arith.constant 0 : i32
    %c0_i32_1 = arith.constant 0 : i32
    return %c0_i32, %c0_i32_0 : i32, i32
  }
  func.func @transform_2(%arg0: i32) -> (i32, i32) {
    %c0_i32 = arith.constant 0 : i32
    %c0_i32_0 = arith.constant 0 : i32
    %c0_i32_1 = arith.constant 0 : i32
    return %c0_i32, %c0_i32_0 : i32, i32
  }
  func.func @transform_3(%arg0: i32) -> (i32, i32) {
    %c0_i32 = arith.constant 0 : i32
    %c0_i32_0 = arith.constant 0 : i32
    %c0_i32_1 = arith.constant 0 : i32
    return %c0_i32, %c0_i32_0 : i32, i32
  }
  func.func @transform_4(%arg0: i32) -> (i32, i32, i32) {
    %c0_i32 = arith.constant 0 : i32
    %c0_i32_0 = arith.constant 0 : i32
    %c0_i32_1 = arith.constant 0 : i32
    return %arg0, %c0_i32, %c0_i32_0 : i32, i32, i32
  }
}

</mosaic_0001>

<llo_original>
// kernel: vision_transformer_forward.3
$region0: #{vision_transformer_forward.3}
  #allocation0 [shape = 'u32[]', space=smem, size = 0x4, offset = 0x4, fixed_abs, tag = 'smem constant byte address 0x4 - core index']
  #allocation1 [shape = 'u32[144,128]{1,0:T(1,128)}', space=vmem, size = 0x12000, scoped, tag = 'internal scratch']
  %s0 = inlined_call_operand.vmem [shape: bf16[2,32,48], index: 0, kind: input, shape index: {}]
  %s1 = inlined_call_operand.vmem [shape: bf16[48,32], index: 1, kind: input, shape index: {}]
  %s2 = inlined_call_operand.vmem [shape: f32[32,32], index: 2, kind: input, shape index: {}]
  %s3 = inlined_call_operand.vmem [shape: f32[1,32], index: 3, kind: input, shape index: {}]
  %s4 = inlined_call_operand.vmem [shape: f32[1,32], index: 4, kind: input, shape index: {}]
  %s5 = inlined_call_operand.vmem [shape: f32[2,32,32], index: 5, kind: output, shape index: {}]
  %s6 = sld [smem:[#allocation0]]
  $region53: #{vision_transformer_forward.3} parent=0
    _
  %s8 = ssub.s32 1, %s6
  %s9 = scalar_select 0, %s8, %s6
  loop: start=0, step=1, limit=4
  $region2: #{vision_transformer_forward.3} parent=0 // loop_pre_header
    _
  $region3: #{vision_transformer_forward.3} parent=0 // loop_header
    %s11 = sphi 0, %s15
    %p12 = scmp.ge.s32.totalorder %s11, 4
    %s21 = sphi 0, %s23
    %s24 = sphi 0, %s21
    %s25 = sphi 0, %s24
    %s41 = sphi 0, %s25
    %s45 = sphi 0, %s45
    %s47 = sphi 0, %s45
    %s48 = sphi 0, %s47
    %s62 = sphi 0, %s48
    %s66 = sphi 0, %s66
    %s68 = sphi 0, %s66
    %s69 = sphi 0, %s68
    %s83 = sphi 0, %s69
    %s87 = sphi 0, %s87
    %s89 = sphi 0, %s87
    %s90 = sphi 0, %s89
    %s104 = sphi 0, %s90
    %s108 = sphi 0, %s108
    %s110 = sphi 0, %s108
    %s111 = sphi 0, %s110
    %s125 = sphi 0, %s111
    %s131 = sphi 0, %s133
    %s134 = sphi 0, %s131
    %s135 = sphi 0, %s134
    %s151 = sphi 0, %s135
  $region4: #{vision_transformer_forward.3} parent=0 // loop_header_branch
    %14 = sbr.rel (%p12) target = $region8
  $region5: #{vision_transformer_forward.3} parent=0 // loop_body
    %s16 = ssub.s32 %s11, 1
    %s17 = ssub.s32 %s11, 2
    %s18 = sadd.s32 %s11, 1
    %s19 = ssub.s32 %s11, %s18
    %p20 = scmp.eq.s32.totalorder %s19, 0
    %s22 = sadd.s32 %s21, 1
    %s23 = scalar_select %p20, %s21, %s22
    %p26 = pneg %p20
    %p27 = scmp.eq.s32.totalorder %s11, 1
    %p28 = por %p26, %p27
    %p29 = scmp.ne.s32.totalorder %s21, %s24
    %p30 = scmp.eq.s32.totalorder %s11, 0
    %p31 = por %p29, %p30
    %p32 = scmp.ne.s32.totalorder %s21, %s24
    %p33 = scmp.eq.s32.totalorder %s16, 1
    %p34 = por %p32, %p33
    %p35 = scmp.ne.s32.totalorder %s24, %s25
    %p36 = scmp.eq.s32.totalorder %s16, 0
    %p37 = por %p35, %p36
    %p38 = scmp.ne.s32.totalorder %s24, %s25
    %p39 = scmp.eq.s32.totalorder %s17, 1
    %p40 = por %p38, %p39
    %p42 = scmp.ne.s32.totalorder %s25, %s41
    %p43 = scmp.eq.s32.totalorder %s17, 0
    %p44 = por %p42, %p43
    %s46 = sadd.s32 %s45, 1
    %p49 = scmp.eq.s32.totalorder %s11, 1
    %p50 = scmp.ne.s32.totalorder %s45, %s47
    %p51 = scmp.eq.s32.totalorder %s11, 0
    %p52 = por %p50, %p51
    %p53 = scmp.ne.s32.totalorder %s45, %s47
    %p54 = scmp.eq.s32.totalorder %s16, 1
    %p55 = por %p53, %p54
    %p56 = scmp.ne.s32.totalorder %s47, %s48
    %p57 = scmp.eq.s32.totalorder %s16, 0
    %p58 = por %p56, %p57
    %p59 = scmp.ne.s32.totalorder %s47, %s48
    %p60 = scmp.eq.s32.totalorder %s17, 1
    %p61 = por %p59, %p60
    %p63 = scmp.ne.s32.totalorder %s48, %s62
    %p64 = scmp.eq.s32.totalorder %s17, 0
    %p65 = por %p63, %p64
    %s67 = sadd.s32 %s66, 1
    %p70 = scmp.eq.s32.totalorder %s11, 1
    %p71 = scmp.ne.s32.totalorder %s66, %s68
    %p72 = scmp.eq.s32.totalorder %s11, 0
    %p73 = por %p71, %p72
    %p74 = scmp.ne.s32.totalorder %s66, %s68
    %p75 = scmp.eq.s32.totalorder %s16, 1
    %p76 = por %p74, %p75
    %p77 = scmp.ne.s32.totalorder %s68, %s69
    %p78 = scmp.eq.s32.totalorder %s16, 0
    %p79 = por %p77, %p78
    %p80 = scmp.ne.s32.totalorder %s68, %s69
    %p81 = scmp.eq.s32.totalorder %s17, 1
    %p82 = por %p80, %p81
    %p84 = scmp.ne.s32.totalorder %s69, %s83
    %p85 = scmp.eq.s32.totalorder %s17, 0
    %p86 = por %p84, %p85
    %s88 = sadd.s32 %s87, 1
    %p91 = scmp.eq.s32.totalorder %s11, 1
    %p92 = scmp.ne.s32.totalorder %s87, %s89
    %p93 = scmp.eq.s32.totalorder %s11, 0
    %p94 = por %p92, %p93
    %p95 = scmp.ne.s32.totalorder %s87, %s89
    %p96 = scmp.eq.s32.totalorder %s16, 1
    %p97 = por %p95, %p96
    %p98 = scmp.ne.s32.totalorder %s89, %s90
    %p99 = scmp.eq.s32.totalorder %s16, 0
    %p100 = por %p98, %p99
    %p101 = scmp.ne.s32.totalorder %s89, %s90
    %p102 = scmp.eq.s32.totalorder %s17, 1
    %p103 = por %p101, %p102
    %p105 = scmp.ne.s32.totalorder %s90, %s104
    %p106 = scmp.eq.s32.totalorder %s17, 0
    %p107 = por %p105, %p106
    %s109 = sadd.s32 %s108, 1
    %p112 = scmp.eq.s32.totalorder %s11, 1
    %p113 = scmp.ne.s32.totalorder %s108, %s110
    %p114 = scmp.eq.s32.totalorder %s11, 0
    %p115 = por %p113, %p114
    %p116 = scmp.ne.s32.totalorder %s108, %s110
    %p117 = scmp.eq.s32.totalorder %s16, 1
    %p118 = por %p116, %p117
    %p119 = scmp.ne.s32.totalorder %s110, %s111
    %p120 = scmp.eq.s32.totalorder %s16, 0
    %p121 = por %p119, %p120
    %p122 = scmp.ne.s32.totalorder %s110, %s111
    %p123 = scmp.eq.s32.totalorder %s17, 1
    %p124 = por %p122, %p123
    %p126 = scmp.ne.s32.totalorder %s111, %s125
    %p127 = scmp.eq.s32.totalorder %s17, 0
    %p128 = por %p126, %p127
    %s129 = ssub.s32 %s11, %s18
    %p130 = scmp.eq.s32.totalorder %s129, 0
    %s132 = sadd.s32 %s131, 1
    %s133 = scalar_select %p130, %s131, %s132
    %p136 = pneg %p130
    %p137 = scmp.eq.s32.totalorder %s11, 1
    %p138 = por %p136, %p137
    %p139 = scmp.ne.s32.totalorder %s131, %s134
    %p140 = scmp.eq.s32.totalorder %s11, 0
    %p141 = por %p139, %p140
    %p142 = scmp.ne.s32.totalorder %s131, %s134
    %p143 = scmp.eq.s32.totalorder %s16, 1
    %p144 = por %p142, %p143
    %p145 = scmp.ne.s32.totalorder %s134, %s135
    %p146 = scmp.eq.s32.totalorder %s16, 0
    %p147 = por %p145, %p146
    %p148 = scmp.ne.s32.totalorder %s134, %s135
    %p149 = scmp.eq.s32.totalorder %s17, 1
    %p150 = por %p148, %p149
    %p152 = scmp.ne.s32.totalorder %s135, %s151
    %p153 = scmp.eq.s32.totalorder %s17, 0
    %p154 = por %p152, %p153
    %p155 = scmp.le.s32.totalorder 1, %s11
    %p156 = scmp.lt.s32.totalorder %s11, 3
    %p157 = pnand %p155, %p156
    %p158 = pneg %p157
    // Predicated region
    $region9: #{vision_transformer_forward.3} parent=5 // pred_check
      _
    $region10: #{vision_transformer_forward.3} parent=5 // pred_check_branch
      %160 = sbr.rel (%p157) target = $region12
    $region11: #{vision_transformer_forward.3} parent=5 // pred_region
      %s161 = ssub.s32 %s11, 1
      // Predicated region
      $region13: #{vision_transformer_forward.3} parent=11 // pred_check
        %p162 = pneg %p58
      $region14: #{vision_transformer_forward.3} parent=11 // pred_check_branch
        %164 = sbr.rel (%p162) target = $region16
      $region15: #{vision_transformer_forward.3} parent=11 // pred_region
        _
      $region16: #{vision_transformer_forward.3} parent=11 // pred_fallthru
        _
      // Predicated region
      $region17: #{vision_transformer_forward.3} parent=11 // pred_check
        %p165 = pneg %p79
      $region18: #{vision_transformer_forward.3} parent=11 // pred_check_branch
        %167 = sbr.rel (%p165) target = $region20
      $region19: #{vision_transformer_forward.3} parent=11 // pred_region
        _
      $region20: #{vision_transformer_forward.3} parent=11 // pred_fallthru
        _
      // Predicated region
      $region21: #{vision_transformer_forward.3} parent=11 // pred_check
        %p168 = pneg %p100
      $region22: #{vision_transformer_forward.3} parent=11 // pred_check_branch
        %170 = sbr.rel (%p168) target = $region24
      $region23: #{vision_transformer_forward.3} parent=11 // pred_region
        _
      $region24: #{vision_transformer_forward.3} parent=11 // pred_fallthru
        _
      // Predicated region
      $region25: #{vision_transformer_forward.3} parent=11 // pred_check
        %p171 = pneg %p121
      $region26: #{vision_transformer_forward.3} parent=11 // pred_check_branch
        %173 = sbr.rel (%p171) target = $region28
      $region27: #{vision_transformer_forward.3} parent=11 // pred_region
        _
      $region28: #{vision_transformer_forward.3} parent=11 // pred_fallthru
        _
    $region12: #{vision_transformer_forward.3} parent=5 // pred_fallthru
      _
    %p174 = scmp.lt.s32.totalorder %s11, 2
    // Predicated region
    $region29: #{vision_transformer_forward.3} parent=5 // pred_check
      %p175 = pneg %p174
    $region30: #{vision_transformer_forward.3} parent=5 // pred_check_branch
      %177 = sbr.rel (%p175) target = $region32
    $region31: #{vision_transformer_forward.3} parent=5 // pred_region
      // Predicated region
      $region33: #{vision_transformer_forward.3} parent=31 // pred_check
        %p178 = pneg %p31
      $region34: #{vision_transformer_forward.3} parent=31 // pred_check_branch
        %180 = sbr.rel (%p178) target = $region36
      $region35: #{vision_transformer_forward.3} parent=31 // pred_region
        %p181 = scmp.lt.s32.totalorder %s11, 1
        %s182 = scalar_select %p181, %s11, 1
        %s183 = smul.addr %s182, 4
        %s184 = smul.addr %s183, 4
        %s185 = scalar_lea.vmem %s0, %s184
      $region36: #{vision_transformer_forward.3} parent=31 // pred_fallthru
        _
    $region32: #{vision_transformer_forward.3} parent=5 // pred_fallthru
      _
    %p186 = scmp.le.s32.totalorder 1, %s11
    %p187 = scmp.lt.s32.totalorder %s11, 3
    %p188 = pnand %p186, %p187
    %p189 = pneg %p188
    // Predicated region
    $region37: #{vision_transformer_forward.3} parent=5 // pred_check
      _
    $region38: #{vision_transformer_forward.3} parent=5 // pred_check_branch
      %191 = sbr.rel (%p188) target = $region40
    $region39: #{vision_transformer_forward.3} parent=5 // pred_region
      %s192 = ssub.s32 %s11, 1
      %p193 = scmp.lt.s32.totalorder %s16, 1
      %s194 = scalar_select %p193, %s16, 1
      %s195 = smul.addr %s194, 4
      %s196 = smul.addr %s195, 4
      %s197 = scalar_lea.vmem %s0, %s196
      %p198 = pneg %p37
      %p199 = pneg %p34
      %p200 = pneg %p58
      %p201 = pneg %p55
      %p202 = pneg %p79
      %p203 = pneg %p76
      %p204 = pneg %p100
      %p205 = pneg %p97
      %p206 = pneg %p121
      %p207 = pneg %p118
      %p208 = pneg %p147
      %p209 = pneg %p144
      %p210 = scmp.lt.s32.totalorder %s16, 1
      %s211 = scalar_select %p210, %s16, 1
      %s212 = smul.addr %s211, 4
      %s213 = smul.addr %s212, 8
      %s214 = scalar_lea.vmem %s5, %s213
      %p215 = scmp.lt.s32.totalorder %s16, 1
      %s216 = scalar_select %p215, %s16, 1
      %s217 = smul.addr %s216, 4
      %s218 = smul.addr %s217, 4
      %s219 = scalar_lea.vmem %s0, %s218
      %p220 = scmp.lt.s32.totalorder %s16, 1
      %s221 = scalar_select %p220, %s16, 1
      %s222 = smul.addr %s221, 4
      %s223 = smul.addr %s222, 8
      %s224 = scalar_lea.vmem %s5, %s223
      %v226 = vld [vmem:[%s219] sm:$0xf]
      %v227 = vld [vmem:[%s219 + $0x4] sm:$0xf]
      %v228 = vld [vmem:[%s219 + $0x8] sm:$0xf]
      %v229 = vld [vmem:[%s219 + $0xc] sm:$0xf]
      %v230 = vld [vmem:[%s1] sm:$0xf]
      %v231 = vld [vmem:[%s1 + $0x4] sm:$0xf]
      %v232 = vld [vmem:[%s1 + $0x8] sm:$0xf]
      %v233 = vld [vmem:[%s1 + $0xc] sm:$0xf]
      %v234 = vld [vmem:[%s1 + $0x10] sm:$0xf]
      %v235 = vld [vmem:[%s1 + $0x14] sm:$0xf]
      %v236 = vld [vmem:[%s2] sm:$0xff]
      %v237 = vld [vmem:[%s2 + $0x8] sm:$0xff]
      %v238 = vld [vmem:[%s2 + $0x10] sm:$0xff]
      %v239 = vld [vmem:[%s2 + $0x18] sm:$0xff]
      %v244 = vunpack.c.l.b16 %v226
      %v245 = vunpack.c.l.b16 %v227
      %v246 = vunpack.c.l.b16 %v228
      %v247 = vunpack.c.l.b16 %v229
      %v248 = vpack.c.b16 %v245, %v244
      %v249 = vpack.c.b16 %v247, %v246
      %v256 = vunpack.c.l.b16 %v230
      %v257 = vunpack.c.l.b16 %v231
      %v258 = vunpack.c.l.b16 %v232
      %v259 = vunpack.c.l.b16 %v233
      %v260 = vunpack.c.l.b16 %v234
      %v261 = vunpack.c.l.b16 %v235
      %v262 = vpack.c.b16 %v257, %v256
      %v263 = vpack.c.b16 %v259, %v258
      %v264 = vpack.c.b16 %v261, %v260
      %vm268 = vcmask 392192
      %v270 = vsel %vm268, %v248, 0
      %v273 = vsel %vm268, %v249, 0
      %275 = vmatprep.subr.bf16.mxu0 0
      %276 = vmatpush1.bf16.msra.mxu0 %v262
      %277 = vmatprep.subr.bf16.mxu0 0
      %278 = vmatpush1.bf16.msra.mxu0 %v263
      %279 = vmatprep.subr.bf16.mxu0 0
      %280 = vmatpush1.bf16.msra.mxu0 %v264
      %281 = vmatprep.subr.bf16.mxu0 0
      %282 = vmatpush1.bf16.msra.mxu0 0
      %283 = vmatprep.subr.bf16.mxu0 0
      %284 = vmatpush1.bf16.msra.mxu0 0
      %285 = vmatprep.subr.bf16.mxu0 0
      %286 = vmatpush1.bf16.msra.mxu0 0
      %287 = vmatprep.subr.bf16.mxu0 0
      %288 = vmatpush1.bf16.msra.mxu0 0
      %289 = vmatprep.subr.bf16.mxu0 0
      %290 = vmatpush1.bf16.msra.mxu0 0
      %291 = vmatprep.subr.bf16.mxu0 0
      %292 = vmatpush1.bf16.msra.mxu0 0
      %293 = vmatprep.subr.bf16.mxu0 0
      %294 = vmatpush1.bf16.msra.mxu0 0
      %295 = vmatprep.subr.bf16.mxu0 0
      %296 = vmatpush1.bf16.msra.mxu0 0
      %297 = vmatprep.subr.bf16.mxu0 0
      %298 = vmatpush1.bf16.msra.mxu0 0
      %299 = vmatprep.subr.bf16.mxu0 0
      %300 = vmatpush1.bf16.msra.mxu0 0
      %301 = vmatprep.subr.bf16.mxu0 0
      %302 = vmatpush1.bf16.msra.mxu0 0
      %303 = vmatprep.subr.bf16.mxu0 0
      %304 = vmatpush1.bf16.msra.mxu0 0
      %305 = vmatprep.subr.bf16.mxu0 0
      %306 = vmatpush1.bf16.msra.mxu0 0
      %307 = vmatprep.mubr.bf16.mxu0 0
      %308 = vmatmul.mubr.bf16.gmra.mrb[0].mxu0 %v270
      %v309 = vpop.f32.mrb[0].mxu0
      %v310 = vadd.f32 %v236, %v309
      %v311 = vpop.f32.mrb[0].mxu0
      %v312 = vpop.f32.mrb[0].mxu0
      %v313 = vadd.f32 %v237, %v312
      %v314 = vpop.f32.mrb[0].mxu0
      %315 = vmatprep.mubr.bf16.mxu0 0
      %316 = vmatmul.mubr.bf16.gmra.mrb[0].mxu0 %v273
      %v317 = vpop.f32.mrb[0].mxu0
      %v318 = vadd.f32 %v238, %v317
      %v319 = vpop.f32.mrb[0].mxu0
      %v320 = vpop.f32.mrb[0].mxu0
      %v321 = vadd.f32 %v239, %v320
      %v322 = vpop.f32.mrb[0].mxu0
      %323 = vdwg.mxu0
      %v324 = vld [vmem:[%s3] sm:$0x1]
      %v325 = vld [vmem:[%s4] sm:$0x1]
      %vm326 = vcmask 261120
      %v327 = vsel %vm326, %v310, 0.0
      %328 = vadd.xlane.f32.xlu0 %v327
      %v329 = vpop.xlane.xlu0 %328
      %v330 = vsel %vm326, %v313, 0.0
      %331 = vadd.xlane.f32.xlu0 %v330
      %v332 = vpop.xlane.xlu0 %331
      %v333 = vsel %vm326, %v318, 0.0
      %334 = vadd.xlane.f32.xlu0 %v333
      %v335 = vpop.xlane.xlu0 %334
      %v336 = vsel %vm326, %v321, 0.0
      %337 = vadd.xlane.f32.xlu0 %v336
      %v338 = vpop.xlane.xlu0 %337
      %v339 = vrcp.pop 32.0
      %v340 = vmul.f32 %v329, %v339
      %v341 = vmul.f32 %v332, %v339
      %v342 = vmul.f32 %v335, %v339
      %v343 = vmul.f32 %v338, %v339
      %v344 = vsub.f32 %v310, %v340
      %v345 = vsub.f32 %v313, %v341
      %v346 = vsub.f32 %v318, %v342
      %v347 = vsub.f32 %v321, %v343
      %v348 = vmul.f32 %v344, %v344
      %v349 = vmul.f32 %v345, %v345
      %v350 = vmul.f32 %v346, %v346
      %v351 = vmul.f32 %v347, %v347
      %v352 = vsel %vm326, %v348, 0.0
      %353 = vadd.xlane.f32.xlu0 %v352
      %v354 = vpop.xlane.xlu0 %353
      %v355 = vsel %vm326, %v349, 0.0
      %356 = vadd.xlane.f32.xlu0 %v355
      %v357 = vpop.xlane.xlu0 %356
      %v358 = vsel %vm326, %v350, 0.0
      %359 = vadd.xlane.f32.xlu0 %v358
      %v360 = vpop.xlane.xlu0 %359
      %v361 = vsel %vm326, %v351, 0.0
      %362 = vadd.xlane.f32.xlu0 %v361
      %v363 = vpop.xlane.xlu0 %362
      %v364 = vmul.f32 %v354, %v339
      %v365 = vmul.f32 %v357, %v339
      %v366 = vmul.f32 %v360, %v339
      %v367 = vmul.f32 %v363, %v339
      %v368 = vadd.f32 %v364, 1e-05
      %v369 = vadd.f32 %v365, 1e-05
      %v370 = vadd.f32 %v366, 1e-05
      %v371 = vadd.f32 %v367, 1e-05
      %v372 = vrsqrt.pop %v368
      %v373 = vrsqrt.pop %v369
      %v374 = vrsqrt.pop %v370
      %v375 = vrsqrt.pop %v371
      %v376 = vmul.f32 %v344, %v372
      %v377 = vmul.f32 %v345, %v373
      %v378 = vmul.f32 %v346, %v374
      %v379 = vmul.f32 %v347, %v375
      %v381 = vlaneseq
      %v382 = vshrl.u32 %v381, 7
      %v383 = vsub.s32 0, %v382
      %v384 = vrot.slane %v324, %v383
      %v386 = vmul.f32 %v376, %v384
      %v387 = vmul.f32 %v377, %v384
      %v388 = vmul.f32 %v378, %v384
      %v389 = vmul.f32 %v379, %v384
      %v391 = vlaneseq
      %v392 = vshrl.u32 %v391, 7
      %v393 = vsub.s32 0, %v392
      %v394 = vrot.slane %v325, %v393
      %v396 = vadd.f32 %v386, %v394
      %v397 = vadd.f32 %v387, %v394
      %v398 = vadd.f32 %v388, %v394
      %v399 = vadd.f32 %v389, %v394
      %400 = vst.msk [vmem:[%s224] sm:$0xff] %vm326, %v396
      %401 = vst.msk [vmem:[%s224 + $0x8] sm:$0xff] %vm326, %v397
      %402 = vst.msk [vmem:[%s224 + $0x10] sm:$0xff] %vm326, %v398
      %403 = vst.msk [vmem:[%s224 + $0x18] sm:$0xff] %vm326, %v399
      %p404 = scmp.lt.s32.totalorder %s16, 1
      %s405 = scalar_select %p404, %s16, 1
      %s406 = smul.addr %s405, 4
      %s407 = smul.addr %s406, 8
      %s408 = scalar_lea.vmem %s5, %s407
      // Predicated region
      $region41: #{vision_transformer_forward.3} parent=39 // pred_check
        %p409 = pneg %p144
      $region42: #{vision_transformer_forward.3} parent=39 // pred_check_branch
        %411 = sbr.rel (%p409) target = $region44
      $region43: #{vision_transformer_forward.3} parent=39 // pred_region
        _
      $region44: #{vision_transformer_forward.3} parent=39 // pred_fallthru
        _
    $region40: #{vision_transformer_forward.3} parent=5 // pred_fallthru
      _
    %p412 = scmp.le.s32.totalorder 2, %s11
    // Predicated region
    $region45: #{vision_transformer_forward.3} parent=5 // pred_check
      %p413 = pneg %p412
    $region46: #{vision_transformer_forward.3} parent=5 // pred_check_branch
      %415 = sbr.rel (%p413) target = $region48
    $region47: #{vision_transformer_forward.3} parent=5 // pred_region
      %s416 = ssub.s32 %s11, 2
      // Predicated region
      $region49: #{vision_transformer_forward.3} parent=47 // pred_check
        %p417 = pneg %p150
      $region50: #{vision_transformer_forward.3} parent=47 // pred_check_branch
        %419 = sbr.rel (%p417) target = $region52
      $region51: #{vision_transformer_forward.3} parent=47 // pred_region
        %p420 = scmp.lt.s32.totalorder %s17, 1
        %s421 = scalar_select %p420, %s17, 1
        %s422 = smul.addr %s421, 4
        %s423 = smul.addr %s422, 8
        %s424 = scalar_lea.vmem %s5, %s423
      $region52: #{vision_transformer_forward.3} parent=47 // pred_fallthru
        _
    $region48: #{vision_transformer_forward.3} parent=5 // pred_fallthru
      _
  $region6: #{vision_transformer_forward.3} parent=0 // loop_footer
    %s15 = sadd.s32 1, %s11
  $region7: #{vision_transformer_forward.3} parent=0 // loop_footer_branch
    %10 = sbr.rel target = $region3
  $region8: #{vision_transformer_forward.3} parent=0 // loop_exit
    _

// kernel: vision_transformer_forward.5
$region0: #{vision_transformer_forward.5}
  #allocation0 [shape = 'u32[]', space=smem, size = 0x4, offset = 0x4, fixed_abs, tag = 'smem constant byte address 0x4 - core index']
  #allocation1 [shape = 'u32[144,128]{1,0:T(1,128)}', space=vmem, size = 0x12000, scoped, tag = 'internal scratch']
  %s0 = inlined_call_operand.vmem [shape: f32[2,32,32], index: 0, kind: input, shape index: {}]
  %s1 = inlined_call_operand.vmem [shape: f32[1,32], index: 1, kind: input, shape index: {}]
  %s2 = inlined_call_operand.vmem [shape: f32[1,32], index: 2, kind: input, shape index: {}]
  %s3 = inlined_call_operand.vmem [shape: bf16[32,16], index: 3, kind: input, shape index: {}]
  %s4 = inlined_call_operand.vmem [shape: f32[2,32,16], index: 4, kind: output, shape index: {}]
  %s5 = sld [smem:[#allocation0]]
  $region49: #{vision_transformer_forward.5} parent=0
    _
  %s7 = ssub.s32 1, %s5
  %s8 = scalar_select 0, %s7, %s5
  loop: start=0, step=1, limit=4
  $region2: #{vision_transformer_forward.5} parent=0 // loop_pre_header
    _
  $region3: #{vision_transformer_forward.5} parent=0 // loop_header
    %s10 = sphi 0, %s14
    %p11 = scmp.ge.s32.totalorder %s10, 4
    %s20 = sphi 0, %s22
    %s23 = sphi 0, %s20
    %s24 = sphi 0, %s23
    %s40 = sphi 0, %s24
    %s44 = sphi 0, %s44
    %s46 = sphi 0, %s44
    %s47 = sphi 0, %s46
    %s61 = sphi 0, %s47
    %s65 = sphi 0, %s65
    %s67 = sphi 0, %s65
    %s68 = sphi 0, %s67
    %s82 = sphi 0, %s68
    %s86 = sphi 0, %s86
    %s88 = sphi 0, %s86
    %s89 = sphi 0, %s88
    %s103 = sphi 0, %s89
    %s109 = sphi 0, %s111
    %s112 = sphi 0, %s109
    %s113 = sphi 0, %s112
    %s129 = sphi 0, %s113
  $region4: #{vision_transformer_forward.5} parent=0 // loop_header_branch
    %13 = sbr.rel (%p11) target = $region8
  $region5: #{vision_transformer_forward.5} parent=0 // loop_body
    %s15 = ssub.s32 %s10, 1
    %s16 = ssub.s32 %s10, 2
    %s17 = sadd.s32 %s10, 1
    %s18 = ssub.s32 %s10, %s17
    %p19 = scmp.eq.s32.totalorder %s18, 0
    %s21 = sadd.s32 %s20, 1
    %s22 = scalar_select %p19, %s20, %s21
    %p25 = pneg %p19
    %p26 = scmp.eq.s32.totalorder %s10, 1
    %p27 = por %p25, %p26
    %p28 = scmp.ne.s32.totalorder %s20, %s23
    %p29 = scmp.eq.s32.totalorder %s10, 0
    %p30 = por %p28, %p29
    %p31 = scmp.ne.s32.totalorder %s20, %s23
    %p32 = scmp.eq.s32.totalorder %s15, 1
    %p33 = por %p31, %p32
    %p34 = scmp.ne.s32.totalorder %s23, %s24
    %p35 = scmp.eq.s32.totalorder %s15, 0
    %p36 = por %p34, %p35
    %p37 = scmp.ne.s32.totalorder %s23, %s24
    %p38 = scmp.eq.s32.totalorder %s16, 1
    %p39 = por %p37, %p38
    %p41 = scmp.ne.s32.totalorder %s24, %s40
    %p42 = scmp.eq.s32.totalorder %s16, 0
    %p43 = por %p41, %p42
    %s45 = sadd.s32 %s44, 1
    %p48 = scmp.eq.s32.totalorder %s10, 1
    %p49 = scmp.ne.s32.totalorder %s44, %s46
    %p50 = scmp.eq.s32.totalorder %s10, 0
    %p51 = por %p49, %p50
    %p52 = scmp.ne.s32.totalorder %s44, %s46
    %p53 = scmp.eq.s32.totalorder %s15, 1
    %p54 = por %p52, %p53
    %p55 = scmp.ne.s32.totalorder %s46, %s47
    %p56 = scmp.eq.s32.totalorder %s15, 0
    %p57 = por %p55, %p56
    %p58 = scmp.ne.s32.totalorder %s46, %s47
    %p59 = scmp.eq.s32.totalorder %s16, 1
    %p60 = por %p58, %p59
    %p62 = scmp.ne.s32.totalorder %s47, %s61
    %p63 = scmp.eq.s32.totalorder %s16, 0
    %p64 = por %p62, %p63
    %s66 = sadd.s32 %s65, 1
    %p69 = scmp.eq.s32.totalorder %s10, 1
    %p70 = scmp.ne.s32.totalorder %s65, %s67
    %p71 = scmp.eq.s32.totalorder %s10, 0
    %p72 = por %p70, %p71
    %p73 = scmp.ne.s32.totalorder %s65, %s67
    %p74 = scmp.eq.s32.totalorder %s15, 1
    %p75 = por %p73, %p74
    %p76 = scmp.ne.s32.totalorder %s67, %s68
    %p77 = scmp.eq.s32.totalorder %s15, 0
    %p78 = por %p76, %p77
    %p79 = scmp.ne.s32.totalorder %s67, %s68
    %p80 = scmp.eq.s32.totalorder %s16, 1
    %p81 = por %p79, %p80
    %p83 = scmp.ne.s32.totalorder %s68, %s82
    %p84 = scmp.eq.s32.totalorder %s16, 0
    %p85 = por %p83, %p84
    %s87 = sadd.s32 %s86, 1
    %p90 = scmp.eq.s32.totalorder %s10, 1
    %p91 = scmp.ne.s32.totalorder %s86, %s88
    %p92 = scmp.eq.s32.totalorder %s10, 0
    %p93 = por %p91, %p92
    %p94 = scmp.ne.s32.totalorder %s86, %s88
    %p95 = scmp.eq.s32.totalorder %s15, 1
    %p96 = por %p94, %p95
    %p97 = scmp.ne.s32.totalorder %s88, %s89
    %p98 = scmp.eq.s32.totalorder %s15, 0
    %p99 = por %p97, %p98
    %p100 = scmp.ne.s32.totalorder %s88, %s89
    %p101 = scmp.eq.s32.totalorder %s16, 1
    %p102 = por %p100, %p101
    %p104 = scmp.ne.s32.totalorder %s89, %s103
    %p105 = scmp.eq.s32.totalorder %s16, 0
    %p106 = por %p104, %p105
    %s107 = ssub.s32 %s10, %s17
    %p108 = scmp.eq.s32.totalorder %s107, 0
    %s110 = sadd.s32 %s109, 1
    %s111 = scalar_select %p108, %s109, %s110
    %p114 = pneg %p108
    %p115 = scmp.eq.s32.totalorder %s10, 1
    %p116 = por %p114, %p115
    %p117 = scmp.ne.s32.totalorder %s109, %s112
    %p118 = scmp.eq.s32.totalorder %s10, 0
    %p119 = por %p117, %p118
    %p120 = scmp.ne.s32.totalorder %s109, %s112
    %p121 = scmp.eq.s32.totalorder %s15, 1
    %p122 = por %p120, %p121
    %p123 = scmp.ne.s32.totalorder %s112, %s113
    %p124 = scmp.eq.s32.totalorder %s15, 0
    %p125 = por %p123, %p124
    %p126 = scmp.ne.s32.totalorder %s112, %s113
    %p127 = scmp.eq.s32.totalorder %s16, 1
    %p128 = por %p126, %p127
    %p130 = scmp.ne.s32.totalorder %s113, %s129
    %p131 = scmp.eq.s32.totalorder %s16, 0
    %p132 = por %p130, %p131
    %p133 = scmp.le.s32.totalorder 1, %s10
    %p134 = scmp.lt.s32.totalorder %s10, 3
    %p135 = pnand %p133, %p134
    %p136 = pneg %p135
    // Predicated region
    $region9: #{vision_transformer_forward.5} parent=5 // pred_check
      _
    $region10: #{vision_transformer_forward.5} parent=5 // pred_check_branch
      %138 = sbr.rel (%p135) target = $region12
    $region11: #{vision_transformer_forward.5} parent=5 // pred_region
      %s139 = ssub.s32 %s10, 1
      // Predicated region
      $region13: #{vision_transformer_forward.5} parent=11 // pred_check
        %p140 = pneg %p57
      $region14: #{vision_transformer_forward.5} parent=11 // pred_check_branch
        %142 = sbr.rel (%p140) target = $region16
      $region15: #{vision_transformer_forward.5} parent=11 // pred_region
        _
      $region16: #{vision_transformer_forward.5} parent=11 // pred_fallthru
        _
      // Predicated region
      $region17: #{vision_transformer_forward.5} parent=11 // pred_check
        %p143 = pneg %p78
      $region18: #{vision_transformer_forward.5} parent=11 // pred_check_branch
        %145 = sbr.rel (%p143) target = $region20
      $region19: #{vision_transformer_forward.5} parent=11 // pred_region
        _
      $region20: #{vision_transformer_forward.5} parent=11 // pred_fallthru
        _
      // Predicated region
      $region21: #{vision_transformer_forward.5} parent=11 // pred_check
        %p146 = pneg %p99
      $region22: #{vision_transformer_forward.5} parent=11 // pred_check_branch
        %148 = sbr.rel (%p146) target = $region24
      $region23: #{vision_transformer_forward.5} parent=11 // pred_region
        _
      $region24: #{vision_transformer_forward.5} parent=11 // pred_fallthru
        _
    $region12: #{vision_transformer_forward.5} parent=5 // pred_fallthru
      _
    %p149 = scmp.lt.s32.totalorder %s10, 2
    // Predicated region
    $region25: #{vision_transformer_forward.5} parent=5 // pred_check
      %p150 = pneg %p149
    $region26: #{vision_transformer_forward.5} parent=5 // pred_check_branch
      %152 = sbr.rel (%p150) target = $region28
    $region27: #{vision_transformer_forward.5} parent=5 // pred_region
      // Predicated region
      $region29: #{vision_transformer_forward.5} parent=27 // pred_check
        %p153 = pneg %p30
      $region30: #{vision_transformer_forward.5} parent=27 // pred_check_branch
        %155 = sbr.rel (%p153) target = $region32
      $region31: #{vision_transformer_forward.5} parent=27 // pred_region
        %p156 = scmp.lt.s32.totalorder %s10, 1
        %s157 = scalar_select %p156, %s10, 1
        %s158 = smul.addr %s157, 4
        %s159 = smul.addr %s158, 8
        %s160 = scalar_lea.vmem %s0, %s159
      $region32: #{vision_transformer_forward.5} parent=27 // pred_fallthru
        _
    $region28: #{vision_transformer_forward.5} parent=5 // pred_fallthru
      _
    %p161 = scmp.le.s32.totalorder 1, %s10
    %p162 = scmp.lt.s32.totalorder %s10, 3
    %p163 = pnand %p161, %p162
    %p164 = pneg %p163
    // Predicated region
    $region33: #{vision_transformer_forward.5} parent=5 // pred_check
      _
    $region34: #{vision_transformer_forward.5} parent=5 // pred_check_branch
      %166 = sbr.rel (%p163) target = $region36
    $region35: #{vision_transformer_forward.5} parent=5 // pred_region
      %s167 = ssub.s32 %s10, 1
      %p168 = scmp.lt.s32.totalorder %s15, 1
      %s169 = scalar_select %p168, %s15, 1
      %s170 = smul.addr %s169, 4
      %s171 = smul.addr %s170, 8
      %s172 = scalar_lea.vmem %s0, %s171
      %p173 = pneg %p36
      %p174 = pneg %p33
      %p175 = pneg %p57
      %p176 = pneg %p54
      %p177 = pneg %p78
      %p178 = pneg %p75
      %p179 = pneg %p99
      %p180 = pneg %p96
      %p181 = pneg %p125
      %p182 = pneg %p122
      %p183 = scmp.lt.s32.totalorder %s15, 1
      %s184 = scalar_select %p183, %s15, 1
      %s185 = smul.addr %s184, 4
      %s186 = smul.addr %s185, 8
      %s187 = scalar_lea.vmem %s4, %s186
      %p188 = scmp.lt.s32.totalorder %s15, 1
      %s189 = scalar_select %p188, %s15, 1
      %s190 = smul.addr %s189, 4
      %s191 = smul.addr %s190, 8
      %s192 = scalar_lea.vmem %s0, %s191
      %p193 = scmp.lt.s32.totalorder %s15, 1
      %s194 = scalar_select %p193, %s15, 1
      %s195 = smul.addr %s194, 4
      %s196 = smul.addr %s195, 8
      %s197 = scalar_lea.vmem %s4, %s196
      %v199 = vld [vmem:[%s192] sm:$0xff]
      %v200 = vld [vmem:[%s192 + $0x8] sm:$0xff]
      %v201 = vld [vmem:[%s192 + $0x10] sm:$0xff]
      %v202 = vld [vmem:[%s192 + $0x18] sm:$0xff]
      %v203 = vld [vmem:[%s1] sm:$0x1]
      %v204 = vld [vmem:[%s2] sm:$0x1]
      %vm205 = vcmask 261120
      %v206 = vsel %vm205, %v199, 0.0
      %207 = vadd.xlane.f32.xlu0 %v206
      %v208 = vpop.xlane.xlu0 %207
      %v209 = vsel %vm205, %v200, 0.0
      %210 = vadd.xlane.f32.xlu0 %v209
      %v211 = vpop.xlane.xlu0 %210
      %v212 = vsel %vm205, %v201, 0.0
      %213 = vadd.xlane.f32.xlu0 %v212
      %v214 = vpop.xlane.xlu0 %213
      %v215 = vsel %vm205, %v202, 0.0
      %216 = vadd.xlane.f32.xlu0 %v215
      %v217 = vpop.xlane.xlu0 %216
      %v218 = vrcp.pop 32.0
      %v219 = vmul.f32 %v208, %v218
      %v220 = vmul.f32 %v211, %v218
      %v221 = vmul.f32 %v214, %v218
      %v222 = vmul.f32 %v217, %v218
      %v223 = vsub.f32 %v199, %v219
      %v224 = vsub.f32 %v200, %v220
      %v225 = vsub.f32 %v201, %v221
      %v226 = vsub.f32 %v202, %v222
      %v227 = vmul.f32 %v223, %v223
      %v228 = vmul.f32 %v224, %v224
      %v229 = vmul.f32 %v225, %v225
      %v230 = vmul.f32 %v226, %v226
      %v231 = vsel %vm205, %v227, 0.0
      %232 = vadd.xlane.f32.xlu0 %v231
      %v233 = vpop.xlane.xlu0 %232
      %v234 = vsel %vm205, %v228, 0.0
      %235 = vadd.xlane.f32.xlu0 %v234
      %v236 = vpop.xlane.xlu0 %235
      %v237 = vsel %vm205, %v229, 0.0
      %238 = vadd.xlane.f32.xlu0 %v237
      %v239 = vpop.xlane.xlu0 %238
      %v240 = vsel %vm205, %v230, 0.0
      %241 = vadd.xlane.f32.xlu0 %v240
      %v242 = vpop.xlane.xlu0 %241
      %v243 = vmul.f32 %v233, %v218
      %v244 = vmul.f32 %v236, %v218
      %v245 = vmul.f32 %v239, %v218
      %v246 = vmul.f32 %v242, %v218
      %v247 = vadd.f32 %v243, 1e-05
      %v248 = vadd.f32 %v244, 1e-05
      %v249 = vadd.f32 %v245, 1e-05
      %v250 = vadd.f32 %v246, 1e-05
      %v251 = vrsqrt.pop %v247
      %v252 = vrsqrt.pop %v248
      %v253 = vrsqrt.pop %v249
      %v254 = vrsqrt.pop %v250
      %v255 = vmul.f32 %v223, %v251
      %v256 = vmul.f32 %v224, %v252
      %v257 = vmul.f32 %v225, %v253
      %v258 = vmul.f32 %v226, %v254
      %v260 = vlaneseq
      %v261 = vshrl.u32 %v260, 7
      %v262 = vsub.s32 0, %v261
      %v263 = vrot.slane %v203, %v262
      %v265 = vmul.f32 %v255, %v263
      %v266 = vmul.f32 %v256, %v263
      %v267 = vmul.f32 %v257, %v263
      %v268 = vmul.f32 %v258, %v263
      %v270 = vlaneseq
      %v271 = vshrl.u32 %v270, 7
      %v272 = vsub.s32 0, %v271
      %v273 = vrot.slane %v204, %v272
      %v275 = vadd.f32 %v265, %v273
      %v276 = vadd.f32 %v266, %v273
      %v277 = vadd.f32 %v267, %v273
      %v278 = vadd.f32 %v268, %v273
      %v279 = vpack.c.bf16 %v276, %v275
      %v280 = vpack.c.bf16 %v278, %v277
      %v281 = vld [vmem:[%s3] sm:$0xf]
      %v282 = vld [vmem:[%s3 + $0x4] sm:$0xf]
      %v283 = vld [vmem:[%s3 + $0x8] sm:$0xf]
      %v284 = vld [vmem:[%s3 + $0xc] sm:$0xf]
      %v289 = vunpack.c.l.b16 %v281
      %v290 = vunpack.c.l.b16 %v282
      %v291 = vunpack.c.l.b16 %v283
      %v292 = vunpack.c.l.b16 %v284
      %v293 = vpack.c.b16 %v290, %v289
      %v294 = vpack.c.b16 %v292, %v291
      %v298 = vsel %vm205, %v279, 0
      %v301 = vsel %vm205, %v280, 0
      %303 = vmatprep.subr.bf16.mxu0 0
      %304 = vmatpush1.bf16.msra.mxu0 %v293
      %305 = vmatprep.subr.bf16.mxu0 0
      %306 = vmatpush1.bf16.msra.mxu0 %v294
      %307 = vmatprep.subr.bf16.mxu0 0
      %308 = vmatpush1.bf16.msra.mxu0 0
      %309 = vmatprep.subr.bf16.mxu0 0
      %310 = vmatpush1.bf16.msra.mxu0 0
      %311 = vmatprep.subr.bf16.mxu0 0
      %312 = vmatpush1.bf16.msra.mxu0 0
      %313 = vmatprep.subr.bf16.mxu0 0
      %314 = vmatpush1.bf16.msra.mxu0 0
      %315 = vmatprep.subr.bf16.mxu0 0
      %316 = vmatpush1.bf16.msra.mxu0 0
      %317 = vmatprep.subr.bf16.mxu0 0
      %318 = vmatpush1.bf16.msra.mxu0 0
      %319 = vmatprep.subr.bf16.mxu0 0
      %320 = vmatpush1.bf16.msra.mxu0 0
      %321 = vmatprep.subr.bf16.mxu0 0
      %322 = vmatpush1.bf16.msra.mxu0 0
      %323 = vmatprep.subr.bf16.mxu0 0
      %324 = vmatpush1.bf16.msra.mxu0 0
      %325 = vmatprep.subr.bf16.mxu0 0
      %326 = vmatpush1.bf16.msra.mxu0 0
      %327 = vmatprep.subr.bf16.mxu0 0
      %328 = vmatpush1.bf16.msra.mxu0 0
      %329 = vmatprep.subr.bf16.mxu0 0
      %330 = vmatpush1.bf16.msra.mxu0 0
      %331 = vmatprep.subr.bf16.mxu0 0
      %332 = vmatpush1.bf16.msra.mxu0 0
      %333 = vmatprep.subr.bf16.mxu0 0
      %334 = vmatpush1.bf16.msra.mxu0 0
      %335 = vmatprep.mubr.bf16.mxu0 0
      %336 = vmatmul.mubr.bf16.gmra.mrb[0].mxu0 %v298
      %v337 = vpop.f32.mrb[0].mxu0
      %v338 = vadd.f32 0.0, %v337
      %v339 = vpop.f32.mrb[0].mxu0
      %v340 = vpop.f32.mrb[0].mxu0
      %v341 = vadd.f32 0.0, %v340
      %v342 = vpop.f32.mrb[0].mxu0
      %343 = vmatprep.mubr.bf16.mxu0 0
      %344 = vmatmul.mubr.bf16.gmra.mrb[0].mxu0 %v301
      %v345 = vpop.f32.mrb[0].mxu0
      %v346 = vadd.f32 0.0, %v345
      %v347 = vpop.f32.mrb[0].mxu0
      %v348 = vpop.f32.mrb[0].mxu0
      %v349 = vadd.f32 0.0, %v348
      %v350 = vpop.f32.mrb[0].mxu0
      %351 = vdwg.mxu0
      %vm352 = vcmask 130048
      %353 = vst.msk [vmem:[%s197] sm:$0xff] %vm352, %v338
      %354 = vst.msk [vmem:[%s197 + $0x8] sm:$0xff] %vm352, %v341
      %355 = vst.msk [vmem:[%s197 + $0x10] sm:$0xff] %vm352, %v346
      %356 = vst.msk [vmem:[%s197 + $0x18] sm:$0xff] %vm352, %v349
      %p357 = scmp.lt.s32.totalorder %s15, 1
      %s358 = scalar_select %p357, %s15, 1
      %s359 = smul.addr %s358, 4
      %s360 = smul.addr %s359, 8
      %s361 = scalar_lea.vmem %s4, %s360
      // Predicated region
      $region37: #{vision_transformer_forward.5} parent=35 // pred_check
        %p362 = pneg %p122
      $region38: #{vision_transformer_forward.5} parent=35 // pred_check_branch
        %364 = sbr.rel (%p362) target = $region40
      $region39: #{vision_transformer_forward.5} parent=35 // pred_region
        _
      $region40: #{vision_transformer_forward.5} parent=35 // pred_fallthru
        _
    $region36: #{vision_transformer_forward.5} parent=5 // pred_fallthru
      _
    %p365 = scmp.le.s32.totalorder 2, %s10
    // Predicated region
    $region41: #{vision_transformer_forward.5} parent=5 // pred_check
      %p366 = pneg %p365
    $region42: #{vision_transformer_forward.5} parent=5 // pred_check_branch
      %368 = sbr.rel (%p366) target = $region44
    $region43: #{vision_transformer_forward.5} parent=5 // pred_region
      %s369 = ssub.s32 %s10, 2
      // Predicated region
      $region45: #{vision_transformer_forward.5} parent=43 // pred_check
        %p370 = pneg %p128
      $region46: #{vision_transformer_forward.5} parent=43 // pred_check_branch
        %372 = sbr.rel (%p370) target = $region48
      $region47: #{vision_transformer_forward.5} parent=43 // pred_region
        %p373 = scmp.lt.s32.totalorder %s16, 1
        %s374 = scalar_select %p373, %s16, 1
        %s375 = smul.addr %s374, 4
        %s376 = smul.addr %s375, 8
        %s377 = scalar_lea.vmem %s4, %s376
      $region48: #{vision_transformer_forward.5} parent=43 // pred_fallthru
        _
    $region44: #{vision_transformer_forward.5} parent=5 // pred_fallthru
      _
  $region6: #{vision_transformer_forward.5} parent=0 // loop_footer
    %s14 = sadd.s32 1, %s10
  $region7: #{vision_transformer_forward.5} parent=0 // loop_footer_branch
    %9 = sbr.rel target = $region3
  $region8: #{vision_transformer_forward.5} parent=0 // loop_exit
    _

// kernel: vision_transformer_forward.4
$region0: #{vision_transformer_forward.4}
  #allocation0 [shape = 'u32[]', space=smem, size = 0x4, offset = 0x4, fixed_abs, tag = 'smem constant byte address 0x4 - core index']
  #allocation1 [shape = 'u32[144,128]{1,0:T(1,128)}', space=vmem, size = 0x12000, scoped, tag = 'internal scratch']
  #allocation2 [shape = 'f32[64,32]{1,0:T(8,128)}', space=vmem, size = 0x8000, scoped, tag = 'scratch operand']
  #allocation3 [shape = 'bf16[64,32]{1,0:T(16,128)(2,1)}', space=vmem, size = 0x4000, scoped, tag = 'scratch operand']
  %s0 = inlined_call_operand.vmem [shape: f32[2,32,32], index: 0, kind: input, shape index: {}, may-alias: {0,13}]
  %s1 = inlined_call_operand.vmem [shape: f32[2,1,32], index: 1, kind: input, shape index: {}]
  %s2 = inlined_call_operand.vmem [shape: f32[2,1,32], index: 2, kind: input, shape index: {}]
  %s3 = inlined_call_operand.vmem [shape: bf16[2,32,96], index: 3, kind: input, shape index: {}]
  %s4 = inlined_call_operand.vmem [shape: f32[2,1,96], index: 4, kind: input, shape index: {}]
  %s5 = inlined_call_operand.vmem [shape: bf16[2,32,32], index: 5, kind: input, shape index: {}]
  %s6 = inlined_call_operand.vmem [shape: f32[2,1,32], index: 6, kind: input, shape index: {}]
  %s7 = inlined_call_operand.vmem [shape: f32[2,1,32], index: 7, kind: input, shape index: {}]
  %s8 = inlined_call_operand.vmem [shape: f32[2,1,32], index: 8, kind: input, shape index: {}]
  %s9 = inlined_call_operand.vmem [shape: bf16[2,32,128], index: 9, kind: input, shape index: {}]
  %s10 = inlined_call_operand.vmem [shape: f32[2,1,128], index: 10, kind: input, shape index: {}]
  %s11 = inlined_call_operand.vmem [shape: bf16[2,128,32], index: 11, kind: input, shape index: {}]
  %s12 = inlined_call_operand.vmem [shape: f32[2,1,32], index: 12, kind: input, shape index: {}]
  %s13 = inlined_call_operand.vmem [shape: f32[2,32,32], index: 13, kind: output, shape index: {}, may-alias: {0,13}]
  %s14 = sld [smem:[#allocation0]]
  $region93: #{vision_transformer_forward.4} parent=0
    _
  %s16 = ssub.s32 1, %s14
  %s17 = scalar_select 0, %s16, %s14
  loop: start=0, step=1, limit=4
  $region2: #{vision_transformer_forward.4} parent=0 // loop_pre_header
    _
  $region3: #{vision_transformer_forward.4} parent=0 // loop_header
    %s19 = sphi 0, %s23
    %p20 = scmp.ge.s32.totalorder %s19, 4
    %s26 = sphi 0, %s38
    %s27 = sphi 0, %s34
    %s28 = sphi 0, %s26
    %s29 = sphi 0, %s27
    %s30 = sphi 0, %s28
    %s31 = sphi 0, %s29
    %s41 = sphi 0, %s43
    %s44 = sphi 0, %s41
    %s45 = sphi 0, %s44
    %s61 = sphi 0, %s45
    %s67 = sphi 0, %s69
    %s70 = sphi 0, %s67
    %s71 = sphi 0, %s70
    %s87 = sphi 0, %s71
    %s93 = sphi 0, %s95
    %s96 = sphi 0, %s93
    %s97 = sphi 0, %s96
    %s113 = sphi 0, %s97
    %s119 = sphi 0, %s121
    %s122 = sphi 0, %s119
    %s123 = sphi 0, %s122
    %s139 = sphi 0, %s123
    %s145 = sphi 0, %s147
    %s148 = sphi 0, %s145
    %s149 = sphi 0, %s148
    %s165 = sphi 0, %s149
    %s171 = sphi 0, %s173
    %s174 = sphi 0, %s171
    %s175 = sphi 0, %s174
    %s191 = sphi 0, %s175
    %s197 = sphi 0, %s199
    %s200 = sphi 0, %s197
    %s201 = sphi 0, %s200
    %s217 = sphi 0, %s201
    %s223 = sphi 0, %s225
    %s226 = sphi 0, %s223
    %s227 = sphi 0, %s226
    %s243 = sphi 0, %s227
    %s249 = sphi 0, %s251
    %s252 = sphi 0, %s249
    %s253 = sphi 0, %s252
    %s269 = sphi 0, %s253
    %s275 = sphi 0, %s277
    %s278 = sphi 0, %s275
    %s279 = sphi 0, %s278
    %s295 = sphi 0, %s279
    %s301 = sphi 0, %s303
    %s304 = sphi 0, %s301
    %s305 = sphi 0, %s304
    %s321 = sphi 0, %s305
    %s327 = sphi 0, %s329
    %s330 = sphi 0, %s327
    %s331 = sphi 0, %s330
    %s347 = sphi 0, %s331
    %s353 = sphi 0, %s355
    %s356 = sphi 0, %s353
    %s357 = sphi 0, %s356
    %s373 = sphi 0, %s357
    %s379 = sphi 0, %s381
    %s382 = sphi 0, %s379
    %s383 = sphi 0, %s382
    %s399 = sphi 0, %s383
  $region4: #{vision_transformer_forward.4} parent=0 // loop_header_branch
    %22 = sbr.rel (%p20) target = $region8
  $region5: #{vision_transformer_forward.4} parent=0 // loop_body
    %s24 = ssub.s32 %s19, 1
    %s25 = ssub.s32 %s19, 2
    %s32 = sadd.s32 1, %s27
    %p33 = scmp.ge.s32.totalorder %s32, 2
    %s34 = scalar_select %p33, 0, %s32
    %s35 = sadd.s32 1, %s26
    %s36 = scalar_select %p33, %s35, %s26
    %p37 = scmp.ge.s32.totalorder %s36, 1
    %s38 = scalar_select %p37, 0, %s36
    %s39 = ssub.s32 %s26, %s38
    %p40 = scmp.eq.s32.totalorder %s39, 0
    %s42 = sadd.s32 %s41, 1
    %s43 = scalar_select %p40, %s41, %s42
    %p46 = pneg %p40
    %p47 = scmp.eq.s32.totalorder %s19, 1
    %p48 = por %p46, %p47
    %p49 = scmp.ne.s32.totalorder %s41, %s44
    %p50 = scmp.eq.s32.totalorder %s19, 0
    %p51 = por %p49, %p50
    %p52 = scmp.ne.s32.totalorder %s41, %s44
    %p53 = scmp.eq.s32.totalorder %s24, 1
    %p54 = por %p52, %p53
    %p55 = scmp.ne.s32.totalorder %s44, %s45
    %p56 = scmp.eq.s32.totalorder %s24, 0
    %p57 = por %p55, %p56
    %p58 = scmp.ne.s32.totalorder %s44, %s45
    %p59 = scmp.eq.s32.totalorder %s25, 1
    %p60 = por %p58, %p59
    %p62 = scmp.ne.s32.totalorder %s45, %s61
    %p63 = scmp.eq.s32.totalorder %s25, 0
    %p64 = por %p62, %p63
    %s65 = ssub.s32 %s27, %s34
    %p66 = scmp.eq.s32.totalorder %s65, 0
    %s68 = sadd.s32 %s67, 1
    %s69 = scalar_select %p66, %s67, %s68
    %p72 = pneg %p66
    %p73 = scmp.eq.s32.totalorder %s19, 1
    %p74 = por %p72, %p73
    %p75 = scmp.ne.s32.totalorder %s67, %s70
    %p76 = scmp.eq.s32.totalorder %s19, 0
    %p77 = por %p75, %p76
    %p78 = scmp.ne.s32.totalorder %s67, %s70
    %p79 = scmp.eq.s32.totalorder %s24, 1
    %p80 = por %p78, %p79
    %p81 = scmp.ne.s32.totalorder %s70, %s71
    %p82 = scmp.eq.s32.totalorder %s24, 0
    %p83 = por %p81, %p82
    %p84 = scmp.ne.s32.totalorder %s70, %s71
    %p85 = scmp.eq.s32.totalorder %s25, 1
    %p86 = por %p84, %p85
    %p88 = scmp.ne.s32.totalorder %s71, %s87
    %p89 = scmp.eq.s32.totalorder %s25, 0
    %p90 = por %p88, %p89
    %s91 = ssub.s32 %s27, %s34
    %p92 = scmp.eq.s32.totalorder %s91, 0
    %s94 = sadd.s32 %s93, 1
    %s95 = scalar_select %p92, %s93, %s94
    %p98 = pneg %p92
    %p99 = scmp.eq.s32.totalorder %s19, 1
    %p100 = por %p98, %p99
    %p101 = scmp.ne.s32.totalorder %s93, %s96
    %p102 = scmp.eq.s32.totalorder %s19, 0
    %p103 = por %p101, %p102
    %p104 = scmp.ne.s32.totalorder %s93, %s96
    %p105 = scmp.eq.s32.totalorder %s24, 1
    %p106 = por %p104, %p105
    %p107 = scmp.ne.s32.totalorder %s96, %s97
    %p108 = scmp.eq.s32.totalorder %s24, 0
    %p109 = por %p107, %p108
    %p110 = scmp.ne.s32.totalorder %s96, %s97
    %p111 = scmp.eq.s32.totalorder %s25, 1
    %p112 = por %p110, %p111
    %p114 = scmp.ne.s32.totalorder %s97, %s113
    %p115 = scmp.eq.s32.totalorder %s25, 0
    %p116 = por %p114, %p115
    %s117 = ssub.s32 %s27, %s34
    %p118 = scmp.eq.s32.totalorder %s117, 0
    %s120 = sadd.s32 %s119, 1
    %s121 = scalar_select %p118, %s119, %s120
    %p124 = pneg %p118
    %p125 = scmp.eq.s32.totalorder %s19, 1
    %p126 = por %p124, %p125
    %p127 = scmp.ne.s32.totalorder %s119, %s122
    %p128 = scmp.eq.s32.totalorder %s19, 0
    %p129 = por %p127, %p128
    %p130 = scmp.ne.s32.totalorder %s119, %s122
    %p131 = scmp.eq.s32.totalorder %s24, 1
    %p132 = por %p130, %p131
    %p133 = scmp.ne.s32.totalorder %s122, %s123
    %p134 = scmp.eq.s32.totalorder %s24, 0
    %p135 = por %p133, %p134
    %p136 = scmp.ne.s32.totalorder %s122, %s123
    %p137 = scmp.eq.s32.totalorder %s25, 1
    %p138 = por %p136, %p137
    %p140 = scmp.ne.s32.totalorder %s123, %s139
    %p141 = scmp.eq.s32.totalorder %s25, 0
    %p142 = por %p140, %p141
    %s143 = ssub.s32 %s27, %s34
    %p144 = scmp.eq.s32.totalorder %s143, 0
    %s146 = sadd.s32 %s145, 1
    %s147 = scalar_select %p144, %s145, %s146
    %p150 = pneg %p144
    %p151 = scmp.eq.s32.totalorder %s19, 1
    %p152 = por %p150, %p151
    %p153 = scmp.ne.s32.totalorder %s145, %s148
    %p154 = scmp.eq.s32.totalorder %s19, 0
    %p155 = por %p153, %p154
    %p156 = scmp.ne.s32.totalorder %s145, %s148
    %p157 = scmp.eq.s32.totalorder %s24, 1
    %p158 = por %p156, %p157
    %p159 = scmp.ne.s32.totalorder %s148, %s149
    %p160 = scmp.eq.s32.totalorder %s24, 0
    %p161 = por %p159, %p160
    %p162 = scmp.ne.s32.totalorder %s148, %s149
    %p163 = scmp.eq.s32.totalorder %s25, 1
    %p164 = por %p162, %p163
    %p166 = scmp.ne.s32.totalorder %s149, %s165
    %p167 = scmp.eq.s32.totalorder %s25, 0
    %p168 = por %p166, %p167
    %s169 = ssub.s32 %s27, %s34
    %p170 = scmp.eq.s32.totalorder %s169, 0
    %s172 = sadd.s32 %s171, 1
    %s173 = scalar_select %p170, %s171, %s172
    %p176 = pneg %p170
    %p177 = scmp.eq.s32.totalorder %s19, 1
    %p178 = por %p176, %p177
    %p179 = scmp.ne.s32.totalorder %s171, %s174
    %p180 = scmp.eq.s32.totalorder %s19, 0
    %p181 = por %p179, %p180
    %p182 = scmp.ne.s32.totalorder %s171, %s174
    %p183 = scmp.eq.s32.totalorder %s24, 1
    %p184 = por %p182, %p183
    %p185 = scmp.ne.s32.totalorder %s174, %s175
    %p186 = scmp.eq.s32.totalorder %s24, 0
    %p187 = por %p185, %p186
    %p188 = scmp.ne.s32.totalorder %s174, %s175
    %p189 = scmp.eq.s32.totalorder %s25, 1
    %p190 = por %p188, %p189
    %p192 = scmp.ne.s32.totalorder %s175, %s191
    %p193 = scmp.eq.s32.totalorder %s25, 0
    %p194 = por %p192, %p193
    %s195 = ssub.s32 %s27, %s34
    %p196 = scmp.eq.s32.totalorder %s195, 0
    %s198 = sadd.s32 %s197, 1
    %s199 = scalar_select %p196, %s197, %s198
    %p202 = pneg %p196
    %p203 = scmp.eq.s32.totalorder %s19, 1
    %p204 = por %p202, %p203
    %p205 = scmp.ne.s32.totalorder %s197, %s200
    %p206 = scmp.eq.s32.totalorder %s19, 0
    %p207 = por %p205, %p206
    %p208 = scmp.ne.s32.totalorder %s197, %s200
    %p209 = scmp.eq.s32.totalorder %s24, 1
    %p210 = por %p208, %p209
    %p211 = scmp.ne.s32.totalorder %s200, %s201
    %p212 = scmp.eq.s32.totalorder %s24, 0
    %p213 = por %p211, %p212
    %p214 = scmp.ne.s32.totalorder %s200, %s201
    %p215 = scmp.eq.s32.totalorder %s25, 1
    %p216 = por %p214, %p215
    %p218 = scmp.ne.s32.totalorder %s201, %s217
    %p219 = scmp.eq.s32.totalorder %s25, 0
    %p220 = por %p218, %p219
    %s221 = ssub.s32 %s27, %s34
    %p222 = scmp.eq.s32.totalorder %s221, 0
    %s224 = sadd.s32 %s223, 1
    %s225 = scalar_select %p222, %s223, %s224
    %p228 = pneg %p222
    %p229 = scmp.eq.s32.totalorder %s19, 1
    %p230 = por %p228, %p229
    %p231 = scmp.ne.s32.totalorder %s223, %s226
    %p232 = scmp.eq.s32.totalorder %s19, 0
    %p233 = por %p231, %p232
    %p234 = scmp.ne.s32.totalorder %s223, %s226
    %p235 = scmp.eq.s32.totalorder %s24, 1
    %p236 = por %p234, %p235
    %p237 = scmp.ne.s32.totalorder %s226, %s227
    %p238 = scmp.eq.s32.totalorder %s24, 0
    %p239 = por %p237, %p238
    %p240 = scmp.ne.s32.totalorder %s226, %s227
    %p241 = scmp.eq.s32.totalorder %s25, 1
    %p242 = por %p240, %p241
    %p244 = scmp.ne.s32.totalorder %s227, %s243
    %p245 = scmp.eq.s32.totalorder %s25, 0
    %p246 = por %p244, %p245
    %s247 = ssub.s32 %s27, %s34
    %p248 = scmp.eq.s32.totalorder %s247, 0
    %s250 = sadd.s32 %s249, 1
    %s251 = scalar_select %p248, %s249, %s250
    %p254 = pneg %p248
    %p255 = scmp.eq.s32.totalorder %s19, 1
    %p256 = por %p254, %p255
    %p257 = scmp.ne.s32.totalorder %s249, %s252
    %p258 = scmp.eq.s32.totalorder %s19, 0
    %p259 = por %p257, %p258
    %p260 = scmp.ne.s32.totalorder %s249, %s252
    %p261 = scmp.eq.s32.totalorder %s24, 1
    %p262 = por %p260, %p261
    %p263 = scmp.ne.s32.totalorder %s252, %s253
    %p264 = scmp.eq.s32.totalorder %s24, 0
    %p265 = por %p263, %p264
    %p266 = scmp.ne.s32.totalorder %s252, %s253
    %p267 = scmp.eq.s32.totalorder %s25, 1
    %p268 = por %p266, %p267
    %p270 = scmp.ne.s32.totalorder %s253, %s269
    %p271 = scmp.eq.s32.totalorder %s25, 0
    %p272 = por %p270, %p271
    %s273 = ssub.s32 %s27, %s34
    %p274 = scmp.eq.s32.totalorder %s273, 0
    %s276 = sadd.s32 %s275, 1
    %s277 = scalar_select %p274, %s275, %s276
    %p280 = pneg %p274
    %p281 = scmp.eq.s32.totalorder %s19, 1
    %p282 = por %p280, %p281
    %p283 = scmp.ne.s32.totalorder %s275, %s278
    %p284 = scmp.eq.s32.totalorder %s19, 0
    %p285 = por %p283, %p284
    %p286 = scmp.ne.s32.totalorder %s275, %s278
    %p287 = scmp.eq.s32.totalorder %s24, 1
    %p288 = por %p286, %p287
    %p289 = scmp.ne.s32.totalorder %s278, %s279
    %p290 = scmp.eq.s32.totalorder %s24, 0
    %p291 = por %p289, %p290
    %p292 = scmp.ne.s32.totalorder %s278, %s279
    %p293 = scmp.eq.s32.totalorder %s25, 1
    %p294 = por %p292, %p293
    %p296 = scmp.ne.s32.totalorder %s279, %s295
    %p297 = scmp.eq.s32.totalorder %s25, 0
    %p298 = por %p296, %p297
    %s299 = ssub.s32 %s27, %s34
    %p300 = scmp.eq.s32.totalorder %s299, 0
    %s302 = sadd.s32 %s301, 1
    %s303 = scalar_select %p300, %s301, %s302
    %p306 = pneg %p300
    %p307 = scmp.eq.s32.totalorder %s19, 1
    %p308 = por %p306, %p307
    %p309 = scmp.ne.s32.totalorder %s301, %s304
    %p310 = scmp.eq.s32.totalorder %s19, 0
    %p311 = por %p309, %p310
    %p312 = scmp.ne.s32.totalorder %s301, %s304
    %p313 = scmp.eq.s32.totalorder %s24, 1
    %p314 = por %p312, %p313
    %p315 = scmp.ne.s32.totalorder %s304, %s305
    %p316 = scmp.eq.s32.totalorder %s24, 0
    %p317 = por %p315, %p316
    %p318 = scmp.ne.s32.totalorder %s304, %s305
    %p319 = scmp.eq.s32.totalorder %s25, 1
    %p320 = por %p318, %p319
    %p322 = scmp.ne.s32.totalorder %s305, %s321
    %p323 = scmp.eq.s32.totalorder %s25, 0
    %p324 = por %p322, %p323
    %s325 = ssub.s32 %s27, %s34
    %p326 = scmp.eq.s32.totalorder %s325, 0
    %s328 = sadd.s32 %s327, 1
    %s329 = scalar_select %p326, %s327, %s328
    %p332 = pneg %p326
    %p333 = scmp.eq.s32.totalorder %s19, 1
    %p334 = por %p332, %p333
    %p335 = scmp.ne.s32.totalorder %s327, %s330
    %p336 = scmp.eq.s32.totalorder %s19, 0
    %p337 = por %p335, %p336
    %p338 = scmp.ne.s32.totalorder %s327, %s330
    %p339 = scmp.eq.s32.totalorder %s24, 1
    %p340 = por %p338, %p339
    %p341 = scmp.ne.s32.totalorder %s330, %s331
    %p342 = scmp.eq.s32.totalorder %s24, 0
    %p343 = por %p341, %p342
    %p344 = scmp.ne.s32.totalorder %s330, %s331
    %p345 = scmp.eq.s32.totalorder %s25, 1
    %p346 = por %p344, %p345
    %p348 = scmp.ne.s32.totalorder %s331, %s347
    %p349 = scmp.eq.s32.totalorder %s25, 0
    %p350 = por %p348, %p349
    %s351 = ssub.s32 %s27, %s34
    %p352 = scmp.eq.s32.totalorder %s351, 0
    %s354 = sadd.s32 %s353, 1
    %s355 = scalar_select %p352, %s353, %s354
    %p358 = pneg %p352
    %p359 = scmp.eq.s32.totalorder %s19, 1
    %p360 = por %p358, %p359
    %p361 = scmp.ne.s32.totalorder %s353, %s356
    %p362 = scmp.eq.s32.totalorder %s19, 0
    %p363 = por %p361, %p362
    %p364 = scmp.ne.s32.totalorder %s353, %s356
    %p365 = scmp.eq.s32.totalorder %s24, 1
    %p366 = por %p364, %p365
    %p367 = scmp.ne.s32.totalorder %s356, %s357
    %p368 = scmp.eq.s32.totalorder %s24, 0
    %p369 = por %p367, %p368
    %p370 = scmp.ne.s32.totalorder %s356, %s357
    %p371 = scmp.eq.s32.totalorder %s25, 1
    %p372 = por %p370, %p371
    %p374 = scmp.ne.s32.totalorder %s357, %s373
    %p375 = scmp.eq.s32.totalorder %s25, 0
    %p376 = por %p374, %p375
    %s377 = ssub.s32 %s26, %s38
    %p378 = scmp.eq.s32.totalorder %s377, 0
    %s380 = sadd.s32 %s379, 1
    %s381 = scalar_select %p378, %s379, %s380
    %p384 = pneg %p378
    %p385 = scmp.eq.s32.totalorder %s19, 1
    %p386 = por %p384, %p385
    %p387 = scmp.ne.s32.totalorder %s379, %s382
    %p388 = scmp.eq.s32.totalorder %s19, 0
    %p389 = por %p387, %p388
    %p390 = scmp.ne.s32.totalorder %s379, %s382
    %p391 = scmp.eq.s32.totalorder %s24, 1
    %p392 = por %p390, %p391
    %p393 = scmp.ne.s32.totalorder %s382, %s383
    %p394 = scmp.eq.s32.totalorder %s24, 0
    %p395 = por %p393, %p394
    %p396 = scmp.ne.s32.totalorder %s382, %s383
    %p397 = scmp.eq.s32.totalorder %s25, 1
    %p398 = por %p396, %p397
    %p400 = scmp.ne.s32.totalorder %s383, %s399
    %p401 = scmp.eq.s32.totalorder %s25, 0
    %p402 = por %p400, %p401
    %p403 = scmp.le.s32.totalorder 1, %s19
    %p404 = scmp.lt.s32.totalorder %s19, 3
    %p405 = pnand %p403, %p404
    %p406 = pneg %p405
    // Predicated region
    $region9: #{vision_transformer_forward.4} parent=5 // pred_check
      _
    $region10: #{vision_transformer_forward.4} parent=5 // pred_check_branch
      %408 = sbr.rel (%p405) target = $region12
    $region11: #{vision_transformer_forward.4} parent=5 // pred_region
      %s409 = ssub.s32 %s19, 1
      // Predicated region
      $region13: #{vision_transformer_forward.4} parent=11 // pred_check
        %p410 = pneg %p57
      $region14: #{vision_transformer_forward.4} parent=11 // pred_check_branch
        %412 = sbr.rel (%p410) target = $region16
      $region15: #{vision_transformer_forward.4} parent=11 // pred_region
        %s413 = smul.u32 2, %s28
        %p414 = scmp.lt.s32.totalorder %s413, 1
        %s415 = scalar_select %p414, %s413, 1
        %s416 = smul.addr %s415, 4
        %s417 = smul.addr %s416, 8
        %s418 = scalar_lea.vmem %s0, %s417
        %s419 = smul.u32 2, %s28
      $region16: #{vision_transformer_forward.4} parent=11 // pred_fallthru
        _
    $region12: #{vision_transformer_forward.4} parent=5 // pred_fallthru
      _
    %p420 = scmp.lt.s32.totalorder %s19, 2
    // Predicated region
    $region17: #{vision_transformer_forward.4} parent=5 // pred_check
      %p421 = pneg %p420
    $region18: #{vision_transformer_forward.4} parent=5 // pred_check_branch
      %423 = sbr.rel (%p421) target = $region20
    $region19: #{vision_transformer_forward.4} parent=5 // pred_region
      // Predicated region
      $region21: #{vision_transformer_forward.4} parent=19 // pred_check
        %p424 = pneg %p77
      $region22: #{vision_transformer_forward.4} parent=19 // pred_check_branch
        %426 = sbr.rel (%p424) target = $region24
      $region23: #{vision_transformer_forward.4} parent=19 // pred_region
        %p427 = scmp.lt.s32.totalorder %s27, 1
        %s428 = scalar_select %p427, %s27, 1
        %s429 = scalar_lea.vmem %s1, %s428
      $region24: #{vision_transformer_forward.4} parent=19 // pred_fallthru
        _
      // Predicated region
      $region25: #{vision_transformer_forward.4} parent=19 // pred_check
        %p430 = pneg %p103
      $region26: #{vision_transformer_forward.4} parent=19 // pred_check_branch
        %432 = sbr.rel (%p430) target = $region28
      $region27: #{vision_transformer_forward.4} parent=19 // pred_region
        %p433 = scmp.lt.s32.totalorder %s27, 1
        %s434 = scalar_select %p433, %s27, 1
        %s435 = scalar_lea.vmem %s2, %s434
      $region28: #{vision_transformer_forward.4} parent=19 // pred_fallthru
        _
      // Predicated region
      $region29: #{vision_transformer_forward.4} parent=19 // pred_check
        %p436 = pneg %p129
      $region30: #{vision_transformer_forward.4} parent=19 // pred_check_branch
        %438 = sbr.rel (%p436) target = $region32
      $region31: #{vision_transformer_forward.4} parent=19 // pred_region
        %p439 = scmp.lt.s32.totalorder %s27, 1
        %s440 = scalar_select %p439, %s27, 1
        %s441 = smul.addr %s440, 4
        %s442 = smul.addr %s441, 4
        %s443 = scalar_lea.vmem %s3, %s442
      $region32: #{vision_transformer_forward.4} parent=19 // pred_fallthru
        _
      // Predicated region
      $region33: #{vision_transformer_forward.4} parent=19 // pred_check
        %p444 = pneg %p155
      $region34: #{vision_transformer_forward.4} parent=19 // pred_check_branch
        %446 = sbr.rel (%p444) target = $region36
      $region35: #{vision_transformer_forward.4} parent=19 // pred_region
        %p447 = scmp.lt.s32.totalorder %s27, 1
        %s448 = scalar_select %p447, %s27, 1
        %s449 = scalar_lea.vmem %s4, %s448
      $region36: #{vision_transformer_forward.4} parent=19 // pred_fallthru
        _
      // Predicated region
      $region37: #{vision_transformer_forward.4} parent=19 // pred_check
        %p450 = pneg %p181
      $region38: #{vision_transformer_forward.4} parent=19 // pred_check_branch
        %452 = sbr.rel (%p450) target = $region40
      $region39: #{vision_transformer_forward.4} parent=19 // pred_region
        %p453 = scmp.lt.s32.totalorder %s27, 1
        %s454 = scalar_select %p453, %s27, 1
        %s455 = smul.addr %s454, 4
        %s456 = smul.addr %s455, 4
        %s457 = scalar_lea.vmem %s5, %s456
      $region40: #{vision_transformer_forward.4} parent=19 // pred_fallthru
        _
      // Predicated region
      $region41: #{vision_transformer_forward.4} parent=19 // pred_check
        %p458 = pneg %p207
      $region42: #{vision_transformer_forward.4} parent=19 // pred_check_branch
        %460 = sbr.rel (%p458) target = $region44
      $region43: #{vision_transformer_forward.4} parent=19 // pred_region
        %p461 = scmp.lt.s32.totalorder %s27, 1
        %s462 = scalar_select %p461, %s27, 1
        %s463 = scalar_lea.vmem %s6, %s462
      $region44: #{vision_transformer_forward.4} parent=19 // pred_fallthru
        _
      // Predicated region
      $region45: #{vision_transformer_forward.4} parent=19 // pred_check
        %p464 = pneg %p233
      $region46: #{vision_transformer_forward.4} parent=19 // pred_check_branch
        %466 = sbr.rel (%p464) target = $region48
      $region47: #{vision_transformer_forward.4} parent=19 // pred_region
        %p467 = scmp.lt.s32.totalorder %s27, 1
        %s468 = scalar_select %p467, %s27, 1
        %s469 = scalar_lea.vmem %s7, %s468
      $region48: #{vision_transformer_forward.4} parent=19 // pred_fallthru
        _
      // Predicated region
      $region49: #{vision_transformer_forward.4} parent=19 // pred_check
        %p470 = pneg %p259
      $region50: #{vision_transformer_forward.4} parent=19 // pred_check_branch
        %472 = sbr.rel (%p470) target = $region52
      $region51: #{vision_transformer_forward.4} parent=19 // pred_region
        %p473 = scmp.lt.s32.totalorder %s27, 1
        %s474 = scalar_select %p473, %s27, 1
        %s475 = scalar_lea.vmem %s8, %s474
      $region52: #{vision_transformer_forward.4} parent=19 // pred_fallthru
        _
      // Predicated region
      $region53: #{vision_transformer_forward.4} parent=19 // pred_check
        %p476 = pneg %p285
      $region54: #{vision_transformer_forward.4} parent=19 // pred_check_branch
        %478 = sbr.rel (%p476) target = $region56
      $region55: #{vision_transformer_forward.4} parent=19 // pred_region
        %p479 = scmp.lt.s32.totalorder %s27, 1
        %s480 = scalar_select %p479, %s27, 1
        %s481 = smul.addr %s480, 4
        %s482 = smul.addr %s481, 4
        %s483 = scalar_lea.vmem %s9, %s482
      $region56: #{vision_transformer_forward.4} parent=19 // pred_fallthru
        _
      // Predicated region
      $region57: #{vision_transformer_forward.4} parent=19 // pred_check
        %p484 = pneg %p311
      $region58: #{vision_transformer_forward.4} parent=19 // pred_check_branch
        %486 = sbr.rel (%p484) target = $region60
      $region59: #{vision_transformer_forward.4} parent=19 // pred_region
        %p487 = scmp.lt.s32.totalorder %s27, 1
        %s488 = scalar_select %p487, %s27, 1
        %s489 = scalar_lea.vmem %s10, %s488
      $region60: #{vision_transformer_forward.4} parent=19 // pred_fallthru
        _
      // Predicated region
      $region61: #{vision_transformer_forward.4} parent=19 // pred_check
        %p490 = pneg %p337
      $region62: #{vision_transformer_forward.4} parent=19 // pred_check_branch
        %492 = sbr.rel (%p490) target = $region64
      $region63: #{vision_transformer_forward.4} parent=19 // pred_region
        %p493 = scmp.lt.s32.totalorder %s27, 1
        %s494 = scalar_select %p493, %s27, 1
        %s495 = smul.addr %s494, 16
        %s496 = smul.addr %s495, 4
        %s497 = scalar_lea.vmem %s11, %s496
      $region64: #{vision_transformer_forward.4} parent=19 // pred_fallthru
        _
      // Predicated region
      $region65: #{vision_transformer_forward.4} parent=19 // pred_check
        %p498 = pneg %p363
      $region66: #{vision_transformer_forward.4} parent=19 // pred_check_branch
        %500 = sbr.rel (%p498) target = $region68
      $region67: #{vision_transformer_forward.4} parent=19 // pred_region
        %p501 = scmp.lt.s32.totalorder %s27, 1
        %s502 = scalar_select %p501, %s27, 1
        %s503 = scalar_lea.vmem %s12, %s502
      $region68: #{vision_transformer_forward.4} parent=19 // pred_fallthru
        _
    $region20: #{vision_transformer_forward.4} parent=5 // pred_fallthru
      _
    %p504 = scmp.le.s32.totalorder 1, %s19
    %p505 = scmp.lt.s32.totalorder %s19, 3
    %p506 = pnand %p504, %p505
    %p507 = pneg %p506
    // Predicated region
    $region69: #{vision_transformer_forward.4} parent=5 // pred_check
      _
    $region70: #{vision_transformer_forward.4} parent=5 // pred_check_branch
      %509 = sbr.rel (%p506) target = $region72
    $region71: #{vision_transformer_forward.4} parent=5 // pred_region
      %s510 = ssub.s32 %s19, 1
      %s511 = smul.u32 2, %s28
      %p512 = scmp.lt.s32.totalorder %s511, 1
      %s513 = scalar_select %p512, %s511, 1
      %s514 = smul.addr %s513, 4
      %s515 = smul.addr %s514, 8
      %s516 = scalar_lea.vmem %s0, %s515
      %p517 = pneg %p57
      %p518 = pneg %p54
      %p519 = scmp.lt.s32.totalorder %s29, 1
      %s520 = scalar_select %p519, %s29, 1
      %s521 = scalar_lea.vmem %s1, %s520
      %p522 = pneg %p83
      %p523 = pneg %p80
      %p524 = scmp.lt.s32.totalorder %s29, 1
      %s525 = scalar_select %p524, %s29, 1
      %s526 = scalar_lea.vmem %s2, %s525
      %p527 = pneg %p109
      %p528 = pneg %p106
      %p529 = scmp.lt.s32.totalorder %s29, 1
      %s530 = scalar_select %p529, %s29, 1
      %s531 = smul.addr %s530, 4
      %s532 = smul.addr %s531, 4
      %s533 = scalar_lea.vmem %s3, %s532
      %p534 = pneg %p135
      %p535 = pneg %p132
      %p536 = scmp.lt.s32.totalorder %s29, 1
      %s537 = scalar_select %p536, %s29, 1
      %s538 = scalar_lea.vmem %s4, %s537
      %p539 = pneg %p161
      %p540 = pneg %p158
      %p541 = scmp.lt.s32.totalorder %s29, 1
      %s542 = scalar_select %p541, %s29, 1
      %s543 = smul.addr %s542, 4
      %s544 = smul.addr %s543, 4
      %s545 = scalar_lea.vmem %s5, %s544
      %p546 = pneg %p187
      %p547 = pneg %p184
      %p548 = scmp.lt.s32.totalorder %s29, 1
      %s549 = scalar_select %p548, %s29, 1
      %s550 = scalar_lea.vmem %s6, %s549
      %p551 = pneg %p213
      %p552 = pneg %p210
      %p553 = scmp.lt.s32.totalorder %s29, 1
      %s554 = scalar_select %p553, %s29, 1
      %s555 = scalar_lea.vmem %s7, %s554
      %p556 = pneg %p239
      %p557 = pneg %p236
      %p558 = scmp.lt.s32.totalorder %s29, 1
      %s559 = scalar_select %p558, %s29, 1
      %s560 = scalar_lea.vmem %s8, %s559
      %p561 = pneg %p265
      %p562 = pneg %p262
      %p563 = scmp.lt.s32.totalorder %s29, 1
      %s564 = scalar_select %p563, %s29, 1
      %s565 = smul.addr %s564, 4
      %s566 = smul.addr %s565, 4
      %s567 = scalar_lea.vmem %s9, %s566
      %p568 = pneg %p291
      %p569 = pneg %p288
      %p570 = scmp.lt.s32.totalorder %s29, 1
      %s571 = scalar_select %p570, %s29, 1
      %s572 = scalar_lea.vmem %s10, %s571
      %p573 = pneg %p317
      %p574 = pneg %p314
      %p575 = scmp.lt.s32.totalorder %s29, 1
      %s576 = scalar_select %p575, %s29, 1
      %s577 = smul.addr %s576, 16
      %s578 = smul.addr %s577, 4
      %s579 = scalar_lea.vmem %s11, %s578
      %p580 = pneg %p343
      %p581 = pneg %p340
      %p582 = scmp.lt.s32.totalorder %s29, 1
      %s583 = scalar_select %p582, %s29, 1
      %s584 = scalar_lea.vmem %s12, %s583
      %p585 = pneg %p369
      %p586 = pneg %p366
      %p587 = pneg %p395
      %p588 = pneg %p392
      %s589 = smul.u32 2, %s28
      %p590 = scmp.lt.s32.totalorder %s589, 1
      %s591 = scalar_select %p590, %s589, 1
      %s592 = smul.addr %s591, 4
      %s593 = smul.addr %s592, 8
      %s594 = scalar_lea.vmem %s13, %s593
      %s595 = smul.u32 2, %s28
      %p596 = scmp.lt.s32.totalorder %s595, 1
      %s597 = scalar_select %p596, %s595, 1
      %s598 = smul.addr %s597, 4
      %s599 = smul.addr %s598, 8
      %s600 = scalar_lea.vmem %s0, %s599
      %s601 = smul.u32 2, %s28
      %p602 = scmp.lt.s32.totalorder %s29, 1
      %s603 = scalar_select %p602, %s29, 1
      %s604 = scalar_lea.vmem %s1, %s603
      %p605 = scmp.lt.s32.totalorder %s29, 1
      %s606 = scalar_select %p605, %s29, 1
      %s607 = scalar_lea.vmem %s2, %s606
      %p608 = scmp.lt.s32.totalorder %s29, 1
      %s609 = scalar_select %p608, %s29, 1
      %s610 = smul.addr %s609, 4
      %s611 = smul.addr %s610, 4
      %s612 = scalar_lea.vmem %s3, %s611
      %p613 = scmp.lt.s32.totalorder %s29, 1
      %s614 = scalar_select %p613, %s29, 1
      %s615 = scalar_lea.vmem %s4, %s614
      %p616 = scmp.lt.s32.totalorder %s29, 1
      %s617 = scalar_select %p616, %s29, 1
      %s618 = smul.addr %s617, 4
      %s619 = smul.addr %s618, 4
      %s620 = scalar_lea.vmem %s5, %s619
      %p621 = scmp.lt.s32.totalorder %s29, 1
      %s622 = scalar_select %p621, %s29, 1
      %s623 = scalar_lea.vmem %s6, %s622
      %p624 = scmp.lt.s32.totalorder %s29, 1
      %s625 = scalar_select %p624, %s29, 1
      %s626 = scalar_lea.vmem %s7, %s625
      %p627 = scmp.lt.s32.totalorder %s29, 1
      %s628 = scalar_select %p627, %s29, 1
      %s629 = scalar_lea.vmem %s8, %s628
      %p630 = scmp.lt.s32.totalorder %s29, 1
      %s631 = scalar_select %p630, %s29, 1
      %s632 = smul.addr %s631, 4
      %s633 = smul.addr %s632, 4
      %s634 = scalar_lea.vmem %s9, %s633
      %p635 = scmp.lt.s32.totalorder %s29, 1
      %s636 = scalar_select %p635, %s29, 1
      %s637 = scalar_lea.vmem %s10, %s636
      %p638 = scmp.lt.s32.totalorder %s29, 1
      %s639 = scalar_select %p638, %s29, 1
      %s640 = smul.addr %s639, 16
      %s641 = smul.addr %s640, 4
      %s642 = scalar_lea.vmem %s11, %s641
      %p643 = scmp.lt.s32.totalorder %s29, 1
      %s644 = scalar_select %p643, %s29, 1
      %s645 = scalar_lea.vmem %s12, %s644
      %s646 = smul.u32 2, %s28
      %p647 = scmp.lt.s32.totalorder %s646, 1
      %s648 = scalar_select %p647, %s646, 1
      %s649 = smul.addr %s648, 4
      %s650 = smul.addr %s649, 8
      %s651 = scalar_lea.vmem %s13, %s650
      %s652 = smul.u32 2, %s28
      %p654 = scmp.eq.s32.totalorder %s29, 0
      // Predicated region
      $region73: #{vision_transformer_forward.4} parent=71 // pred_check
        %p655 = pneg %p654
      $region74: #{vision_transformer_forward.4} parent=71 // pred_check_branch
        %657 = sbr.rel (%p655) target = $region76
      $region75: #{vision_transformer_forward.4} parent=71 // pred_region
        %v658 = vld [vmem:[%s600] sm:$0xff]
        %v659 = vld [vmem:[%s600 + $0x8] sm:$0xff]
        %v660 = vld [vmem:[%s600 + $0x10] sm:$0xff]
        %v661 = vld [vmem:[%s600 + $0x18] sm:$0xff]
        %v662 = vld [vmem:[%s600 + $0x20] sm:$0xff]
        %v663 = vld [vmem:[%s600 + $0x28] sm:$0xff]
        %v664 = vld [vmem:[%s600 + $0x30] sm:$0xff]
        %v665 = vld [vmem:[%s600 + $0x38] sm:$0xff]
        %vm666 = vcmask 261120
        %667 = vst.msk [vmem:[#allocation2] sm:$0xff] %vm666, %v658
        %668 = vst.msk [vmem:[#allocation2 + $0x8] sm:$0xff] %vm666, %v659
        %669 = vst.msk [vmem:[#allocation2 + $0x10] sm:$0xff] %vm666, %v660
        %670 = vst.msk [vmem:[#allocation2 + $0x18] sm:$0xff] %vm666, %v661
        %671 = vst.msk [vmem:[#allocation2 + $0x20] sm:$0xff] %vm666, %v662
        %672 = vst.msk [vmem:[#allocation2 + $0x28] sm:$0xff] %vm666, %v663
        %673 = vst.msk [vmem:[#allocation2 + $0x30] sm:$0xff] %vm666, %v664
        %674 = vst.msk [vmem:[#allocation2 + $0x38] sm:$0xff] %vm666, %v665
      $region76: #{vision_transformer_forward.4} parent=71 // pred_fallthru
        _
      %v675 = vld [vmem:[#allocation2] sm:$0xff]
      %v676 = vld [vmem:[#allocation2 + $0x8] sm:$0xff]
      %v677 = vld [vmem:[#allocation2 + $0x10] sm:$0xff]
      %v678 = vld [vmem:[#allocation2 + $0x18] sm:$0xff]
      %v679 = vld [vmem:[#allocation2 + $0x20] sm:$0xff]
      %v680 = vld [vmem:[#allocation2 + $0x28] sm:$0xff]
      %v681 = vld [vmem:[#allocation2 + $0x30] sm:$0xff]
      %v682 = vld [vmem:[#allocation2 + $0x38] sm:$0xff]
      %v683 = vld [vmem:[%s604] sm:$0x1]
      %v684 = vld [vmem:[%s607] sm:$0x1]
      %vm685 = vcmask 261120
      %v686 = vsel %vm685, %v675, 0.0
      %687 = vadd.xlane.f32.xlu0 %v686
      %v688 = vpop.xlane.xlu0 %687
      %v689 = vsel %vm685, %v676, 0.0
      %690 = vadd.xlane.f32.xlu0 %v689
      %v691 = vpop.xlane.xlu0 %690
      %v692 = vsel %vm685, %v677, 0.0
      %693 = vadd.xlane.f32.xlu0 %v692
      %v694 = vpop.xlane.xlu0 %693
      %v695 = vsel %vm685, %v678, 0.0
      %696 = vadd.xlane.f32.xlu0 %v695
      %v697 = vpop.xlane.xlu0 %696
      %v698 = vsel %vm685, %v679, 0.0
      %699 = vadd.xlane.f32.xlu0 %v698
      %v700 = vpop.xlane.xlu0 %699
      %v701 = vsel %vm685, %v680, 0.0
      %702 = vadd.xlane.f32.xlu0 %v701
      %v703 = vpop.xlane.xlu0 %702
      %v704 = vsel %vm685, %v681, 0.0
      %705 = vadd.xlane.f32.xlu0 %v704
      %v706 = vpop.xlane.xlu0 %705
      %v707 = vsel %vm685, %v682, 0.0
      %708 = vadd.xlane.f32.xlu0 %v707
      %v709 = vpop.xlane.xlu0 %708
      %v710 = vrcp.pop 32.0
      %v711 = vmul.f32 %v688, %v710
      %v712 = vmul.f32 %v691, %v710
      %v713 = vmul.f32 %v694, %v710
      %v714 = vmul.f32 %v697, %v710
      %v715 = vmul.f32 %v700, %v710
      %v716 = vmul.f32 %v703, %v710
      %v717 = vmul.f32 %v706, %v710
      %v718 = vmul.f32 %v709, %v710
      %v719 = vsub.f32 %v675, %v711
      %v720 = vsub.f32 %v676, %v712
      %v721 = vsub.f32 %v677, %v713
      %v722 = vsub.f32 %v678, %v714
      %v723 = vsub.f32 %v679, %v715
      %v724 = vsub.f32 %v680, %v716
      %v725 = vsub.f32 %v681, %v717
      %v726 = vsub.f32 %v682, %v718
      %v727 = vmul.f32 %v719, %v719
      %v728 = vmul.f32 %v720, %v720
      %v729 = vmul.f32 %v721, %v721
      %v730 = vmul.f32 %v722, %v722
      %v731 = vmul.f32 %v723, %v723
      %v732 = vmul.f32 %v724, %v724
      %v733 = vmul.f32 %v725, %v725
      %v734 = vmul.f32 %v726, %v726
      %v735 = vsel %vm685, %v727, 0.0
      %736 = vadd.xlane.f32.xlu0 %v735
      %v737 = vpop.xlane.xlu0 %736
      %v738 = vsel %vm685, %v728, 0.0
      %739 = vadd.xlane.f32.xlu0 %v738
      %v740 = vpop.xlane.xlu0 %739
      %v741 = vsel %vm685, %v729, 0.0
      %742 = vadd.xlane.f32.xlu0 %v741
      %v743 = vpop.xlane.xlu0 %742
      %v744 = vsel %vm685, %v730, 0.0
      %745 = vadd.xlane.f32.xlu0 %v744
      %v746 = vpop.xlane.xlu0 %745
      %v747 = vsel %vm685, %v731, 0.0
      %748 = vadd.xlane.f32.xlu0 %v747
      %v749 = vpop.xlane.xlu0 %748
      %v750 = vsel %vm685, %v732, 0.0
      %751 = vadd.xlane.f32.xlu0 %v750
      %v752 = vpop.xlane.xlu0 %751
      %v753 = vsel %vm685, %v733, 0.0
      %754 = vadd.xlane.f32.xlu0 %v753
      %v755 = vpop.xlane.xlu0 %754
      %v756 = vsel %vm685, %v734, 0.0
      %757 = vadd.xlane.f32.xlu0 %v756
      %v758 = vpop.xlane.xlu0 %757
      %v759 = vmul.f32 %v737, %v710
      %v760 = vmul.f32 %v740, %v710
      %v761 = vmul.f32 %v743, %v710
      %v762 = vmul.f32 %v746, %v710
      %v763 = vmul.f32 %v749, %v710
      %v764 = vmul.f32 %v752, %v710
      %v765 = vmul.f32 %v755, %v710
      %v766 = vmul.f32 %v758, %v710
      %v767 = vadd.f32 %v759, 1e-05
      %v768 = vadd.f32 %v760, 1e-05
      %v769 = vadd.f32 %v761, 1e-05
      %v770 = vadd.f32 %v762, 1e-05
      %v771 = vadd.f32 %v763, 1e-05
      %v772 = vadd.f32 %v764, 1e-05
      %v773 = vadd.f32 %v765, 1e-05
      %v774 = vadd.f32 %v766, 1e-05
      %v775 = vrsqrt.pop %v767
      %v776 = vrsqrt.pop %v768
      %v777 = vrsqrt.pop %v769
      %v778 = vrsqrt.pop %v770
      %v779 = vrsqrt.pop %v771
      %v780 = vrsqrt.pop %v772
      %v781 = vrsqrt.pop %v773
      %v782 = vrsqrt.pop %v774
      %v783 = vmul.f32 %v719, %v775
      %v784 = vmul.f32 %v720, %v776
      %v785 = vmul.f32 %v721, %v777
      %v786 = vmul.f32 %v722, %v778
      %v787 = vmul.f32 %v723, %v779
      %v788 = vmul.f32 %v724, %v780
      %v789 = vmul.f32 %v725, %v781
      %v790 = vmul.f32 %v726, %v782
      %v792 = vlaneseq
      %v793 = vshrl.u32 %v792, 7
      %v794 = vsub.s32 0, %v793
      %v795 = vrot.slane %v683, %v794
      %v797 = vmul.f32 %v783, %v795
      %v798 = vmul.f32 %v784, %v795
      %v799 = vmul.f32 %v785, %v795
      %v800 = vmul.f32 %v786, %v795
      %v801 = vmul.f32 %v787, %v795
      %v802 = vmul.f32 %v788, %v795
      %v803 = vmul.f32 %v789, %v795
      %v804 = vmul.f32 %v790, %v795
      %v806 = vlaneseq
      %v807 = vshrl.u32 %v806, 7
      %v808 = vsub.s32 0, %v807
      %v809 = vrot.slane %v684, %v808
      %v811 = vadd.f32 %v797, %v809
      %v812 = vadd.f32 %v798, %v809
      %v813 = vadd.f32 %v799, %v809
      %v814 = vadd.f32 %v800, %v809
      %v815 = vadd.f32 %v801, %v809
      %v816 = vadd.f32 %v802, %v809
      %v817 = vadd.f32 %v803, %v809
      %v818 = vadd.f32 %v804, %v809
      %v819 = vpack.c.bf16 %v812, %v811
      %v820 = vpack.c.bf16 %v814, %v813
      %v821 = vpack.c.bf16 %v816, %v815
      %v822 = vpack.c.bf16 %v818, %v817
      %v823 = vld [vmem:[%s612] sm:$0xf]
      %v824 = vld [vmem:[%s612 + $0x4] sm:$0xf]
      %v825 = vld [vmem:[%s612 + $0x8] sm:$0xf]
      %v826 = vld [vmem:[%s612 + $0xc] sm:$0xf]
      %v827 = vld [vmem:[%s615] sm:$0x1]
      %v829 = vlaneseq
      %v830 = vshrl.u32 %v829, 7
      %v831 = vsub.s32 0, %v830
      %v832 = vrot.slane %v827, %v831
      %v838 = vunpack.c.l.b16 %v823
      %v839 = vunpack.c.l.b16 %v824
      %v840 = vunpack.c.l.b16 %v825
      %v841 = vunpack.c.l.b16 %v826
      %v842 = vpack.c.b16 %v839, %v838
      %v843 = vpack.c.b16 %v841, %v840
      %v847 = vsel %vm685, %v819, 0
      %v850 = vsel %vm685, %v820, 0
      %v853 = vsel %vm685, %v821, 0
      %v856 = vsel %vm685, %v822, 0
      %858 = vmatprep.subr.bf16.mxu0 0
      %859 = vmatpush1.bf16.msra.mxu0 %v842
      %860 = vmatprep.subr.bf16.mxu0 0
      %861 = vmatpush1.bf16.msra.mxu0 %v843
      %862 = vmatprep.subr.bf16.mxu0 0
      %863 = vmatpush1.bf16.msra.mxu0 0
      %864 = vmatprep.subr.bf16.mxu0 0
      %865 = vmatpush1.bf16.msra.mxu0 0
      %866 = vmatprep.subr.bf16.mxu0 0
      %867 = vmatpush1.bf16.msra.mxu0 0
      %868 = vmatprep.subr.bf16.mxu0 0
      %869 = vmatpush1.bf16.msra.mxu0 0
      %870 = vmatprep.subr.bf16.mxu0 0
      %871 = vmatpush1.bf16.msra.mxu0 0
      %872 = vmatprep.subr.bf16.mxu0 0
      %873 = vmatpush1.bf16.msra.mxu0 0
      %874 = vmatprep.subr.bf16.mxu0 0
      %875 = vmatpush1.bf16.msra.mxu0 0
      %876 = vmatprep.subr.bf16.mxu0 0
      %877 = vmatpush1.bf16.msra.mxu0 0
      %878 = vmatprep.subr.bf16.mxu0 0
      %879 = vmatpush1.bf16.msra.mxu0 0
      %880 = vmatprep.subr.bf16.mxu0 0
      %881 = vmatpush1.bf16.msra.mxu0 0
      %882 = vmatprep.subr.bf16.mxu0 0
      %883 = vmatpush1.bf16.msra.mxu0 0
      %884 = vmatprep.subr.bf16.mxu0 0
      %885 = vmatpush1.bf16.msra.mxu0 0
      %886 = vmatprep.subr.bf16.mxu0 0
      %887 = vmatpush1.bf16.msra.mxu0 0
      %888 = vmatprep.subr.bf16.mxu0 0
      %889 = vmatpush1.bf16.msra.mxu0 0
      %890 = vmatprep.mubr.bf16.mxu0 0
      %891 = vmatmul.mubr.bf16.gmra.mrb[0].mxu0 %v847
      %v892 = vpop.f32.mrb[0].mxu0
      %v893 = vadd.f32 %v832, %v892
      %v894 = vpop.f32.mrb[0].mxu0
      %v895 = vpop.f32.mrb[0].mxu0
      %v896 = vadd.f32 %v832, %v895
      %v897 = vpop.f32.mrb[0].mxu0
      %898 = vmatprep.mubr.bf16.mxu0 0
      %899 = vmatmul.mubr.bf16.gmra.mrb[0].mxu0 %v850
      %v900 = vpop.f32.mrb[0].mxu0
      %v901 = vadd.f32 %v832, %v900
      %v902 = vpop.f32.mrb[0].mxu0
      %v903 = vpop.f32.mrb[0].mxu0
      %v904 = vadd.f32 %v832, %v903
      %v905 = vpop.f32.mrb[0].mxu0
      %906 = vmatprep.mubr.bf16.mxu0 0
      %907 = vmatmul.mubr.bf16.gmra.mrb[0].mxu0 %v853
      %v908 = vpop.f32.mrb[0].mxu0
      %v909 = vadd.f32 %v832, %v908
      %v910 = vpop.f32.mrb[0].mxu0
      %v911 = vpop.f32.mrb[0].mxu0
      %v912 = vadd.f32 %v832, %v911
      %v913 = vpop.f32.mrb[0].mxu0
      %914 = vmatprep.mubr.bf16.mxu0 0
      %915 = vmatmul.mubr.bf16.gmra.mrb[0].mxu0 %v856
      %v916 = vpop.f32.mrb[0].mxu0
      %v917 = vadd.f32 %v832, %v916
      %v918 = vpop.f32.mrb[0].mxu0
      %v919 = vpop.f32.mrb[0].mxu0
      %v920 = vadd.f32 %v832, %v919
      %v921 = vpop.f32.mrb[0].mxu0
      %922 = vdwg.mxu0
      %v923 = vlaneseq
      %v924 = vand.u32 %v923, 127
      %vm925 = vcmp.lt.s32.totalorder %v924, 17
      %v926 = vsel %vm925, 0.0, -1e+30
      %v927 = vpack.c.bf16 %v896, %v893
      %v928 = vpack.c.bf16 %v904, %v901
      %931 = vrot.lane.b32.xlu0 %v927, 96
      %v932 = vpop.permute.xlu0 %931
      %933 = vrot.lane.b32.xlu0 %v928, 96
      %v934 = vpop.permute.xlu0 %933
      %vm935 = vcmask 130048
      %v937 = vsel %vm935, %v927, 0
      %v940 = vsel %vm935, %v928, 0
      %v943 = vsel %vm935, %v932, 0
      %v946 = vsel %vm935, %v934, 0
      %948 = vmatprep.subr.bf16.mxu0 0
      %949 = vmatpush1.bf16.xpose.msra.mxu0 %v943
      %950 = vmatprep.subr.bf16.mxu0 0
      %951 = vmatpush1.bf16.xpose.msra.mxu0 %v946
      %952 = vmatprep.subr.bf16.mxu0 0
      %953 = vmatpush1.bf16.xpose.msra.mxu0 0
      %954 = vmatprep.subr.bf16.mxu0 0
      %955 = vmatpush1.bf16.xpose.msra.mxu0 0
      %956 = vmatprep.subr.bf16.mxu0 0
      %957 = vmatpush1.bf16.xpose.msra.mxu0 0
      %958 = vmatprep.subr.bf16.mxu0 0
      %959 = vmatpush1.bf16.xpose.msra.mxu0 0
      %960 = vmatprep.subr.bf16.mxu0 0
      %961 = vmatpush1.bf16.xpose.msra.mxu0 0
      %962 = vmatprep.subr.bf16.mxu0 0
      %963 = vmatpush1.bf16.xpose.msra.mxu0 0
      %964 = vmatprep.subr.bf16.mxu0 0
      %965 = vmatpush1.bf16.xpose.msra.mxu0 0
      %966 = vmatprep.subr.bf16.mxu0 0
      %967 = vmatpush1.bf16.xpose.msra.mxu0 0
      %968 = vmatprep.subr.bf16.mxu0 0
      %969 = vmatpush1.bf16.xpose.msra.mxu0 0
      %970 = vmatprep.subr.bf16.mxu0 0
      %971 = vmatpush1.bf16.xpose.msra.mxu0 0
      %972 = vmatprep.subr.bf16.mxu0 0
      %973 = vmatpush1.bf16.xpose.msra.mxu0 0
      %974 = vmatprep.subr.bf16.mxu0 0
      %975 = vmatpush1.bf16.xpose.msra.mxu0 0
      %976 = vmatprep.subr.bf16.mxu0 0
      %977 = vmatpush1.bf16.xpose.msra.mxu0 0
      %978 = vmatprep.subr.bf16.mxu0 0
      %979 = vmatpush1.bf16.xpose.msra.mxu0 0
      %980 = vmatprep.mubr.bf16.mxu0 0
      %981 = vmatmul.mubr.bf16.gmra.mrb[0].mxu0 %v937
      %v982 = vpop.f32.mrb[0].mxu0
      %v983 = vadd.f32 %v926, %v982
      %v984 = vpop.f32.mrb[0].mxu0
      %v985 = vpop.f32.mrb[0].mxu0
      %v986 = vadd.f32 %v926, %v985
      %v987 = vpop.f32.mrb[0].mxu0
      %988 = vmatprep.mubr.bf16.mxu0 0
      %989 = vmatmul.mubr.bf16.gmra.mrb[0].mxu0 %v940
      %v990 = vpop.f32.mrb[0].mxu0
      %v991 = vadd.f32 %v926, %v990
      %v992 = vpop.f32.mrb[0].mxu0
      %v993 = vpop.f32.mrb[0].mxu0
      %v994 = vadd.f32 %v926, %v993
      %v995 = vpop.f32.mrb[0].mxu0
      %996 = vdwg.mxu0
      %v997 = vsel %vm685, %v983, -inf
      %998 = vmax.xlane.f32.xlu0 %v997
      %v999 = vpop.xlane.xlu0 %998
      %v1000 = vsel %vm685, %v986, -inf
      %1001 = vmax.xlane.f32.xlu0 %v1000
      %v1002 = vpop.xlane.xlu0 %1001
      %v1003 = vsel %vm685, %v991, -inf
      %1004 = vmax.xlane.f32.xlu0 %v1003
      %v1005 = vpop.xlane.xlu0 %1004
      %v1006 = vsel %vm685, %v994, -inf
      %1007 = vmax.xlane.f32.xlu0 %v1006
      %v1008 = vpop.xlane.xlu0 %1007
      %v1009 = vsub.f32 %v983, %v999
      %v1010 = vsub.f32 %v986, %v1002
      %v1011 = vsub.f32 %v991, %v1005
      %v1012 = vsub.f32 %v994, %v1008
      %v1013 = vmul.f32 %v1009, 1.442695
      %v1014 = vpow.pop %v1013
      %v1015 = vmul.f32 %v1010, 1.442695
      %v1016 = vpow.pop %v1015
      %v1017 = vmul.f32 %v1011, 1.442695
      %v1018 = vpow.pop %v1017
      %v1019 = vmul.f32 %v1012, 1.442695
      %v1020 = vpow.pop %v1019
      %v1021 = vsel %vm685, %v1014, 0.0
      %1022 = vadd.xlane.f32.xlu0 %v1021
      %v1023 = vpop.xlane.xlu0 %1022
      %v1024 = vsel %vm685, %v1016, 0.0
      %1025 = vadd.xlane.f32.xlu0 %v1024
      %v1026 = vpop.xlane.xlu0 %1025
      %v1027 = vsel %vm685, %v1018, 0.0
      %1028 = vadd.xlane.f32.xlu0 %v1027
      %v1029 = vpop.xlane.xlu0 %1028
      %v1030 = vsel %vm685, %v1020, 0.0
      %1031 = vadd.xlane.f32.xlu0 %v1030
      %v1032 = vpop.xlane.xlu0 %1031
      %v1033 = vrcp.pop %v1023
      %v1034 = vrcp.pop %v1026
      %v1035 = vrcp.pop %v1029
      %v1036 = vrcp.pop %v1032
      %v1037 = vmul.f32 %v1014, %v1033
      %v1038 = vmul.f32 %v1016, %v1034
      %v1039 = vmul.f32 %v1018, %v1035
      %v1040 = vmul.f32 %v1020, %v1036
      %v1041 = vpack.c.bf16 %v1038, %v1037
      %v1042 = vpack.c.bf16 %v1040, %v1039
      %1043 = vrot.lane.b32.xlu0 %v927, 64
      %v1044 = vpop.permute.xlu0 %1043
      %1045 = vrot.lane.b32.xlu0 %v928, 64
      %v1046 = vpop.permute.xlu0 %1045
      %v1050 = vsel %vm685, %v1041, 0
      %v1053 = vsel %vm685, %v1042, 0
      %1055 = vmatprep.subr.bf16.mxu0 0
      %1056 = vmatpush1.bf16.msra.mxu0 %v1044
      %1057 = vmatprep.subr.bf16.mxu0 0
      %1058 = vmatpush1.bf16.msra.mxu0 %v1046
      %1059 = vmatprep.subr.bf16.mxu0 0
      %1060 = vmatpush1.bf16.msra.mxu0 0
      %1061 = vmatprep.subr.bf16.mxu0 0
      %1062 = vmatpush1.bf16.msra.mxu0 0
      %1063 = vmatprep.subr.bf16.mxu0 0
      %1064 = vmatpush1.bf16.msra.mxu0 0
      %1065 = vmatprep.subr.bf16.mxu0 0
      %1066 = vmatpush1.bf16.msra.mxu0 0
      %1067 = vmatprep.subr.bf16.mxu0 0
      %1068 = vmatpush1.bf16.msra.mxu0 0
      %1069 = vmatprep.subr.bf16.mxu0 0
      %1070 = vmatpush1.bf16.msra.mxu0 0
      %1071 = vmatprep.subr.bf16.mxu0 0
      %1072 = vmatpush1.bf16.msra.mxu0 0
      %1073 = vmatprep.subr.bf16.mxu0 0
      %1074 = vmatpush1.bf16.msra.mxu0 0
      %1075 = vmatprep.subr.bf16.mxu0 0
      %1076 = vmatpush1.bf16.msra.mxu0 0
      %1077 = vmatprep.subr.bf16.mxu0 0
      %1078 = vmatpush1.bf16.msra.mxu0 0
      %1079 = vmatprep.subr.bf16.mxu0 0
      %1080 = vmatpush1.bf16.msra.mxu0 0
      %1081 = vmatprep.subr.bf16.mxu0 0
      %1082 = vmatpush1.bf16.msra.mxu0 0
      %1083 = vmatprep.subr.bf16.mxu0 0
      %1084 = vmatpush1.bf16.msra.mxu0 0
      %1085 = vmatprep.subr.bf16.mxu0 0
      %1086 = vmatpush1.bf16.msra.mxu0 0
      %1087 = vmatprep.mubr.bf16.mxu0 0
      %1088 = vmatmul.mubr.bf16.gmra.mrb[0].mxu0 %v1050
      %v1089 = vpop.f32.mrb[0].mxu0
      %v1090 = vadd.f32 0.0, %v1089
      %v1091 = vpop.f32.mrb[0].mxu0
      %v1092 = vpop.f32.mrb[0].mxu0
      %v1093 = vadd.f32 0.0, %v1092
      %v1094 = vpop.f32.mrb[0].mxu0
      %1095 = vmatprep.mubr.bf16.mxu0 0
      %1096 = vmatmul.mubr.bf16.gmra.mrb[0].mxu0 %v1053
      %v1097 = vpop.f32.mrb[0].mxu0
      %v1098 = vadd.f32 0.0, %v1097
      %v1099 = vpop.f32.mrb[0].mxu0
      %v1100 = vpop.f32.mrb[0].mxu0
      %v1101 = vadd.f32 0.0, %v1100
      %v1102 = vpop.f32.mrb[0].mxu0
      %1103 = vdwg.mxu0
      %v1104 = vpack.c.bf16 %v1093, %v1090
      %v1105 = vpack.c.bf16 %v1101, %v1098
      %1106 = vst.msk [vmem:[#allocation3] sm:$0xff] %vm935, %v1104
      %1107 = vst.msk [vmem:[#allocation3 + $0x8] sm:$0xff] %vm935, %v1105
      %1108 = vrot.lane.b32.xlu0 %v927, 112
      %v1109 = vpop.permute.xlu0 %1108
      %1110 = vrot.lane.b32.xlu0 %v928, 112
      %v1111 = vpop.permute.xlu0 %1110
      %1112 = vrot.lane.b32.xlu0 %v927, 80
      %v1113 = vpop.permute.xlu0 %1112
      %1114 = vrot.lane.b32.xlu0 %v928, 80
      %v1115 = vpop.permute.xlu0 %1114
      %v1117 = vsel %vm935, %v1109, 0
      %v1120 = vsel %vm935, %v1111, 0
      %v1123 = vsel %vm935, %v1113, 0
      %v1126 = vsel %vm935, %v1115, 0
      %1128 = vmatprep.subr.bf16.mxu0 0
      %1129 = vmatpush1.bf16.xpose.msra.mxu0 %v1123
      %1130 = vmatprep.subr.bf16.mxu0 0
      %1131 = vmatpush1.bf16.xpose.msra.mxu0 %v1126
      %1132 = vmatprep.subr.bf16.mxu0 0
      %1133 = vmatpush1.bf16.xpose.msra.mxu0 0
      %1134 = vmatprep.subr.bf16.mxu0 0
      %1135 = vmatpush1.bf16.xpose.msra.mxu0 0
      %1136 = vmatprep.subr.bf16.mxu0 0
      %1137 = vmatpush1.bf16.xpose.msra.mxu0 0
      %1138 = vmatprep.subr.bf16.mxu0 0
      %1139 = vmatpush1.bf16.xpose.msra.mxu0 0
      %1140 = vmatprep.subr.bf16.mxu0 0
      %1141 = vmatpush1.bf16.xpose.msra.mxu0 0
      %1142 = vmatprep.subr.bf16.mxu0 0
      %1143 = vmatpush1.bf16.xpose.msra.mxu0 0
      %1144 = vmatprep.subr.bf16.mxu0 0
      %1145 = vmatpush1.bf16.xpose.msra.mxu0 0
      %1146 = vmatprep.subr.bf16.mxu0 0
      %1147 = vmatpush1.bf16.xpose.msra.mxu0 0
      %1148 = vmatprep.subr.bf16.mxu0 0
      %1149 = vmatpush1.bf16.xpose.msra.mxu0 0
      %1150 = vmatprep.subr.bf16.mxu0 0
      %1151 = vmatpush1.bf16.xpose.msra.mxu0 0
      %1152 = vmatprep.subr.bf16.mxu0 0
      %1153 = vmatpush1.bf16.xpose.msra.mxu0 0
      %1154 = vmatprep.subr.bf16.mxu0 0
      %1155 = vmatpush1.bf16.xpose.msra.mxu0 0
      %1156 = vmatprep.subr.bf16.mxu0 0
      %1157 = vmatpush1.bf16.xpose.msra.mxu0 0
      %1158 = vmatprep.subr.bf16.mxu0 0
      %1159 = vmatpush1.bf16.xpose.msra.mxu0 0
      %1160 = vmatprep.mubr.bf16.mxu0 0
      %1161 = vmatmul.mubr.bf16.gmra.mrb[0].mxu0 %v1117
      %v1162 = vpop.f32.mrb[0].mxu0
      %v1163 = vadd.f32 %v926, %v1162
      %v1164 = vpop.f32.mrb[0].mxu0
      %v1165 = vpop.f32.mrb[0].mxu0
      %v1166 = vadd.f32 %v926, %v1165
      %v1167 = vpop.f32.mrb[0].mxu0
      %1168 = vmatprep.mubr.bf16.mxu0 0
      %1169 = vmatmul.mubr.bf16.gmra.mrb[0].mxu0 %v1120
      %v1170 = vpop.f32.mrb[0].mxu0
      %v1171 = vadd.f32 %v926, %v1170
      %v1172 = vpop.f32.mrb[0].mxu0
      %v1173 = vpop.f32.mrb[0].mxu0
      %v1174 = vadd.f32 %v926, %v1173
      %v1175 = vpop.f32.mrb[0].mxu0
      %1176 = vdwg.mxu0
      %v1177 = vsel %vm685, %v1163, -inf
      %1178 = vmax.xlane.f32.xlu0 %v1177
      %v1179 = vpop.xlane.xlu0 %1178
      %v1180 = vsel %vm685, %v1166, -inf
      %1181 = vmax.xlane.f32.xlu0 %v1180
      %v1182 = vpop.xlane.xlu0 %1181
      %v1183 = vsel %vm685, %v1171, -inf
      %1184 = vmax.xlane.f32.xlu0 %v1183
      %v1185 = vpop.xlane.xlu0 %1184
      %v1186 = vsel %vm685, %v1174, -inf
      %1187 = vmax.xlane.f32.xlu0 %v1186
      %v1188 = vpop.xlane.xlu0 %1187
      %v1189 = vsub.f32 %v1163, %v1179
      %v1190 = vsub.f32 %v1166, %v1182
      %v1191 = vsub.f32 %v1171, %v1185
      %v1192 = vsub.f32 %v1174, %v1188
      %v1193 = vmul.f32 %v1189, 1.442695
      %v1194 = vpow.pop %v1193
      %v1195 = vmul.f32 %v1190, 1.442695
      %v1196 = vpow.pop %v1195
      %v1197 = vmul.f32 %v1191, 1.442695
      %v1198 = vpow.pop %v1197
      %v1199 = vmul.f32 %v1192, 1.442695
      %v1200 = vpow.pop %v1199
      %v1201 = vsel %vm685, %v1194, 0.0
      %1202 = vadd.xlane.f32.xlu0 %v1201
      %v1203 = vpop.xlane.xlu0 %1202
      %v1204 = vsel %vm685, %v1196, 0.0
      %1205 = vadd.xlane.f32.xlu0 %v1204
      %v1206 = vpop.xlane.xlu0 %1205
      %v1207 = vsel %vm685, %v1198, 0.0
      %1208 = vadd.xlane.f32.xlu0 %v1207
      %v1209 = vpop.xlane.xlu0 %1208
      %v1210 = vsel %vm685, %v1200, 0.0
      %1211 = vadd.xlane.f32.xlu0 %v1210
      %v1212 = vpop.xlane.xlu0 %1211
      %v1213 = vrcp.pop %v1203
      %v1214 = vrcp.pop %v1206
      %v1215 = vrcp.pop %v1209
      %v1216 = vrcp.pop %v1212
      %v1217 = vmul.f32 %v1194, %v1213
      %v1218 = vmul.f32 %v1196, %v1214
      %v1219 = vmul.f32 %v1198, %v1215
      %v1220 = vmul.f32 %v1200, %v1216
      %v1221 = vpack.c.bf16 %v1218, %v1217
      %v1222 = vpack.c.bf16 %v1220, %v1219
      %1223 = vrot.lane.b32.xlu0 %v927, 48
      %v1224 = vpop.permute.xlu0 %1223
      %1225 = vrot.lane.b32.xlu0 %v928, 48
      %v1226 = vpop.permute.xlu0 %1225
      %v1230 = vsel %vm685, %v1221, 0
      %v1233 = vsel %vm685, %v1222, 0
      %1235 = vmatprep.subr.bf16.mxu0 0
      %1236 = vmatpush1.bf16.msra.mxu0 %v1224
      %1237 = vmatprep.subr.bf16.mxu0 0
      %1238 = vmatpush1.bf16.msra.mxu0 %v1226
      %1239 = vmatprep.subr.bf16.mxu0 0
      %1240 = vmatpush1.bf16.msra.mxu0 0
      %1241 = vmatprep.subr.bf16.mxu0 0
      %1242 = vmatpush1.bf16.msra.mxu0 0
      %1243 = vmatprep.subr.bf16.mxu0 0
      %1244 = vmatpush1.bf16.msra.mxu0 0
      %1245 = vmatprep.subr.bf16.mxu0 0
      %1246 = vmatpush1.bf16.msra.mxu0 0
      %1247 = vmatprep.subr.bf16.mxu0 0
      %1248 = vmatpush1.bf16.msra.mxu0 0
      %1249 = vmatprep.subr.bf16.mxu0 0
      %1250 = vmatpush1.bf16.msra.mxu0 0
      %1251 = vmatprep.subr.bf16.mxu0 0
      %1252 = vmatpush1.bf16.msra.mxu0 0
      %1253 = vmatprep.subr.bf16.mxu0 0
      %1254 = vmatpush1.bf16.msra.mxu0 0
      %1255 = vmatprep.subr.bf16.mxu0 0
      %1256 = vmatpush1.bf16.msra.mxu0 0
      %1257 = vmatprep.subr.bf16.mxu0 0
      %1258 = vmatpush1.bf16.msra.mxu0 0
      %1259 = vmatprep.subr.bf16.mxu0 0
      %1260 = vmatpush1.bf16.msra.mxu0 0
      %1261 = vmatprep.subr.bf16.mxu0 0
      %1262 = vmatpush1.bf16.msra.mxu0 0
      %1263 = vmatprep.subr.bf16.mxu0 0
      %1264 = vmatpush1.bf16.msra.mxu0 0
      %1265 = vmatprep.subr.bf16.mxu0 0
      %1266 = vmatpush1.bf16.msra.mxu0 0
      %1267 = vmatprep.mubr.bf16.mxu0 0
      %1268 = vmatmul.mubr.bf16.gmra.mrb[0].mxu0 %v1230
      %v1269 = vpop.f32.mrb[0].mxu0
      %v1270 = vadd.f32 0.0, %v1269
      %v1271 = vpop.f32.mrb[0].mxu0
      %v1272 = vpop.f32.mrb[0].mxu0
      %v1273 = vadd.f32 0.0, %v1272
      %v1274 = vpop.f32.mrb[0].mxu0
      %1275 = vmatprep.mubr.bf16.mxu0 0
      %1276 = vmatmul.mubr.bf16.gmra.mrb[0].mxu0 %v1233
      %v1277 = vpop.f32.mrb[0].mxu0
      %v1278 = vadd.f32 0.0, %v1277
      %v1279 = vpop.f32.mrb[0].mxu0
      %v1280 = vpop.f32.mrb[0].mxu0
      %v1281 = vadd.f32 0.0, %v1280
      %v1282 = vpop.f32.mrb[0].mxu0
      %1283 = vdwg.mxu0
      %v1284 = vpack.c.bf16 %v1273, %v1270
      %v1285 = vpack.c.bf16 %v1281, %v1278
      %1288 = vrot.lane.b32.xlu0 %v1284, 16
      %v1289 = vpop.permute.xlu0 %1288
      %1290 = vrot.lane.b32.xlu0 %v1285, 16
      %v1291 = vpop.permute.xlu0 %1290
      %vm1294 = vcmask 261248
      %1295 = vst.msk [vmem:[#allocation3] sm:$0xff] %vm1294, %v1289
      %1296 = vst.msk [vmem:[#allocation3 + $0x8] sm:$0xff] %vm1294, %v1291
      %v1297 = vpack.c.bf16 %v912, %v909
      %v1298 = vpack.c.bf16 %v920, %v917
      %1301 = vrot.lane.b32.xlu0 %v1297, 96
      %v1302 = vpop.permute.xlu0 %1301
      %1303 = vrot.lane.b32.xlu0 %v1298, 96
      %v1304 = vpop.permute.xlu0 %1303
      %v1306 = vsel %vm935, %v1297, 0
      %v1309 = vsel %vm935, %v1298, 0
      %v1312 = vsel %vm935, %v1302, 0
      %v1315 = vsel %vm935, %v1304, 0
      %1317 = vmatprep.subr.bf16.mxu0 0
      %1318 = vmatpush1.bf16.xpose.msra.mxu0 %v1312
      %1319 = vmatprep.subr.bf16.mxu0 0
      %1320 = vmatpush1.bf16.xpose.msra.mxu0 %v1315
      %1321 = vmatprep.subr.bf16.mxu0 0
      %1322 = vmatpush1.bf16.xpose.msra.mxu0 0
      %1323 = vmatprep.subr.bf16.mxu0 0
      %1324 = vmatpush1.bf16.xpose.msra.mxu0 0
      %1325 = vmatprep.subr.bf16.mxu0 0
      %1326 = vmatpush1.bf16.xpose.msra.mxu0 0
      %1327 = vmatprep.subr.bf16.mxu0 0
      %1328 = vmatpush1.bf16.xpose.msra.mxu0 0
      %1329 = vmatprep.subr.bf16.mxu0 0
      %1330 = vmatpush1.bf16.xpose.msra.mxu0 0
      %1331 = vmatprep.subr.bf16.mxu0 0
      %1332 = vmatpush1.bf16.xpose.msra.mxu0 0
      %1333 = vmatprep.subr.bf16.mxu0 0
      %1334 = vmatpush1.bf16.xpose.msra.mxu0 0
      %1335 = vmatprep.subr.bf16.mxu0 0
      %1336 = vmatpush1.bf16.xpose.msra.mxu0 0
      %1337 = vmatprep.subr.bf16.mxu0 0
      %1338 = vmatpush1.bf16.xpose.msra.mxu0 0
      %1339 = vmatprep.subr.bf16.mxu0 0
      %1340 = vmatpush1.bf16.xpose.msra.mxu0 0
      %1341 = vmatprep.subr.bf16.mxu0 0
      %1342 = vmatpush1.bf16.xpose.msra.mxu0 0
      %1343 = vmatprep.subr.bf16.mxu0 0
      %1344 = vmatpush1.bf16.xpose.msra.mxu0 0
      %1345 = vmatprep.subr.bf16.mxu0 0
      %1346 = vmatpush1.bf16.xpose.msra.mxu0 0
      %1347 = vmatprep.subr.bf16.mxu0 0
      %1348 = vmatpush1.bf16.xpose.msra.mxu0 0
      %1349 = vmatprep.mubr.bf16.mxu0 0
      %1350 = vmatmul.mubr.bf16.gmra.mrb[0].mxu0 %v1306
      %v1351 = vpop.f32.mrb[0].mxu0
      %v1352 = vadd.f32 %v926, %v1351
      %v1353 = vpop.f32.mrb[0].mxu0
      %v1354 = vpop.f32.mrb[0].mxu0
      %v1355 = vadd.f32 %v926, %v1354
      %v1356 = vpop.f32.mrb[0].mxu0
      %1357 = vmatprep.mubr.bf16.mxu0 0
      %1358 = vmatmul.mubr.bf16.gmra.mrb[0].mxu0 %v1309
      %v1359 = vpop.f32.mrb[0].mxu0
      %v1360 = vadd.f32 %v926, %v1359
      %v1361 = vpop.f32.mrb[0].mxu0
      %v1362 = vpop.f32.mrb[0].mxu0
      %v1363 = vadd.f32 %v926, %v1362
      %v1364 = vpop.f32.mrb[0].mxu0
      %1365 = vdwg.mxu0
      %v1366 = vsel %vm685, %v1352, -inf
      %1367 = vmax.xlane.f32.xlu0 %v1366
      %v1368 = vpop.xlane.xlu0 %1367
      %v1369 = vsel %vm685, %v1355, -inf
      %1370 = vmax.xlane.f32.xlu0 %v1369
      %v1371 = vpop.xlane.xlu0 %1370
      %v1372 = vsel %vm685, %v1360, -inf
      %1373 = vmax.xlane.f32.xlu0 %v1372
      %v1374 = vpop.xlane.xlu0 %1373
      %v1375 = vsel %vm685, %v1363, -inf
      %1376 = vmax.xlane.f32.xlu0 %v1375
      %v1377 = vpop.xlane.xlu0 %1376
      %v1378 = vsub.f32 %v1352, %v1368
      %v1379 = vsub.f32 %v1355, %v1371
      %v1380 = vsub.f32 %v1360, %v1374
      %v1381 = vsub.f32 %v1363, %v1377
      %v1382 = vmul.f32 %v1378, 1.442695
      %v1383 = vpow.pop %v1382
      %v1384 = vmul.f32 %v1379, 1.442695
      %v1385 = vpow.pop %v1384
      %v1386 = vmul.f32 %v1380, 1.442695
      %v1387 = vpow.pop %v1386
      %v1388 = vmul.f32 %v1381, 1.442695
      %v1389 = vpow.pop %v1388
      %v1390 = vsel %vm685, %v1383, 0.0
      %1391 = vadd.xlane.f32.xlu0 %v1390
      %v1392 = vpop.xlane.xlu0 %1391
      %v1393 = vsel %vm685, %v1385, 0.0
      %1394 = vadd.xlane.f32.xlu0 %v1393
      %v1395 = vpop.xlane.xlu0 %1394
      %v1396 = vsel %vm685, %v1387, 0.0
      %1397 = vadd.xlane.f32.xlu0 %v1396
      %v1398 = vpop.xlane.xlu0 %1397
      %v1399 = vsel %vm685, %v1389, 0.0
      %1400 = vadd.xlane.f32.xlu0 %v1399
      %v1401 = vpop.xlane.xlu0 %1400
      %v1402 = vrcp.pop %v1392
      %v1403 = vrcp.pop %v1395
      %v1404 = vrcp.pop %v1398
      %v1405 = vrcp.pop %v1401
      %v1406 = vmul.f32 %v1383, %v1402
      %v1407 = vmul.f32 %v1385, %v1403
      %v1408 = vmul.f32 %v1387, %v1404
      %v1409 = vmul.f32 %v1389, %v1405
      %v1410 = vpack.c.bf16 %v1407, %v1406
      %v1411 = vpack.c.bf16 %v1409, %v1408
      %1412 = vrot.lane.b32.xlu0 %v1297, 64
      %v1413 = vpop.permute.xlu0 %1412
      %1414 = vrot.lane.b32.xlu0 %v1298, 64
      %v1415 = vpop.permute.xlu0 %1414
      %v1419 = vsel %vm685, %v1410, 0
      %v1422 = vsel %vm685, %v1411, 0
      %1424 = vmatprep.subr.bf16.mxu0 0
      %1425 = vmatpush1.bf16.msra.mxu0 %v1413
      %1426 = vmatprep.subr.bf16.mxu0 0
      %1427 = vmatpush1.bf16.msra.mxu0 %v1415
      %1428 = vmatprep.subr.bf16.mxu0 0
      %1429 = vmatpush1.bf16.msra.mxu0 0
      %1430 = vmatprep.subr.bf16.mxu0 0
      %1431 = vmatpush1.bf16.msra.mxu0 0
      %1432 = vmatprep.subr.bf16.mxu0 0
      %1433 = vmatpush1.bf16.msra.mxu0 0
      %1434 = vmatprep.subr.bf16.mxu0 0
      %1435 = vmatpush1.bf16.msra.mxu0 0
      %1436 = vmatprep.subr.bf16.mxu0 0
      %1437 = vmatpush1.bf16.msra.mxu0 0
      %1438 = vmatprep.subr.bf16.mxu0 0
      %1439 = vmatpush1.bf16.msra.mxu0 0
      %1440 = vmatprep.subr.bf16.mxu0 0
      %1441 = vmatpush1.bf16.msra.mxu0 0
      %1442 = vmatprep.subr.bf16.mxu0 0
      %1443 = vmatpush1.bf16.msra.mxu0 0
      %1444 = vmatprep.subr.bf16.mxu0 0
      %1445 = vmatpush1.bf16.msra.mxu0 0
      %1446 = vmatprep.subr.bf16.mxu0 0
      %1447 = vmatpush1.bf16.msra.mxu0 0
      %1448 = vmatprep.subr.bf16.mxu0 0
      %1449 = vmatpush1.bf16.msra.mxu0 0
      %1450 = vmatprep.subr.bf16.mxu0 0
      %1451 = vmatpush1.bf16.msra.mxu0 0
      %1452 = vmatprep.subr.bf16.mxu0 0
      %1453 = vmatpush1.bf16.msra.mxu0 0
      %1454 = vmatprep.subr.bf16.mxu0 0
      %1455 = vmatpush1.bf16.msra.mxu0 0
      %1456 = vmatprep.mubr.bf16.mxu0 0
      %1457 = vmatmul.mubr.bf16.gmra.mrb[0].mxu0 %v1419
      %v1458 = vpop.f32.mrb[0].mxu0
      %v1459 = vadd.f32 0.0, %v1458
      %v1460 = vpop.f32.mrb[0].mxu0
      %v1461 = vpop.f32.mrb[0].mxu0
      %v1462 = vadd.f32 0.0, %v1461
      %v1463 = vpop.f32.mrb[0].mxu0
      %1464 = vmatprep.mubr.bf16.mxu0 0
      %1465 = vmatmul.mubr.bf16.gmra.mrb[0].mxu0 %v1422
      %v1466 = vpop.f32.mrb[0].mxu0
      %v1467 = vadd.f32 0.0, %v1466
      %v1468 = vpop.f32.mrb[0].mxu0
      %v1469 = vpop.f32.mrb[0].mxu0
      %v1470 = vadd.f32 0.0, %v1469
      %v1471 = vpop.f32.mrb[0].mxu0
      %1472 = vdwg.mxu0
      %v1473 = vpack.c.bf16 %v1462, %v1459
      %v1474 = vpack.c.bf16 %v1470, %v1467
      %1475 = vst.msk [vmem:[#allocation3 + $0x10] sm:$0xff] %vm935, %v1473
      %1476 = vst.msk [vmem:[#allocation3 + $0x18] sm:$0xff] %vm935, %v1474
      %1477 = vrot.lane.b32.xlu0 %v1297, 112
      %v1478 = vpop.permute.xlu0 %1477
      %1479 = vrot.lane.b32.xlu0 %v1298, 112
      %v1480 = vpop.permute.xlu0 %1479
      %1481 = vrot.lane.b32.xlu0 %v1297, 80
      %v1482 = vpop.permute.xlu0 %1481
      %1483 = vrot.lane.b32.xlu0 %v1298, 80
      %v1484 = vpop.permute.xlu0 %1483
      %v1486 = vsel %vm935, %v1478, 0
      %v1489 = vsel %vm935, %v1480, 0
      %v1492 = vsel %vm935, %v1482, 0
      %v1495 = vsel %vm935, %v1484, 0
      %1497 = vmatprep.subr.bf16.mxu0 0
      %1498 = vmatpush1.bf16.xpose.msra.mxu0 %v1492
      %1499 = vmatprep.subr.bf16.mxu0 0
      %1500 = vmatpush1.bf16.xpose.msra.mxu0 %v1495
      %1501 = vmatprep.subr.bf16.mxu0 0
      %1502 = vmatpush1.bf16.xpose.msra.mxu0 0
      %1503 = vmatprep.subr.bf16.mxu0 0
      %1504 = vmatpush1.bf16.xpose.msra.mxu0 0
      %1505 = vmatprep.subr.bf16.mxu0 0
      %1506 = vmatpush1.bf16.xpose.msra.mxu0 0
      %1507 = vmatprep.subr.bf16.mxu0 0
      %1508 = vmatpush1.bf16.xpose.msra.mxu0 0
      %1509 = vmatprep.subr.bf16.mxu0 0
      %1510 = vmatpush1.bf16.xpose.msra.mxu0 0
      %1511 = vmatprep.subr.bf16.mxu0 0
      %1512 = vmatpush1.bf16.xpose.msra.mxu0 0
      %1513 = vmatprep.subr.bf16.mxu0 0
      %1514 = vmatpush1.bf16.xpose.msra.mxu0 0
      %1515 = vmatprep.subr.bf16.mxu0 0
      %1516 = vmatpush1.bf16.xpose.msra.mxu0 0
      %1517 = vmatprep.subr.bf16.mxu0 0
      %1518 = vmatpush1.bf16.xpose.msra.mxu0 0
      %1519 = vmatprep.subr.bf16.mxu0 0
      %1520 = vmatpush1.bf16.xpose.msra.mxu0 0
      %1521 = vmatprep.subr.bf16.mxu0 0
      %1522 = vmatpush1.bf16.xpose.msra.mxu0 0
      %1523 = vmatprep.subr.bf16.mxu0 0
      %1524 = vmatpush1.bf16.xpose.msra.mxu0 0
      %1525 = vmatprep.subr.bf16.mxu0 0
      %1526 = vmatpush1.bf16.xpose.msra.mxu0 0
      %1527 = vmatprep.subr.bf16.mxu0 0
      %1528 = vmatpush1.bf16.xpose.msra.mxu0 0
      %1529 = vmatprep.mubr.bf16.mxu0 0
      %1530 = vmatmul.mubr.bf16.gmra.mrb[0].mxu0 %v1486
      %v1531 = vpop.f32.mrb[0].mxu0
      %v1532 = vadd.f32 %v926, %v1531
      %v1533 = vpop.f32.mrb[0].mxu0
      %v1534 = vpop.f32.mrb[0].mxu0
      %v1535 = vadd.f32 %v926, %v1534
      %v1536 = vpop.f32.mrb[0].mxu0
      %1537 = vmatprep.mubr.bf16.mxu0 0
      %1538 = vmatmul.mubr.bf16.gmra.mrb[0].mxu0 %v1489
      %v1539 = vpop.f32.mrb[0].mxu0
      %v1540 = vadd.f32 %v926, %v1539
      %v1541 = vpop.f32.mrb[0].mxu0
      %v1542 = vpop.f32.mrb[0].mxu0
      %v1543 = vadd.f32 %v926, %v1542
      %v1544 = vpop.f32.mrb[0].mxu0
      %1545 = vdwg.mxu0
      %v1546 = vsel %vm685, %v1532, -inf
      %1547 = vmax.xlane.f32.xlu0 %v1546
      %v1548 = vpop.xlane.xlu0 %1547
      %v1549 = vsel %vm685, %v1535, -inf
      %1550 = vmax.xlane.f32.xlu0 %v1549
      %v1551 = vpop.xlane.xlu0 %1550
      %v1552 = vsel %vm685, %v1540, -inf
      %1553 = vmax.xlane.f32.xlu0 %v1552
      %v1554 = vpop.xlane.xlu0 %1553
      %v1555 = vsel %vm685, %v1543, -inf
      %1556 = vmax.xlane.f32.xlu0 %v1555
      %v1557 = vpop.xlane.xlu0 %1556
      %v1558 = vsub.f32 %v1532, %v1548
      %v1559 = vsub.f32 %v1535, %v1551
      %v1560 = vsub.f32 %v1540, %v1554
      %v1561 = vsub.f32 %v1543, %v1557
      %v1562 = vmul.f32 %v1558, 1.442695
      %v1563 = vpow.pop %v1562
      %v1564 = vmul.f32 %v1559, 1.442695
      %v1565 = vpow.pop %v1564
      %v1566 = vmul.f32 %v1560, 1.442695
      %v1567 = vpow.pop %v1566
      %v1568 = vmul.f32 %v1561, 1.442695
      %v1569 = vpow.pop %v1568
      %v1570 = vsel %vm685, %v1563, 0.0
      %1571 = vadd.xlane.f32.xlu0 %v1570
      %v1572 = vpop.xlane.xlu0 %1571
      %v1573 = vsel %vm685, %v1565, 0.0
      %1574 = vadd.xlane.f32.xlu0 %v1573
      %v1575 = vpop.xlane.xlu0 %1574
      %v1576 = vsel %vm685, %v1567, 0.0
      %1577 = vadd.xlane.f32.xlu0 %v1576
      %v1578 = vpop.xlane.xlu0 %1577
      %v1579 = vsel %vm685, %v1569, 0.0
      %1580 = vadd.xlane.f32.xlu0 %v1579
      %v1581 = vpop.xlane.xlu0 %1580
      %v1582 = vrcp.pop %v1572
      %v1583 = vrcp.pop %v1575
      %v1584 = vrcp.pop %v1578
      %v1585 = vrcp.pop %v1581
      %v1586 = vmul.f32 %v1563, %v1582
      %v1587 = vmul.f32 %v1565, %v1583
      %v1588 = vmul.f32 %v1567, %v1584
      %v1589 = vmul.f32 %v1569, %v1585
      %v1590 = vpack.c.bf16 %v1587, %v1586
      %v1591 = vpack.c.bf16 %v1589, %v1588
      %1592 = vrot.lane.b32.xlu0 %v1297, 48
      %v1593 = vpop.permute.xlu0 %1592
      %1594 = vrot.lane.b32.xlu0 %v1298, 48
      %v1595 = vpop.permute.xlu0 %1594
      %v1599 = vsel %vm685, %v1590, 0
      %v1602 = vsel %vm685, %v1591, 0
      %1604 = vmatprep.subr.bf16.mxu0 0
      %1605 = vmatpush1.bf16.msra.mxu0 %v1593
      %1606 = vmatprep.subr.bf16.mxu0 0
      %1607 = vmatpush1.bf16.msra.mxu0 %v1595
      %1608 = vmatprep.subr.bf16.mxu0 0
      %1609 = vmatpush1.bf16.msra.mxu0 0
      %1610 = vmatprep.subr.bf16.mxu0 0
      %1611 = vmatpush1.bf16.msra.mxu0 0
      %1612 = vmatprep.subr.bf16.mxu0 0
      %1613 = vmatpush1.bf16.msra.mxu0 0
      %1614 = vmatprep.subr.bf16.mxu0 0
      %1615 = vmatpush1.bf16.msra.mxu0 0
      %1616 = vmatprep.subr.bf16.mxu0 0
      %1617 = vmatpush1.bf16.msra.mxu0 0
      %1618 = vmatprep.subr.bf16.mxu0 0
      %1619 = vmatpush1.bf16.msra.mxu0 0
      %1620 = vmatprep.subr.bf16.mxu0 0
      %1621 = vmatpush1.bf16.msra.mxu0 0
      %1622 = vmatprep.subr.bf16.mxu0 0
      %1623 = vmatpush1.bf16.msra.mxu0 0
      %1624 = vmatprep.subr.bf16.mxu0 0
      %1625 = vmatpush1.bf16.msra.mxu0 0
      %1626 = vmatprep.subr.bf16.mxu0 0
      %1627 = vmatpush1.bf16.msra.mxu0 0
      %1628 = vmatprep.subr.bf16.mxu0 0
      %1629 = vmatpush1.bf16.msra.mxu0 0
      %1630 = vmatprep.subr.bf16.mxu0 0
      %1631 = vmatpush1.bf16.msra.mxu0 0
      %1632 = vmatprep.subr.bf16.mxu0 0
      %1633 = vmatpush1.bf16.msra.mxu0 0
      %1634 = vmatprep.subr.bf16.mxu0 0
      %1635 = vmatpush1.bf16.msra.mxu0 0
      %1636 = vmatprep.mubr.bf16.mxu0 0
      %1637 = vmatmul.mubr.bf16.gmra.mrb[0].mxu0 %v1599
      %v1638 = vpop.f32.mrb[0].mxu0
      %v1639 = vadd.f32 0.0, %v1638
      %v1640 = vpop.f32.mrb[0].mxu0
      %v1641 = vpop.f32.mrb[0].mxu0
      %v1642 = vadd.f32 0.0, %v1641
      %v1643 = vpop.f32.mrb[0].mxu0
      %1644 = vmatprep.mubr.bf16.mxu0 0
      %1645 = vmatmul.mubr.bf16.gmra.mrb[0].mxu0 %v1602
      %v1646 = vpop.f32.mrb[0].mxu0
      %v1647 = vadd.f32 0.0, %v1646
      %v1648 = vpop.f32.mrb[0].mxu0
      %v1649 = vpop.f32.mrb[0].mxu0
      %v1650 = vadd.f32 0.0, %v1649
      %v1651 = vpop.f32.mrb[0].mxu0
      %1652 = vdwg.mxu0
      %v1653 = vpack.c.bf16 %v1642, %v1639
      %v1654 = vpack.c.bf16 %v1650, %v1647
      %1657 = vrot.lane.b32.xlu0 %v1653, 16
      %v1658 = vpop.permute.xlu0 %1657
      %1659 = vrot.lane.b32.xlu0 %v1654, 16
      %v1660 = vpop.permute.xlu0 %1659
      %1663 = vst.msk [vmem:[#allocation3 + $0x10] sm:$0xff] %vm1294, %v1658
      %1664 = vst.msk [vmem:[#allocation3 + $0x18] sm:$0xff] %vm1294, %v1660
      %v1665 = vld [vmem:[#allocation3] sm:$0xff]
      %v1666 = vld [vmem:[#allocation3 + $0x8] sm:$0xff]
      %v1667 = vld [vmem:[#allocation3 + $0x10] sm:$0xff]
      %v1668 = vld [vmem:[#allocation3 + $0x18] sm:$0xff]
      %v1669 = vld [vmem:[%s620] sm:$0xf]
      %v1670 = vld [vmem:[%s620 + $0x4] sm:$0xf]
      %v1671 = vld [vmem:[%s620 + $0x8] sm:$0xf]
      %v1672 = vld [vmem:[%s620 + $0xc] sm:$0xf]
      %v1673 = vld [vmem:[%s623] sm:$0x1]
      %v1675 = vlaneseq
      %v1676 = vshrl.u32 %v1675, 7
      %v1677 = vsub.s32 0, %v1676
      %v1678 = vrot.slane %v1673, %v1677
      %v1684 = vunpack.c.l.b16 %v1669
      %v1685 = vunpack.c.l.b16 %v1670
      %v1686 = vunpack.c.l.b16 %v1671
      %v1687 = vunpack.c.l.b16 %v1672
      %v1688 = vpack.c.b16 %v1685, %v1684
      %v1689 = vpack.c.b16 %v1687, %v1686
      %v1693 = vsel %vm685, %v1665, 0
      %v1696 = vsel %vm685, %v1666, 0
      %v1699 = vsel %vm685, %v1667, 0
      %v1702 = vsel %vm685, %v1668, 0
      %1704 = vmatprep.subr.bf16.mxu0 0
      %1705 = vmatpush1.bf16.msra.mxu0 %v1688
      %1706 = vmatprep.subr.bf16.mxu0 0
      %1707 = vmatpush1.bf16.msra.mxu0 %v1689
      %1708 = vmatprep.subr.bf16.mxu0 0
      %1709 = vmatpush1.bf16.msra.mxu0 0
      %1710 = vmatprep.subr.bf16.mxu0 0
      %1711 = vmatpush1.bf16.msra.mxu0 0
      %1712 = vmatprep.subr.bf16.mxu0 0
      %1713 = vmatpush1.bf16.msra.mxu0 0
      %1714 = vmatprep.subr.bf16.mxu0 0
      %1715 = vmatpush1.bf16.msra.mxu0 0
      %1716 = vmatprep.subr.bf16.mxu0 0
      %1717 = vmatpush1.bf16.msra.mxu0 0
      %1718 = vmatprep.subr.bf16.mxu0 0
      %1719 = vmatpush1.bf16.msra.mxu0 0
      %1720 = vmatprep.subr.bf16.mxu0 0
      %1721 = vmatpush1.bf16.msra.mxu0 0
      %1722 = vmatprep.subr.bf16.mxu0 0
      %1723 = vmatpush1.bf16.msra.mxu0 0
      %1724 = vmatprep.subr.bf16.mxu0 0
      %1725 = vmatpush1.bf16.msra.mxu0 0
      %1726 = vmatprep.subr.bf16.mxu0 0
      %1727 = vmatpush1.bf16.msra.mxu0 0
      %1728 = vmatprep.subr.bf16.mxu0 0
      %1729 = vmatpush1.bf16.msra.mxu0 0
      %1730 = vmatprep.subr.bf16.mxu0 0
      %1731 = vmatpush1.bf16.msra.mxu0 0
      %1732 = vmatprep.subr.bf16.mxu0 0
      %1733 = vmatpush1.bf16.msra.mxu0 0
      %1734 = vmatprep.subr.bf16.mxu0 0
      %1735 = vmatpush1.bf16.msra.mxu0 0
      %1736 = vmatprep.mubr.bf16.mxu0 0
      %1737 = vmatmul.mubr.bf16.gmra.mrb[0].mxu0 %v1693
      %v1738 = vpop.f32.mrb[0].mxu0
      %v1739 = vadd.f32 %v1678, %v1738
      %v1740 = vpop.f32.mrb[0].mxu0
      %v1741 = vpop.f32.mrb[0].mxu0
      %v1742 = vadd.f32 %v1678, %v1741
      %v1743 = vpop.f32.mrb[0].mxu0
      %1744 = vmatprep.mubr.bf16.mxu0 0
      %1745 = vmatmul.mubr.bf16.gmra.mrb[0].mxu0 %v1696
      %v1746 = vpop.f32.mrb[0].mxu0
      %v1747 = vadd.f32 %v1678, %v1746
      %v1748 = vpop.f32.mrb[0].mxu0
      %v1749 = vpop.f32.mrb[0].mxu0
      %v1750 = vadd.f32 %v1678, %v1749
      %v1751 = vpop.f32.mrb[0].mxu0
      %1752 = vmatprep.mubr.bf16.mxu0 0
      %1753 = vmatmul.mubr.bf16.gmra.mrb[0].mxu0 %v1699
      %v1754 = vpop.f32.mrb[0].mxu0
      %v1755 = vadd.f32 %v1678, %v1754
      %v1756 = vpop.f32.mrb[0].mxu0
      %v1757 = vpop.f32.mrb[0].mxu0
      %v1758 = vadd.f32 %v1678, %v1757
      %v1759 = vpop.f32.mrb[0].mxu0
      %1760 = vmatprep.mubr.bf16.mxu0 0
      %1761 = vmatmul.mubr.bf16.gmra.mrb[0].mxu0 %v1702
      %v1762 = vpop.f32.mrb[0].mxu0
      %v1763 = vadd.f32 %v1678, %v1762
      %v1764 = vpop.f32.mrb[0].mxu0
      %v1765 = vpop.f32.mrb[0].mxu0
      %v1766 = vadd.f32 %v1678, %v1765
      %v1767 = vpop.f32.mrb[0].mxu0
      %1768 = vdwg.mxu0
      %v1769 = vadd.f32 %v675, %v1739
      %v1770 = vadd.f32 %v676, %v1742
      %v1771 = vadd.f32 %v677, %v1747
      %v1772 = vadd.f32 %v678, %v1750
      %v1773 = vadd.f32 %v679, %v1755
      %v1774 = vadd.f32 %v680, %v1758
      %v1775 = vadd.f32 %v681, %v1763
      %v1776 = vadd.f32 %v682, %v1766
      %v1777 = vld [vmem:[%s626] sm:$0x1]
      %v1778 = vld [vmem:[%s629] sm:$0x1]
      %v1779 = vsel %vm685, %v1769, 0.0
      %1780 = vadd.xlane.f32.xlu0 %v1779
      %v1781 = vpop.xlane.xlu0 %1780
      %v1782 = vsel %vm685, %v1770, 0.0
      %1783 = vadd.xlane.f32.xlu0 %v1782
      %v1784 = vpop.xlane.xlu0 %1783
      %v1785 = vsel %vm685, %v1771, 0.0
      %1786 = vadd.xlane.f32.xlu0 %v1785
      %v1787 = vpop.xlane.xlu0 %1786
      %v1788 = vsel %vm685, %v1772, 0.0
      %1789 = vadd.xlane.f32.xlu0 %v1788
      %v1790 = vpop.xlane.xlu0 %1789
      %v1791 = vsel %vm685, %v1773, 0.0
      %1792 = vadd.xlane.f32.xlu0 %v1791
      %v1793 = vpop.xlane.xlu0 %1792
      %v1794 = vsel %vm685, %v1774, 0.0
      %1795 = vadd.xlane.f32.xlu0 %v1794
      %v1796 = vpop.xlane.xlu0 %1795
      %v1797 = vsel %vm685, %v1775, 0.0
      %1798 = vadd.xlane.f32.xlu0 %v1797
      %v1799 = vpop.xlane.xlu0 %1798
      %v1800 = vsel %vm685, %v1776, 0.0
      %1801 = vadd.xlane.f32.xlu0 %v1800
      %v1802 = vpop.xlane.xlu0 %1801
      %v1803 = vmul.f32 %v1781, %v710
      %v1804 = vmul.f32 %v1784, %v710
      %v1805 = vmul.f32 %v1787, %v710
      %v1806 = vmul.f32 %v1790, %v710
      %v1807 = vmul.f32 %v1793, %v710
      %v1808 = vmul.f32 %v1796, %v710
      %v1809 = vmul.f32 %v1799, %v710
      %v1810 = vmul.f32 %v1802, %v710
      %v1811 = vsub.f32 %v1769, %v1803
      %v1812 = vsub.f32 %v1770, %v1804
      %v1813 = vsub.f32 %v1771, %v1805
      %v1814 = vsub.f32 %v1772, %v1806
      %v1815 = vsub.f32 %v1773, %v1807
      %v1816 = vsub.f32 %v1774, %v1808
      %v1817 = vsub.f32 %v1775, %v1809
      %v1818 = vsub.f32 %v1776, %v1810
      %v1819 = vmul.f32 %v1811, %v1811
      %v1820 = vmul.f32 %v1812, %v1812
      %v1821 = vmul.f32 %v1813, %v1813
      %v1822 = vmul.f32 %v1814, %v1814
      %v1823 = vmul.f32 %v1815, %v1815
      %v1824 = vmul.f32 %v1816, %v1816
      %v1825 = vmul.f32 %v1817, %v1817
      %v1826 = vmul.f32 %v1818, %v1818
      %v1827 = vsel %vm685, %v1819, 0.0
      %1828 = vadd.xlane.f32.xlu0 %v1827
      %v1829 = vpop.xlane.xlu0 %1828
      %v1830 = vsel %vm685, %v1820, 0.0
      %1831 = vadd.xlane.f32.xlu0 %v1830
      %v1832 = vpop.xlane.xlu0 %1831
      %v1833 = vsel %vm685, %v1821, 0.0
      %1834 = vadd.xlane.f32.xlu0 %v1833
      %v1835 = vpop.xlane.xlu0 %1834
      %v1836 = vsel %vm685, %v1822, 0.0
      %1837 = vadd.xlane.f32.xlu0 %v1836
      %v1838 = vpop.xlane.xlu0 %1837
      %v1839 = vsel %vm685, %v1823, 0.0
      %1840 = vadd.xlane.f32.xlu0 %v1839
      %v1841 = vpop.xlane.xlu0 %1840
      %v1842 = vsel %vm685, %v1824, 0.0
      %1843 = vadd.xlane.f32.xlu0 %v1842
      %v1844 = vpop.xlane.xlu0 %1843
      %v1845 = vsel %vm685, %v1825, 0.0
      %1846 = vadd.xlane.f32.xlu0 %v1845
      %v1847 = vpop.xlane.xlu0 %1846
      %v1848 = vsel %vm685, %v1826, 0.0
      %1849 = vadd.xlane.f32.xlu0 %v1848
      %v1850 = vpop.xlane.xlu0 %1849
      %v1851 = vmul.f32 %v1829, %v710
      %v1852 = vmul.f32 %v1832, %v710
      %v1853 = vmul.f32 %v1835, %v710
      %v1854 = vmul.f32 %v1838, %v710
      %v1855 = vmul.f32 %v1841, %v710
      %v1856 = vmul.f32 %v1844, %v710
      %v1857 = vmul.f32 %v1847, %v710
      %v1858 = vmul.f32 %v1850, %v710
      %v1859 = vadd.f32 %v1851, 1e-05
      %v1860 = vadd.f32 %v1852, 1e-05
      %v1861 = vadd.f32 %v1853, 1e-05
      %v1862 = vadd.f32 %v1854, 1e-05
      %v1863 = vadd.f32 %v1855, 1e-05
      %v1864 = vadd.f32 %v1856, 1e-05
      %v1865 = vadd.f32 %v1857, 1e-05
      %v1866 = vadd.f32 %v1858, 1e-05
      %v1867 = vrsqrt.pop %v1859
      %v1868 = vrsqrt.pop %v1860
      %v1869 = vrsqrt.pop %v1861
      %v1870 = vrsqrt.pop %v1862
      %v1871 = vrsqrt.pop %v1863
      %v1872 = vrsqrt.pop %v1864
      %v1873 = vrsqrt.pop %v1865
      %v1874 = vrsqrt.pop %v1866
      %v1875 = vmul.f32 %v1811, %v1867
      %v1876 = vmul.f32 %v1812, %v1868
      %v1877 = vmul.f32 %v1813, %v1869
      %v1878 = vmul.f32 %v1814, %v1870
      %v1879 = vmul.f32 %v1815, %v1871
      %v1880 = vmul.f32 %v1816, %v1872
      %v1881 = vmul.f32 %v1817, %v1873
      %v1882 = vmul.f32 %v1818, %v1874
      %v1884 = vlaneseq
      %v1885 = vshrl.u32 %v1884, 7
      %v1886 = vsub.s32 0, %v1885
      %v1887 = vrot.slane %v1777, %v1886
      %v1889 = vmul.f32 %v1875, %v1887
      %v1890 = vmul.f32 %v1876, %v1887
      %v1891 = vmul.f32 %v1877, %v1887
      %v1892 = vmul.f32 %v1878, %v1887
      %v1893 = vmul.f32 %v1879, %v1887
      %v1894 = vmul.f32 %v1880, %v1887
      %v1895 = vmul.f32 %v1881, %v1887
      %v1896 = vmul.f32 %v1882, %v1887
      %v1898 = vlaneseq
      %v1899 = vshrl.u32 %v1898, 7
      %v1900 = vsub.s32 0, %v1899
      %v1901 = vrot.slane %v1778, %v1900
      %v1903 = vadd.f32 %v1889, %v1901
      %v1904 = vadd.f32 %v1890, %v1901
      %v1905 = vadd.f32 %v1891, %v1901
      %v1906 = vadd.f32 %v1892, %v1901
      %v1907 = vadd.f32 %v1893, %v1901
      %v1908 = vadd.f32 %v1894, %v1901
      %v1909 = vadd.f32 %v1895, %v1901
      %v1910 = vadd.f32 %v1896, %v1901
      %v1911 = vpack.c.bf16 %v1904, %v1903
      %v1912 = vpack.c.bf16 %v1906, %v1905
      %v1913 = vpack.c.bf16 %v1908, %v1907
      %v1914 = vpack.c.bf16 %v1910, %v1909
      %v1915 = vld [vmem:[%s634] sm:$0xf]
      %v1916 = vld [vmem:[%s634 + $0x4] sm:$0xf]
      %v1917 = vld [vmem:[%s634 + $0x8] sm:$0xf]
      %v1918 = vld [vmem:[%s634 + $0xc] sm:$0xf]
      %v1919 = vld [vmem:[%s637] sm:$0x1]
      %v1921 = vlaneseq
      %v1922 = vshrl.u32 %v1921, 7
      %v1923 = vsub.s32 0, %v1922
      %v1924 = vrot.slane %v1919, %v1923
      %v1930 = vunpack.c.l.b16 %v1915
      %v1931 = vunpack.c.l.b16 %v1916
      %v1932 = vunpack.c.l.b16 %v1917
      %v1933 = vunpack.c.l.b16 %v1918
      %v1934 = vpack.c.b16 %v1931, %v1930
      %v1935 = vpack.c.b16 %v1933, %v1932
      %v1939 = vsel %vm685, %v1911, 0
      %v1942 = vsel %vm685, %v1912, 0
      %v1945 = vsel %vm685, %v1913, 0
      %v1948 = vsel %vm685, %v1914, 0
      %1950 = vmatprep.subr.bf16.mxu0 0
      %1951 = vmatpush1.bf16.msra.mxu0 %v1934
      %1952 = vmatprep.subr.bf16.mxu0 0
      %1953 = vmatpush1.bf16.msra.mxu0 %v1935
      %1954 = vmatprep.subr.bf16.mxu0 0
      %1955 = vmatpush1.bf16.msra.mxu0 0
      %1956 = vmatprep.subr.bf16.mxu0 0
      %1957 = vmatpush1.bf16.msra.mxu0 0
      %1958 = vmatprep.subr.bf16.mxu0 0
      %1959 = vmatpush1.bf16.msra.mxu0 0
      %1960 = vmatprep.subr.bf16.mxu0 0
      %1961 = vmatpush1.bf16.msra.mxu0 0
      %1962 = vmatprep.subr.bf16.mxu0 0
      %1963 = vmatpush1.bf16.msra.mxu0 0
      %1964 = vmatprep.subr.bf16.mxu0 0
      %1965 = vmatpush1.bf16.msra.mxu0 0
      %1966 = vmatprep.subr.bf16.mxu0 0
      %1967 = vmatpush1.bf16.msra.mxu0 0
      %1968 = vmatprep.subr.bf16.mxu0 0
      %1969 = vmatpush1.bf16.msra.mxu0 0
      %1970 = vmatprep.subr.bf16.mxu0 0
      %1971 = vmatpush1.bf16.msra.mxu0 0
      %1972 = vmatprep.subr.bf16.mxu0 0
      %1973 = vmatpush1.bf16.msra.mxu0 0
      %1974 = vmatprep.subr.bf16.mxu0 0
      %1975 = vmatpush1.bf16.msra.mxu0 0
      %1976 = vmatprep.subr.bf16.mxu0 0
      %1977 = vmatpush1.bf16.msra.mxu0 0
      %1978 = vmatprep.subr.bf16.mxu0 0
      %1979 = vmatpush1.bf16.msra.mxu0 0
      %1980 = vmatprep.subr.bf16.mxu0 0
      %1981 = vmatpush1.bf16.msra.mxu0 0
      %1982 = vmatprep.mubr.bf16.mxu0 0
      %1983 = vmatmul.mubr.bf16.gmra.mrb[0].mxu0 %v1939
      %v1984 = vpop.f32.mrb[0].mxu0
      %v1985 = vadd.f32 %v1924, %v1984
      %v1986 = vpop.f32.mrb[0].mxu0
      %v1987 = vpop.f32.mrb[0].mxu0
      %v1988 = vadd.f32 %v1924, %v1987
      %v1989 = vpop.f32.mrb[0].mxu0
      %1990 = vmatprep.mubr.bf16.mxu0 0
      %1991 = vmatmul.mubr.bf16.gmra.mrb[0].mxu0 %v1942
      %v1992 = vpop.f32.mrb[0].mxu0
      %v1993 = vadd.f32 %v1924, %v1992
      %v1994 = vpop.f32.mrb[0].mxu0
      %v1995 = vpop.f32.mrb[0].mxu0
      %v1996 = vadd.f32 %v1924, %v1995
      %v1997 = vpop.f32.mrb[0].mxu0
      %1998 = vmatprep.mubr.bf16.mxu0 0
      %1999 = vmatmul.mubr.bf16.gmra.mrb[0].mxu0 %v1945
      %v2000 = vpop.f32.mrb[0].mxu0
      %v2001 = vadd.f32 %v1924, %v2000
      %v2002 = vpop.f32.mrb[0].mxu0
      %v2003 = vpop.f32.mrb[0].mxu0
      %v2004 = vadd.f32 %v1924, %v2003
      %v2005 = vpop.f32.mrb[0].mxu0
      %2006 = vmatprep.mubr.bf16.mxu0 0
      %2007 = vmatmul.mubr.bf16.gmra.mrb[0].mxu0 %v1948
      %v2008 = vpop.f32.mrb[0].mxu0
      %v2009 = vadd.f32 %v1924, %v2008
      %v2010 = vpop.f32.mrb[0].mxu0
      %v2011 = vpop.f32.mrb[0].mxu0
      %v2012 = vadd.f32 %v1924, %v2011
      %v2013 = vpop.f32.mrb[0].mxu0
      %2014 = vdwg.mxu0
      %v2015 = vmul.f32 %v1985, 1.702
      %v2016 = vmul.f32 %v1988, 1.702
      %v2017 = vmul.f32 %v1993, 1.702
      %v2018 = vmul.f32 %v1996, 1.702
      %v2019 = vmul.f32 %v2001, 1.702
      %v2020 = vmul.f32 %v2004, 1.702
      %v2021 = vmul.f32 %v2009, 1.702
      %v2022 = vmul.f32 %v2012, 1.702
      %v2023 = vxor.u32 %v2015, 2147483648
      %v2024 = vxor.u32 %v2016, 2147483648
      %v2025 = vxor.u32 %v2017, 2147483648
      %v2026 = vxor.u32 %v2018, 2147483648
      %v2027 = vxor.u32 %v2019, 2147483648
      %v2028 = vxor.u32 %v2020, 2147483648
      %v2029 = vxor.u32 %v2021, 2147483648
      %v2030 = vxor.u32 %v2022, 2147483648
      %v2031 = vmul.f32 %v2023, 1.442695
      %v2032 = vpow.pop %v2031
      %v2033 = vmul.f32 %v2024, 1.442695
      %v2034 = vpow.pop %v2033
      %v2035 = vmul.f32 %v2025, 1.442695
      %v2036 = vpow.pop %v2035
      %v2037 = vmul.f32 %v2026, 1.442695
      %v2038 = vpow.pop %v2037
      %v2039 = vmul.f32 %v2027, 1.442695
      %v2040 = vpow.pop %v2039
      %v2041 = vmul.f32 %v2028, 1.442695
      %v2042 = vpow.pop %v2041
      %v2043 = vmul.f32 %v2029, 1.442695
      %v2044 = vpow.pop %v2043
      %v2045 = vmul.f32 %v2030, 1.442695
      %v2046 = vpow.pop %v2045
      %v2047 = vadd.f32 %v2032, 1.0
      %v2048 = vadd.f32 %v2034, 1.0
      %v2049 = vadd.f32 %v2036, 1.0
      %v2050 = vadd.f32 %v2038, 1.0
      %v2051 = vadd.f32 %v2040, 1.0
      %v2052 = vadd.f32 %v2042, 1.0
      %v2053 = vadd.f32 %v2044, 1.0
      %v2054 = vadd.f32 %v2046, 1.0
      %v2055 = vrcp.pop %v2047
      %v2056 = vmul.f32 1.0, %v2055
      %v2057 = vrcp.pop %v2048
      %v2058 = vmul.f32 1.0, %v2057
      %v2059 = vrcp.pop %v2049
      %v2060 = vmul.f32 1.0, %v2059
      %v2061 = vrcp.pop %v2050
      %v2062 = vmul.f32 1.0, %v2061
      %v2063 = vrcp.pop %v2051
      %v2064 = vmul.f32 1.0, %v2063
      %v2065 = vrcp.pop %v2052
      %v2066 = vmul.f32 1.0, %v2065
      %v2067 = vrcp.pop %v2053
      %v2068 = vmul.f32 1.0, %v2067
      %v2069 = vrcp.pop %v2054
      %v2070 = vmul.f32 1.0, %v2069
      %v2071 = vmul.f32 %v1985, %v2056
      %v2072 = vmul.f32 %v1988, %v2058
      %v2073 = vmul.f32 %v1993, %v2060
      %v2074 = vmul.f32 %v1996, %v2062
      %v2075 = vmul.f32 %v2001, %v2064
      %v2076 = vmul.f32 %v2004, %v2066
      %v2077 = vmul.f32 %v2009, %v2068
      %v2078 = vmul.f32 %v2012, %v2070
      %v2079 = vpack.c.bf16 %v2072, %v2071
      %v2080 = vpack.c.bf16 %v2074, %v2073
      %v2081 = vpack.c.bf16 %v2076, %v2075
      %v2082 = vpack.c.bf16 %v2078, %v2077
      %v2083 = vld [vmem:[%s642] sm:$0xf]
      %v2084 = vld [vmem:[%s642 + $0x4] sm:$0xf]
      %v2085 = vld [vmem:[%s642 + $0x8] sm:$0xf]
      %v2086 = vld [vmem:[%s642 + $0xc] sm:$0xf]
      %v2087 = vld [vmem:[%s642 + $0x10] sm:$0xf]
      %v2088 = vld [vmem:[%s642 + $0x14] sm:$0xf]
      %v2089 = vld [vmem:[%s642 + $0x18] sm:$0xf]
      %v2090 = vld [vmem:[%s642 + $0x1c] sm:$0xf]
      %v2091 = vld [vmem:[%s642 + $0x20] sm:$0xf]
      %v2092 = vld [vmem:[%s642 + $0x24] sm:$0xf]
      %v2093 = vld [vmem:[%s642 + $0x28] sm:$0xf]
      %v2094 = vld [vmem:[%s642 + $0x2c] sm:$0xf]
      %v2095 = vld [vmem:[%s642 + $0x30] sm:$0xf]
      %v2096 = vld [vmem:[%s642 + $0x34] sm:$0xf]
      %v2097 = vld [vmem:[%s642 + $0x38] sm:$0xf]
      %v2098 = vld [vmem:[%s642 + $0x3c] sm:$0xf]
      %v2099 = vld [vmem:[%s645] sm:$0x1]
      %v2101 = vlaneseq
      %v2102 = vshrl.u32 %v2101, 7
      %v2103 = vsub.s32 0, %v2102
      %v2104 = vrot.slane %v2099, %v2103
      %v2122 = vunpack.c.l.b16 %v2083
      %v2123 = vunpack.c.l.b16 %v2084
      %v2124 = vunpack.c.l.b16 %v2085
      %v2125 = vunpack.c.l.b16 %v2086
      %v2126 = vunpack.c.l.b16 %v2087
      %v2127 = vunpack.c.l.b16 %v2088
      %v2128 = vunpack.c.l.b16 %v2089
      %v2129 = vunpack.c.l.b16 %v2090
      %v2130 = vunpack.c.l.b16 %v2091
      %v2131 = vunpack.c.l.b16 %v2092
      %v2132 = vunpack.c.l.b16 %v2093
      %v2133 = vunpack.c.l.b16 %v2094
      %v2134 = vunpack.c.l.b16 %v2095
      %v2135 = vunpack.c.l.b16 %v2096
      %v2136 = vunpack.c.l.b16 %v2097
      %v2137 = vunpack.c.l.b16 %v2098
      %v2138 = vpack.c.b16 %v2123, %v2122
      %v2139 = vpack.c.b16 %v2125, %v2124
      %v2140 = vpack.c.b16 %v2127, %v2126
      %v2141 = vpack.c.b16 %v2129, %v2128
      %v2142 = vpack.c.b16 %v2131, %v2130
      %v2143 = vpack.c.b16 %v2133, %v2132
      %v2144 = vpack.c.b16 %v2135, %v2134
      %v2145 = vpack.c.b16 %v2137, %v2136
      %2154 = vmatprep.subr.bf16.mxu0 0
      %2155 = vmatpush1.bf16.msra.mxu0 %v2138
      %2156 = vmatprep.subr.bf16.mxu0 0
      %2157 = vmatpush1.bf16.msra.mxu0 %v2139
      %2158 = vmatprep.subr.bf16.mxu0 0
      %2159 = vmatpush1.bf16.msra.mxu0 %v2140
      %2160 = vmatprep.subr.bf16.mxu0 0
      %2161 = vmatpush1.bf16.msra.mxu0 %v2141
      %2162 = vmatprep.subr.bf16.mxu0 0
      %2163 = vmatpush1.bf16.msra.mxu0 %v2142
      %2164 = vmatprep.subr.bf16.mxu0 0
      %2165 = vmatpush1.bf16.msra.mxu0 %v2143
      %2166 = vmatprep.subr.bf16.mxu0 0
      %2167 = vmatpush1.bf16.msra.mxu0 %v2144
      %2168 = vmatprep.subr.bf16.mxu0 0
      %2169 = vmatpush1.bf16.msra.mxu0 %v2145
      %2170 = vmatprep.subr.bf16.mxu0 0
      %2171 = vmatpush1.bf16.msra.mxu0 0
      %2172 = vmatprep.subr.bf16.mxu0 0
      %2173 = vmatpush1.bf16.msra.mxu0 0
      %2174 = vmatprep.subr.bf16.mxu0 0
      %2175 = vmatpush1.bf16.msra.mxu0 0
      %2176 = vmatprep.subr.bf16.mxu0 0
      %2177 = vmatpush1.bf16.msra.mxu0 0
      %2178 = vmatprep.subr.bf16.mxu0 0
      %2179 = vmatpush1.bf16.msra.mxu0 0
      %2180 = vmatprep.subr.bf16.mxu0 0
      %2181 = vmatpush1.bf16.msra.mxu0 0
      %2182 = vmatprep.subr.bf16.mxu0 0
      %2183 = vmatpush1.bf16.msra.mxu0 0
      %2184 = vmatprep.subr.bf16.mxu0 0
      %2185 = vmatpush1.bf16.msra.mxu0 0
      %2186 = vmatprep.mubr.bf16.mxu0 0
      %2187 = vmatmul.mubr.bf16.gmra.mrb[0].mxu0 %v2079
      %v2188 = vpop.f32.mrb[0].mxu0
      %v2189 = vadd.f32 %v2104, %v2188
      %v2190 = vpop.f32.mrb[0].mxu0
      %v2191 = vpop.f32.mrb[0].mxu0
      %v2192 = vadd.f32 %v2104, %v2191
      %v2193 = vpop.f32.mrb[0].mxu0
      %2194 = vmatprep.mubr.bf16.mxu0 0
      %2195 = vmatmul.mubr.bf16.gmra.mrb[0].mxu0 %v2080
      %v2196 = vpop.f32.mrb[0].mxu0
      %v2197 = vadd.f32 %v2104, %v2196
      %v2198 = vpop.f32.mrb[0].mxu0
      %v2199 = vpop.f32.mrb[0].mxu0
      %v2200 = vadd.f32 %v2104, %v2199
      %v2201 = vpop.f32.mrb[0].mxu0
      %2202 = vmatprep.mubr.bf16.mxu0 0
      %2203 = vmatmul.mubr.bf16.gmra.mrb[0].mxu0 %v2081
      %v2204 = vpop.f32.mrb[0].mxu0
      %v2205 = vadd.f32 %v2104, %v2204
      %v2206 = vpop.f32.mrb[0].mxu0
      %v2207 = vpop.f32.mrb[0].mxu0
      %v2208 = vadd.f32 %v2104, %v2207
      %v2209 = vpop.f32.mrb[0].mxu0
      %2210 = vmatprep.mubr.bf16.mxu0 0
      %2211 = vmatmul.mubr.bf16.gmra.mrb[0].mxu0 %v2082
      %v2212 = vpop.f32.mrb[0].mxu0
      %v2213 = vadd.f32 %v2104, %v2212
      %v2214 = vpop.f32.mrb[0].mxu0
      %v2215 = vpop.f32.mrb[0].mxu0
      %v2216 = vadd.f32 %v2104, %v2215
      %v2217 = vpop.f32.mrb[0].mxu0
      %2218 = vdwg.mxu0
      %v2219 = vadd.f32 %v1769, %v2189
      %v2220 = vadd.f32 %v1770, %v2192
      %v2221 = vadd.f32 %v1771, %v2197
      %v2222 = vadd.f32 %v1772, %v2200
      %v2223 = vadd.f32 %v1773, %v2205
      %v2224 = vadd.f32 %v1774, %v2208
      %v2225 = vadd.f32 %v1775, %v2213
      %v2226 = vadd.f32 %v1776, %v2216
      %2227 = vst.msk [vmem:[#allocation2] sm:$0xff] %vm685, %v2219
      %2228 = vst.msk [vmem:[#allocation2 + $0x8] sm:$0xff] %vm685, %v2220
      %2229 = vst.msk [vmem:[#allocation2 + $0x10] sm:$0xff] %vm685, %v2221
      %2230 = vst.msk [vmem:[#allocation2 + $0x18] sm:$0xff] %vm685, %v2222
      %2231 = vst.msk [vmem:[#allocation2 + $0x20] sm:$0xff] %vm685, %v2223
      %2232 = vst.msk [vmem:[#allocation2 + $0x28] sm:$0xff] %vm685, %v2224
      %2233 = vst.msk [vmem:[#allocation2 + $0x30] sm:$0xff] %vm685, %v2225
      %2234 = vst.msk [vmem:[#allocation2 + $0x38] sm:$0xff] %vm685, %v2226
      %p2235 = scmp.eq.s32.totalorder %s29, 1
      // Predicated region
      $region77: #{vision_transformer_forward.4} parent=71 // pred_check
        %p2236 = pneg %p2235
      $region78: #{vision_transformer_forward.4} parent=71 // pred_check_branch
        %2238 = sbr.rel (%p2236) target = $region80
      $region79: #{vision_transformer_forward.4} parent=71 // pred_region
        %v2239 = vld [vmem:[#allocation2] sm:$0xff]
        %v2240 = vld [vmem:[#allocation2 + $0x8] sm:$0xff]
        %v2241 = vld [vmem:[#allocation2 + $0x10] sm:$0xff]
        %v2242 = vld [vmem:[#allocation2 + $0x18] sm:$0xff]
        %v2243 = vld [vmem:[#allocation2 + $0x20] sm:$0xff]
        %v2244 = vld [vmem:[#allocation2 + $0x28] sm:$0xff]
        %v2245 = vld [vmem:[#allocation2 + $0x30] sm:$0xff]
        %v2246 = vld [vmem:[#allocation2 + $0x38] sm:$0xff]
        %2247 = vst.msk [vmem:[%s651] sm:$0xff] %vm685, %v2239
        %2248 = vst.msk [vmem:[%s651 + $0x8] sm:$0xff] %vm685, %v2240
        %2249 = vst.msk [vmem:[%s651 + $0x10] sm:$0xff] %vm685, %v2241
        %2250 = vst.msk [vmem:[%s651 + $0x18] sm:$0xff] %vm685, %v2242
        %2251 = vst.msk [vmem:[%s651 + $0x20] sm:$0xff] %vm685, %v2243
        %2252 = vst.msk [vmem:[%s651 + $0x28] sm:$0xff] %vm685, %v2244
        %2253 = vst.msk [vmem:[%s651 + $0x30] sm:$0xff] %vm685, %v2245
        %2254 = vst.msk [vmem:[%s651 + $0x38] sm:$0xff] %vm685, %v2246
      $region80: #{vision_transformer_forward.4} parent=71 // pred_fallthru
        _
      %s2255 = smul.u32 2, %s28
      %p2256 = scmp.lt.s32.totalorder %s2255, 1
      %s2257 = scalar_select %p2256, %s2255, 1
      %s2258 = smul.addr %s2257, 4
      %s2259 = smul.addr %s2258, 8
      %s2260 = scalar_lea.vmem %s13, %s2259
      // Predicated region
      $region81: #{vision_transformer_forward.4} parent=71 // pred_check
        %p2261 = pneg %p392
      $region82: #{vision_transformer_forward.4} parent=71 // pred_check_branch
        %2263 = sbr.rel (%p2261) target = $region84
      $region83: #{vision_transformer_forward.4} parent=71 // pred_region
        %s2264 = smul.u32 2, %s28
      $region84: #{vision_transformer_forward.4} parent=71 // pred_fallthru
        _
      // Predicated region
      $region85: #{vision_transformer_forward.4} parent=71 // pred_check
        %p2265 = pneg %p392
      $region86: #{vision_transformer_forward.4} parent=71 // pred_check_branch
        %2267 = sbr.rel (%p2265) target = $region88
      $region87: #{vision_transformer_forward.4} parent=71 // pred_region
        %s2268 = smul.u32 2, %s28
        %p2269 = scmp.lt.s32.totalorder %s2268, 1
        %s2270 = scalar_select %p2269, %s2268, 1
        %s2271 = smul.addr %s2270, 4
        %s2272 = smul.addr %s2271, 8
        %s2273 = scalar_lea.vmem %s13, %s2272
      $region88: #{vision_transformer_forward.4} parent=71 // pred_fallthru
        _
    $region72: #{vision_transformer_forward.4} parent=5 // pred_fallthru
      _
    %p2274 = scmp.le.s32.totalorder 2, %s19
    // Predicated region
    $region89: #{vision_transformer_forward.4} parent=5 // pred_check
      %p2275 = pneg %p2274
    $region90: #{vision_transformer_forward.4} parent=5 // pred_check_branch
      %2277 = sbr.rel (%p2275) target = $region92
    $region91: #{vision_transformer_forward.4} parent=5 // pred_region
      %s2278 = ssub.s32 %s19, 2
    $region92: #{vision_transformer_forward.4} parent=5 // pred_fallthru
      _
  $region6: #{vision_transformer_forward.4} parent=0 // loop_footer
    %s23 = sadd.s32 1, %s19
  $region7: #{vision_transformer_forward.4} parent=0 // loop_footer_branch
    %18 = sbr.rel target = $region3
  $region8: #{vision_transformer_forward.4} parent=0 // loop_exit
    _

</llo_original>
